<compile_context>
chip_gen: v7x
topology: tpu7x:2x2x1
jax: 0.10.0
libtpu: 0.0.40
codegen_flags: <defaults>
</compile_context>

<pallas_src>
import functools

import jax
import jax.numpy as jnp
from jax.experimental import pallas as pl
from jax.experimental.pallas import tpu as pltpu


def _round_up(x, m):
    return ((x + m - 1) // m) * m


def _pick_pack_factor(N, C):
    """Largest power-of-two P with P*C <= 128 that divides N (>= 1)."""
    p_max = 1
    while p_max * 2 * C <= 128:
        p_max *= 2
    P = 1
    while P * 2 <= p_max and N % (P * 2) == 0:
        P *= 2
    return P


def _voxel_mean_kernel(inv_occ_ref, feat_ref, sel_ref, out_ref, *, precision):
    # feat_ref: (tile_rows, P*K*C)   packed voxels, lane-dense
    # sel_ref : (P*K*C, P*C)         constant 0/1 reduce+repack matrix (resident)
    # inv_occ_ref / out_ref: (tile_rows, P*C)  packed output layout
    acc = jnp.dot(
        feat_ref[...],
        sel_ref[...],
        preferred_element_type=jnp.float32,
        precision=precision,
    )
    out_ref[...] = (acc * inv_occ_ref[...]).astype(out_ref.dtype)


def voxel_feature_extractor(feature, occupancy, *, tile_rows=None,
                            vmem_budget_bytes=8 * 1024 * 1024):
    """feature: (N, K, C) float; occupancy: (N,) int/float. Returns (N, C)."""
    N, K, C = feature.shape
    KC = K * C

    # ---- pack factor & free row-major reshapes (no pad / no slice of feature)
    P = _pick_pack_factor(N, C)
    rows = N // P
    lanes_in = P * KC            # 1024 for K=8, C=4, P=32
    lanes_out = P * C            # 128  for C=4, P=32

    feat_packed = feature.reshape(rows, lanes_in)          # free reshape

    # 1/occ in f32, pre-broadcast to the packed output layout (tiny: N*C*4 B).
    inv_occ = (1.0 / occupancy.astype(jnp.float32)).reshape(N, 1)
    inv_occ_packed = jnp.broadcast_to(inv_occ, (N, C)).reshape(rows, lanes_out)

    # Constant 0/1 selection matrix: S[p*K*C + k*C + c, p*C + c] = 1.
    j = jnp.arange(lanes_in)
    dst = (j // KC) * C + (j % C)
    sel = jax.nn.one_hot(dst, lanes_out, dtype=feature.dtype)

    # f32 inputs: request full-precision contraction (exact at 1e-5 tolerance);
    # sub-32-bit inputs multiply exactly on the MXU with f32 accumulation.
    precision = (jax.lax.Precision.HIGHEST
                 if jnp.dtype(feature.dtype) == jnp.dtype(jnp.float32) else None)

    # ---- tile sizing: ~8 MiB double-buffered budget, but keep >= ~4 grid steps
    itemsize = jnp.dtype(feature.dtype).itemsize
    if tile_rows is None:
        per_row = (_round_up(lanes_in, 128) * itemsize        # feature block
                   + _round_up(lanes_out, 128) * itemsize     # output block
                   + _round_up(lanes_out, 128) * 4)           # 1/occ block (f32)
        budget_rows = max(8, ((vmem_budget_bytes // (2 * per_row)) // 8) * 8)
        step_rows = max(8, _round_up(pl.cdiv(rows, 4), 8))    # >=2 steps per TC on v7x
        tile_rows = min(budget_rows, step_rows)
    tile_rows = max(8, min(int(tile_rows), _round_up(rows, 8)))
    tile_rows = (tile_rows // 8) * 8                          # sublane-aligned

    grid = (pl.cdiv(rows, tile_rows),)                        # tail block handled by Pallas

    kernel = functools.partial(_voxel_mean_kernel, precision=precision)
    # Note: on v7x, if per-grid-step time falls below ~2 us, adding
    # pipeline_mode=pl.Buffered(3) on the feature BlockSpec hides DMA startup.
    out_packed = pl.pallas_call(
        kernel,
        out_shape=jax.ShapeDtypeStruct((rows, lanes_out), feature.dtype),
        grid=grid,
        in_specs=[
            pl.BlockSpec((tile_rows, lanes_out), lambda i: (i, 0)),   # 1/occ (packed)
            pl.BlockSpec((tile_rows, lanes_in), lambda i: (i, 0)),    # feature (packed)
            pl.BlockSpec((lanes_in, lanes_out), lambda i: (0, 0)),    # sel (resident)
        ],
        out_specs=pl.BlockSpec((tile_rows, lanes_out), lambda i: (i, 0)),
        compiler_params=pltpu.CompilerParams(
            dimension_semantics=("parallel",),     # megacore-shardable N axis
        ),
    )(inv_occ_packed, feat_packed, sel)

    return out_packed.reshape(N, C)                           # free reshape back


if __name__ == "__main__":
    root = jax.random.PRNGKey(0)
    k_feat, k_occ, k_feat2, k_occ2 = jax.random.split(root, 4)

    # Case 1: N divisible by 32 -> fully lane-dense packing (P=32 for C=4):
    # feature blocks are (tile, 1024), output blocks (tile, 128).
    N, K, C = 512, 8, 4
    feature = jax.random.normal(k_feat, (N, K, C), dtype=jnp.float32)
    occupancy = jax.random.randint(k_occ, (N,), 1, K + 1, dtype=jnp.int32)
    out = jax.block_until_ready(voxel_feature_extractor(feature, occupancy))
    ref = feature.sum(axis=1) / occupancy.astype(feature.dtype)[:, None]
    assert out.shape == (N, C)
    # 1e-4: headroom for reciprocal-multiply (1 ulp) + multi-pass f32 matmul.
    assert jnp.allclose(out, ref, atol=1e-4, rtol=1e-4)

    # Case 2: N % 32 != 0 -> graceful fallback to P=8 packing (input still
    # 256-lane dense); explicit tile_rows exercises the cdiv tail block.
    N2 = 200
    feature2 = jax.random.normal(k_feat2, (N2, K, C), dtype=jnp.float32)
    occupancy2 = jax.random.randint(k_occ2, (N2,), 1, K + 1, dtype=jnp.int32)
    out2 = jax.block_until_ready(
        voxel_feature_extractor(feature2, occupancy2, tile_rows=16))
    ref2 = feature2.sum(axis=1) / occupancy2.astype(feature2.dtype)[:, None]
    assert out2.shape == (N2, C)
    assert jnp.allclose(out2, ref2, atol=1e-4, rtol=1e-4)

    print("KERNEL_OK")
</pallas_src>

<mosaic_0001>
module attributes {stable_mosaic.version = 11 : i64} {
  func.func @_voxel_mean_kernel(%arg0: i32, %arg1: memref<8x128xf32, #tpu.memory_space<vmem>>, %arg2: memref<8x1024xf32, #tpu.memory_space<vmem>>, %arg3: memref<1024x128xf32, #tpu.memory_space<vmem>>, %arg4: memref<8x128xf32, #tpu.memory_space<vmem>>) attributes {dimension_semantics = [#tpu.dimension_semantics<parallel>], iteration_bounds = array<i64: 2>, scalar_prefetch = 0 : i64, scratch_operands = 0 : i64, tpu.core_type = #tpu.core_type<tc>, window_params = [{transform_indices = @transform_0, window_bounds = array<i64: 8, 128>}, {transform_indices = @transform_1, window_bounds = array<i64: 8, 1024>}, {pipeline_mode = #tpu.pipeline_mode<synchronous>, transform_indices = @transform_2, window_bounds = array<i64: 1024, 128>}, {transform_indices = @transform_3, window_bounds = array<i64: 8, 128>}]} {
    %c0 = arith.constant 0 : index
    %c0_0 = arith.constant 0 : index
    %0 = vector.load %arg2[%c0, %c0_0] : memref<8x1024xf32, #tpu.memory_space<vmem>>, vector<8x1024xf32>
    %c0_1 = arith.constant 0 : index
    %c0_2 = arith.constant 0 : index
    %1 = vector.load %arg3[%c0_1, %c0_2] : memref<1024x128xf32, #tpu.memory_space<vmem>>, vector<1024x128xf32>
    %cst = arith.constant dense<0.000000e+00> : vector<8x128xf32>
    %2 = tpu.matmul %0, %1, %cst {dimension_numbers = #tpu.dot_dimension_numbers<[1], [0], [0], [1], [0, 0, 1, 1], [], []>, precision = #tpu.contract_precision<fp32>} : vector<8x1024xf32>, vector<1024x128xf32>, vector<8x128xf32> -> vector<8x128xf32>
    %c0_3 = arith.constant 0 : index
    %c0_4 = arith.constant 0 : index
    %3 = vector.load %arg1[%c0_3, %c0_4] : memref<8x128xf32, #tpu.memory_space<vmem>>, vector<8x128xf32>
    %4 = arith.mulf %2, %3 : vector<8x128xf32>
    %c0_5 = arith.constant 0 : index
    %c0_6 = arith.constant 0 : index
    %5 = vector.load %arg4[%c0_5, %c0_6] : memref<8x128xf32, #tpu.memory_space<vmem>>, vector<8x128xf32>
    tpu.vector_store %arg4[%c0_5, %c0_6], %4 {strides = array<i32>} : memref<8x128xf32, #tpu.memory_space<vmem>>, vector<8x128xf32>,
    return
  }
  func.func @transform_0(%arg0: i32) -> (i32, i32) {
    %c0_i32 = arith.constant 0 : i32
    %c0_i32_0 = arith.constant 0 : i32
    return %arg0, %c0_i32 : i32, i32
  }
  func.func @transform_1(%arg0: i32) -> (i32, i32) {
    %c0_i32 = arith.constant 0 : i32
    %c0_i32_0 = arith.constant 0 : i32
    return %arg0, %c0_i32 : i32, i32
  }
  func.func @transform_2(%arg0: i32) -> (i32, i32) {
    %c0_i32 = arith.constant 0 : i32
    %c0_i32_0 = arith.constant 0 : i32
    %c0_i32_1 = arith.constant 0 : i32
    return %c0_i32, %c0_i32_0 : i32, i32
  }
  func.func @transform_3(%arg0: i32) -> (i32, i32) {
    %c0_i32 = arith.constant 0 : i32
    %c0_i32_0 = arith.constant 0 : i32
    return %arg0, %c0_i32 : i32, i32
  }
}

</mosaic_0001>

<llo_original>
// kernel: tpu_custom_call.1
$region0: #{tpu_custom_call.1}
  #allocation0 [shape = 'u32[]', space=smem, size = 0x4, offset = 0x4, fixed_abs, tag = 'smem constant byte address 0x4 - core index']
  #allocation1 [shape = 'u32[144,128]{1,0:T(1,128)}', space=vmem, size = 0x12000, scoped, tag = 'internal scratch']
  %s0 = inlined_call_operand.hbm [shape: f32[16,128], index: 0, kind: input, shape index: {}]
  %s1 = inlined_call_operand.hbm [shape: f32[16,1024], index: 1, kind: input, shape index: {}]
  %s2 = inlined_call_operand.hbm [shape: f32[1024,128], index: 2, kind: input, shape index: {}]
  %s3 = inlined_call_operand.hbm [shape: f32[16,128], index: 3, kind: output, shape index: {}]
  %s4 = sld [smem:[#allocation0]]
  $region57: #{tpu_custom_call.1} parent=0
    _
  %s6 = ssub.s32 1, %s4
  %s7 = scalar_select 0, %s6, %s4
  $region1: #{tpu_custom_call.1} parent=0
    #allocation2 [shape = 'u8[8192]{0}', space=vmem, size = 0x2000, scoped, tag = 'input window, operand 0']
    #allocation3 [shape = 's32[2]{0}', space=sflag, size = 0x8, scoped, tag = 'scoped memory for tpu_custom_call.1']
    #allocation4 [shape = 's32[2]{0}', space=sflag, size = 0x8, scoped, tag = 'scoped memory for tpu_custom_call.1']
    #allocation5 [shape = 'u8[65536]{0}', space=vmem, size = 0x10000, scoped, tag = 'input window, operand 1']
    #allocation6 [shape = 's32[2]{0}', space=sflag, size = 0x8, scoped, tag = 'scoped memory for tpu_custom_call.1']
    #allocation7 [shape = 'u8[524288]{0}', space=vmem, size = 0x80000, scoped, tag = 'input window, operand 2, single buffered']
    #allocation8 [shape = 'u8[8192]{0}', space=vmem, size = 0x2000, scoped, tag = 'output window, operand 0']
    %8 = vsyncpa [#allocation3], 0
    %s9 = scalar_lea.sflag [#allocation3], 1
    %10 = vsyncpa %s9, 0
    %11 = vsyncpa [#allocation6], 0
    %s12 = scalar_lea.sflag [#allocation6], 1
    %13 = vsyncpa %s12, 0
    %14 = vsyncpa [#allocation4], 0
    %s15 = scalar_lea.sflag [#allocation4], 1
    %16 = vsyncpa %s15, 0
    loop: start=0, step=1, limit=4
    $region2: #{tpu_custom_call.1} parent=1 // loop_pre_header
      _
    $region3: #{tpu_custom_call.1} parent=1 // loop_header
      %s18 = sphi 0, %s22
      %p19 = scmp.ge.s32.totalorder %s18, 4
      %s28 = sphi 0, %s30
      %s31 = sphi 0, %s28
      %s32 = sphi 0, %s31
      %s48 = sphi 0, %s32
      %s54 = sphi 0, %s56
      %s57 = sphi 0, %s54
      %s58 = sphi 0, %s57
      %s74 = sphi 0, %s58
      %s78 = sphi 0, %s78
      %s80 = sphi 0, %s78
      %s81 = sphi 0, %s80
      %s95 = sphi 0, %s81
      %s101 = sphi 0, %s103
      %s104 = sphi 0, %s101
      %s105 = sphi 0, %s104
      %s121 = sphi 0, %s105
    $region4: #{tpu_custom_call.1} parent=1 // loop_header_branch
      %21 = sbr.rel (%p19) target = $region8
    $region5: #{tpu_custom_call.1} parent=1 // loop_body
      %s23 = ssub.s32 %s18, 1
      %s24 = ssub.s32 %s18, 2
      %s25 = sadd.s32 %s18, 1
      %s26 = ssub.s32 %s18, %s25
      %p27 = scmp.eq.s32.totalorder %s26, 0
      %s29 = sadd.s32 %s28, 1
      %s30 = scalar_select %p27, %s28, %s29
      %p33 = pneg %p27
      %p34 = scmp.eq.s32.totalorder %s18, 1
      %p35 = por %p33, %p34
      %p36 = scmp.ne.s32.totalorder %s28, %s31
      %p37 = scmp.eq.s32.totalorder %s18, 0
      %p38 = por %p36, %p37
      %p39 = scmp.ne.s32.totalorder %s28, %s31
      %p40 = scmp.eq.s32.totalorder %s23, 1
      %p41 = por %p39, %p40
      %p42 = scmp.ne.s32.totalorder %s31, %s32
      %p43 = scmp.eq.s32.totalorder %s23, 0
      %p44 = por %p42, %p43
      %p45 = scmp.ne.s32.totalorder %s31, %s32
      %p46 = scmp.eq.s32.totalorder %s24, 1
      %p47 = por %p45, %p46
      %p49 = scmp.ne.s32.totalorder %s32, %s48
      %p50 = scmp.eq.s32.totalorder %s24, 0
      %p51 = por %p49, %p50
      %s52 = ssub.s32 %s18, %s25
      %p53 = scmp.eq.s32.totalorder %s52, 0
      %s55 = sadd.s32 %s54, 1
      %s56 = scalar_select %p53, %s54, %s55
      %p59 = pneg %p53
      %p60 = scmp.eq.s32.totalorder %s18, 1
      %p61 = por %p59, %p60
      %p62 = scmp.ne.s32.totalorder %s54, %s57
      %p63 = scmp.eq.s32.totalorder %s18, 0
      %p64 = por %p62, %p63
      %p65 = scmp.ne.s32.totalorder %s54, %s57
      %p66 = scmp.eq.s32.totalorder %s23, 1
      %p67 = por %p65, %p66
      %p68 = scmp.ne.s32.totalorder %s57, %s58
      %p69 = scmp.eq.s32.totalorder %s23, 0
      %p70 = por %p68, %p69
      %p71 = scmp.ne.s32.totalorder %s57, %s58
      %p72 = scmp.eq.s32.totalorder %s24, 1
      %p73 = por %p71, %p72
      %p75 = scmp.ne.s32.totalorder %s58, %s74
      %p76 = scmp.eq.s32.totalorder %s24, 0
      %p77 = por %p75, %p76
      %s79 = sadd.s32 %s78, 1
      %p82 = scmp.eq.s32.totalorder %s18, 1
      %p83 = scmp.ne.s32.totalorder %s78, %s80
      %p84 = scmp.eq.s32.totalorder %s18, 0
      %p85 = por %p83, %p84
      %p86 = scmp.ne.s32.totalorder %s78, %s80
      %p87 = scmp.eq.s32.totalorder %s23, 1
      %p88 = por %p86, %p87
      %p89 = scmp.ne.s32.totalorder %s80, %s81
      %p90 = scmp.eq.s32.totalorder %s23, 0
      %p91 = por %p89, %p90
      %p92 = scmp.ne.s32.totalorder %s80, %s81
      %p93 = scmp.eq.s32.totalorder %s24, 1
      %p94 = por %p92, %p93
      %p96 = scmp.ne.s32.totalorder %s81, %s95
      %p97 = scmp.eq.s32.totalorder %s24, 0
      %p98 = por %p96, %p97
      %s99 = ssub.s32 %s18, %s25
      %p100 = scmp.eq.s32.totalorder %s99, 0
      %s102 = sadd.s32 %s101, 1
      %s103 = scalar_select %p100, %s101, %s102
      %p106 = pneg %p100
      %p107 = scmp.eq.s32.totalorder %s18, 1
      %p108 = por %p106, %p107
      %p109 = scmp.ne.s32.totalorder %s101, %s104
      %p110 = scmp.eq.s32.totalorder %s18, 0
      %p111 = por %p109, %p110
      %p112 = scmp.ne.s32.totalorder %s101, %s104
      %p113 = scmp.eq.s32.totalorder %s23, 1
      %p114 = por %p112, %p113
      %p115 = scmp.ne.s32.totalorder %s104, %s105
      %p116 = scmp.eq.s32.totalorder %s23, 0
      %p117 = por %p115, %p116
      %p118 = scmp.ne.s32.totalorder %s104, %s105
      %p119 = scmp.eq.s32.totalorder %s24, 1
      %p120 = por %p118, %p119
      %p122 = scmp.ne.s32.totalorder %s105, %s121
      %p123 = scmp.eq.s32.totalorder %s24, 0
      %p124 = por %p122, %p123
      %p125 = scmp.le.s32.totalorder 1, %s18
      %p126 = scmp.lt.s32.totalorder %s18, 3
      %p127 = pnand %p125, %p126
      %p128 = pneg %p127
      // Predicated region
      $region9: #{tpu_custom_call.1} parent=5 // pred_check
        _
      $region10: #{tpu_custom_call.1} parent=5 // pred_check_branch
        %130 = sbr.rel (%p127) target = $region12
      $region11: #{tpu_custom_call.1} parent=5 // pred_region
        %s131 = ssub.s32 %s18, 1
        // Predicated region
        $region13: #{tpu_custom_call.1} parent=11 // pred_check
          %p132 = pneg %p91
        $region14: #{tpu_custom_call.1} parent=11 // pred_check_branch
          %134 = sbr.rel (%p132) target = $region16
        $region15: #{tpu_custom_call.1} parent=11 // pred_region
          %s136 = ssub.s32 16384, 16384
          %137 = vsyncadd [#allocation6], %s136
          %s138 = sshll.u32 [#allocation7], 4
          %s139 = int_to_ptr.vmem [resolvable:$true] %s138
          %144 = dma.hbm_to_vmem [thread:$0]  %s2, 16384, %s139, [#allocation6], 128, 128, 8
        $region16: #{tpu_custom_call.1} parent=11 // pred_fallthru
          _
      $region12: #{tpu_custom_call.1} parent=5 // pred_fallthru
        _
      %p145 = scmp.lt.s32.totalorder %s18, 2
      // Predicated region
      $region17: #{tpu_custom_call.1} parent=5 // pred_check
        %p146 = pneg %p145
      $region18: #{tpu_custom_call.1} parent=5 // pred_check_branch
        %148 = sbr.rel (%p146) target = $region20
      $region19: #{tpu_custom_call.1} parent=5 // pred_region
        // Predicated region
        $region21: #{tpu_custom_call.1} parent=19 // pred_check
          %p149 = pneg %p38
        $region22: #{tpu_custom_call.1} parent=19 // pred_check_branch
          %151 = sbr.rel (%p149) target = $region24
        $region23: #{tpu_custom_call.1} parent=19 // pred_region
          %s152 = sand.u32 %s28, 1
          %s153 = scalar_lea.sflag [#allocation3], %s152
          %s154 = sand.u32 %s28, 1
          %s155 = smul.addr %s154, 8
          %s156 = scalar_lea.vmem [#allocation2], %s155
          %s158 = ssub.s32 128, 128
          %159 = vsyncadd %s153, %s158
          %s160 = smul.addr %s18, 128
          %s161 = scalar_lea.hbm %s0, %s160
          %s163 = sshll.u32 %s156, 4
          %s164 = int_to_ptr.vmem [resolvable:$true] %s163
          %166 = dma.hbm_to_vmem [thread:$0]  %s161, 128, %s164, %s153
        $region24: #{tpu_custom_call.1} parent=19 // pred_fallthru
          _
        // Predicated region
        $region25: #{tpu_custom_call.1} parent=19 // pred_check
          %p167 = pneg %p64
        $region26: #{tpu_custom_call.1} parent=19 // pred_check_branch
          %169 = sbr.rel (%p167) target = $region28
        $region27: #{tpu_custom_call.1} parent=19 // pred_region
          %s170 = sand.u32 %s18, 1
          %s171 = scalar_lea.sflag [#allocation6], %s170
          %s172 = sand.u32 %s54, 1
          %s173 = smul.addr %s172, 64
          %s174 = scalar_lea.vmem [#allocation5], %s173
          %s176 = ssub.s32 1024, 1024
          %177 = vsyncadd %s171, %s176
          %s178 = smul.addr %s18, 8
          %s179 = smul.addr %s178, 128
          %s180 = scalar_lea.hbm %s1, %s179
          %s182 = sshll.u32 %s174, 4
          %s183 = int_to_ptr.vmem [resolvable:$true] %s182
          %185 = dma.hbm_to_vmem [thread:$0]  %s180, 1024, %s183, %s171
        $region28: #{tpu_custom_call.1} parent=19 // pred_fallthru
          _
      $region20: #{tpu_custom_call.1} parent=5 // pred_fallthru
        _
      %p186 = scmp.le.s32.totalorder 1, %s18
      %p187 = scmp.lt.s32.totalorder %s18, 3
      %p188 = pnand %p186, %p187
      %p189 = pneg %p188
      // Predicated region
      $region29: #{tpu_custom_call.1} parent=5 // pred_check
        _
      $region30: #{tpu_custom_call.1} parent=5 // pred_check_branch
        %191 = sbr.rel (%p188) target = $region32
      $region31: #{tpu_custom_call.1} parent=5 // pred_region
        %s192 = ssub.s32 %s18, 1
        %s193 = sand.u32 %s31, 1
        %s194 = scalar_lea.sflag [#allocation3], %s193
        %s195 = sand.u32 %s31, 1
        %s196 = smul.addr %s195, 8
        %s197 = scalar_lea.vmem [#allocation2], %s196
        // Predicated region
        $region33: #{tpu_custom_call.1} parent=31 // pred_check
          %p198 = pneg %p44
        $region34: #{tpu_custom_call.1} parent=31 // pred_check_branch
          %200 = sbr.rel (%p198) target = $region36
        $region35: #{tpu_custom_call.1} parent=31 // pred_region
          %201 = dma.done %s194, 128
        $region36: #{tpu_custom_call.1} parent=31 // pred_fallthru
          _
        %s202 = sand.u32 %s23, 1
        %s203 = scalar_lea.sflag [#allocation6], %s202
        %s204 = sand.u32 %s57, 1
        %s205 = smul.addr %s204, 64
        %s206 = scalar_lea.vmem [#allocation5], %s205
        // Predicated region
        $region37: #{tpu_custom_call.1} parent=31 // pred_check
          %p207 = pneg %p70
        $region38: #{tpu_custom_call.1} parent=31 // pred_check_branch
          %209 = sbr.rel (%p207) target = $region40
        $region39: #{tpu_custom_call.1} parent=31 // pred_region
          %210 = dma.done %s203, 1024
        $region40: #{tpu_custom_call.1} parent=31 // pred_fallthru
          _
        // Predicated region
        $region41: #{tpu_custom_call.1} parent=31 // pred_check
          %p211 = pneg %p91
        $region42: #{tpu_custom_call.1} parent=31 // pred_check_branch
          %213 = sbr.rel (%p211) target = $region44
        $region43: #{tpu_custom_call.1} parent=31 // pred_region
          %214 = dma.done [#allocation6], 16384
        $region44: #{tpu_custom_call.1} parent=31 // pred_fallthru
          _
        %s215 = sand.u32 %s31, 1
        %s216 = scalar_lea.sflag [#allocation3], %s215
        %s217 = sand.u32 %s31, 1
        %s218 = smul.addr %s217, 8
        %s219 = scalar_lea.vmem [#allocation2], %s218
        %p220 = pneg %p44
        %p221 = pneg %p41
        %s222 = sand.u32 %s23, 1
        %s223 = scalar_lea.sflag [#allocation6], %s222
        %s224 = sand.u32 %s57, 1
        %s225 = smul.addr %s224, 64
        %s226 = scalar_lea.vmem [#allocation5], %s225
        %p227 = pneg %p70
        %p228 = pneg %p67
        %p229 = pneg %p91
        %p230 = pneg %p88
        %p231 = pneg %p117
        %p232 = pneg %p114
        %s233 = sand.u32 %s104, 1
        %s234 = scalar_lea.sflag [#allocation4], %s233
        %s235 = sand.u32 %s104, 1
        %s236 = smul.addr %s235, 8
        %s237 = scalar_lea.vmem [#allocation8], %s236
        %v238 = vld [vmem:[%s206] sm:$0xff]
        %v239 = vld [vmem:[%s206 + $0x8] sm:$0xff]
        %v240 = vld [vmem:[%s206 + $0x10] sm:$0xff]
        %v241 = vld [vmem:[%s206 + $0x18] sm:$0xff]
        %v242 = vld [vmem:[%s206 + $0x20] sm:$0xff]
        %v243 = vld [vmem:[%s206 + $0x28] sm:$0xff]
        %v244 = vld [vmem:[%s206 + $0x30] sm:$0xff]
        %v245 = vld [vmem:[%s206 + $0x38] sm:$0xff]
        %v246 = vld [vmem:[#allocation7] sm:$0xff]
        %v247 = vld [vmem:[#allocation7 + $0x8] sm:$0xff]
        %v248 = vld [vmem:[#allocation7 + $0x10] sm:$0xff]
        %v249 = vld [vmem:[#allocation7 + $0x18] sm:$0xff]
        %v250 = vld [vmem:[#allocation7 + $0x20] sm:$0xff]
        %v251 = vld [vmem:[#allocation7 + $0x28] sm:$0xff]
        %v252 = vld [vmem:[#allocation7 + $0x30] sm:$0xff]
        %v253 = vld [vmem:[#allocation7 + $0x38] sm:$0xff]
        %v254 = vld [vmem:[#allocation7 + $0x40] sm:$0xff]
        %v255 = vld [vmem:[#allocation7 + $0x48] sm:$0xff]
        %v256 = vld [vmem:[#allocation7 + $0x50] sm:$0xff]
        %v257 = vld [vmem:[#allocation7 + $0x58] sm:$0xff]
        %v258 = vld [vmem:[#allocation7 + $0x60] sm:$0xff]
        %v259 = vld [vmem:[#allocation7 + $0x68] sm:$0xff]
        %v260 = vld [vmem:[#allocation7 + $0x70] sm:$0xff]
        %v261 = vld [vmem:[#allocation7 + $0x78] sm:$0xff]
        %v262 = vld [vmem:[#allocation7 + $0x80] sm:$0xff]
        %v263 = vld [vmem:[#allocation7 + $0x88] sm:$0xff]
        %v264 = vld [vmem:[#allocation7 + $0x90] sm:$0xff]
        %v265 = vld [vmem:[#allocation7 + $0x98] sm:$0xff]
        %v266 = vld [vmem:[#allocation7 + $0xa0] sm:$0xff]
        %v267 = vld [vmem:[#allocation7 + $0xa8] sm:$0xff]
        %v268 = vld [vmem:[#allocation7 + $0xb0] sm:$0xff]
        %v269 = vld [vmem:[#allocation7 + $0xb8] sm:$0xff]
        %v270 = vld [vmem:[#allocation7 + $0xc0] sm:$0xff]
        %v271 = vld [vmem:[#allocation7 + $0xc8] sm:$0xff]
        %v272 = vld [vmem:[#allocation7 + $0xd0] sm:$0xff]
        %v273 = vld [vmem:[#allocation7 + $0xd8] sm:$0xff]
        %v274 = vld [vmem:[#allocation7 + $0xe0] sm:$0xff]
        %v275 = vld [vmem:[#allocation7 + $0xe8] sm:$0xff]
        %v276 = vld [vmem:[#allocation7 + $0xf0] sm:$0xff]
        %v277 = vld [vmem:[#allocation7 + $0xf8] sm:$0xff]
        %v278 = vld [vmem:[#allocation7 + $0x100] sm:$0xff]
        %v279 = vld [vmem:[#allocation7 + $0x108] sm:$0xff]
        %v280 = vld [vmem:[#allocation7 + $0x110] sm:$0xff]
        %v281 = vld [vmem:[#allocation7 + $0x118] sm:$0xff]
        %v282 = vld [vmem:[#allocation7 + $0x120] sm:$0xff]
        %v283 = vld [vmem:[#allocation7 + $0x128] sm:$0xff]
        %v284 = vld [vmem:[#allocation7 + $0x130] sm:$0xff]
        %v285 = vld [vmem:[#allocation7 + $0x138] sm:$0xff]
        %v286 = vld [vmem:[#allocation7 + $0x140] sm:$0xff]
        %v287 = vld [vmem:[#allocation7 + $0x148] sm:$0xff]
        %v288 = vld [vmem:[#allocation7 + $0x150] sm:$0xff]
        %v289 = vld [vmem:[#allocation7 + $0x158] sm:$0xff]
        %v290 = vld [vmem:[#allocation7 + $0x160] sm:$0xff]
        %v291 = vld [vmem:[#allocation7 + $0x168] sm:$0xff]
        %v292 = vld [vmem:[#allocation7 + $0x170] sm:$0xff]
        %v293 = vld [vmem:[#allocation7 + $0x178] sm:$0xff]
        %v294 = vld [vmem:[#allocation7 + $0x180] sm:$0xff]
        %v295 = vld [vmem:[#allocation7 + $0x188] sm:$0xff]
        %v296 = vld [vmem:[#allocation7 + $0x190] sm:$0xff]
        %v297 = vld [vmem:[#allocation7 + $0x198] sm:$0xff]
        %v298 = vld [vmem:[#allocation7 + $0x1a0] sm:$0xff]
        %v299 = vld [vmem:[#allocation7 + $0x1a8] sm:$0xff]
        %v300 = vld [vmem:[#allocation7 + $0x1b0] sm:$0xff]
        %v301 = vld [vmem:[#allocation7 + $0x1b8] sm:$0xff]
        %v302 = vld [vmem:[#allocation7 + $0x1c0] sm:$0xff]
        %v303 = vld [vmem:[#allocation7 + $0x1c8] sm:$0xff]
        %v304 = vld [vmem:[#allocation7 + $0x1d0] sm:$0xff]
        %v305 = vld [vmem:[#allocation7 + $0x1d8] sm:$0xff]
        %v306 = vld [vmem:[#allocation7 + $0x1e0] sm:$0xff]
        %v307 = vld [vmem:[#allocation7 + $0x1e8] sm:$0xff]
        %v308 = vld [vmem:[#allocation7 + $0x1f0] sm:$0xff]
        %v309 = vld [vmem:[#allocation7 + $0x1f8] sm:$0xff]
        %v310 = vld [vmem:[#allocation7 + $0x200] sm:$0xff]
        %v311 = vld [vmem:[#allocation7 + $0x208] sm:$0xff]
        %v312 = vld [vmem:[#allocation7 + $0x210] sm:$0xff]
        %v313 = vld [vmem:[#allocation7 + $0x218] sm:$0xff]
        %v314 = vld [vmem:[#allocation7 + $0x220] sm:$0xff]
        %v315 = vld [vmem:[#allocation7 + $0x228] sm:$0xff]
        %v316 = vld [vmem:[#allocation7 + $0x230] sm:$0xff]
        %v317 = vld [vmem:[#allocation7 + $0x238] sm:$0xff]
        %v318 = vld [vmem:[#allocation7 + $0x240] sm:$0xff]
        %v319 = vld [vmem:[#allocation7 + $0x248] sm:$0xff]
        %v320 = vld [vmem:[#allocation7 + $0x250] sm:$0xff]
        %v321 = vld [vmem:[#allocation7 + $0x258] sm:$0xff]
        %v322 = vld [vmem:[#allocation7 + $0x260] sm:$0xff]
        %v323 = vld [vmem:[#allocation7 + $0x268] sm:$0xff]
        %v324 = vld [vmem:[#allocation7 + $0x270] sm:$0xff]
        %v325 = vld [vmem:[#allocation7 + $0x278] sm:$0xff]
        %v326 = vld [vmem:[#allocation7 + $0x280] sm:$0xff]
        %v327 = vld [vmem:[#allocation7 + $0x288] sm:$0xff]
        %v328 = vld [vmem:[#allocation7 + $0x290] sm:$0xff]
        %v329 = vld [vmem:[#allocation7 + $0x298] sm:$0xff]
        %v330 = vld [vmem:[#allocation7 + $0x2a0] sm:$0xff]
        %v331 = vld [vmem:[#allocation7 + $0x2a8] sm:$0xff]
        %v332 = vld [vmem:[#allocation7 + $0x2b0] sm:$0xff]
        %v333 = vld [vmem:[#allocation7 + $0x2b8] sm:$0xff]
        %v334 = vld [vmem:[#allocation7 + $0x2c0] sm:$0xff]
        %v335 = vld [vmem:[#allocation7 + $0x2c8] sm:$0xff]
        %v336 = vld [vmem:[#allocation7 + $0x2d0] sm:$0xff]
        %v337 = vld [vmem:[#allocation7 + $0x2d8] sm:$0xff]
        %v338 = vld [vmem:[#allocation7 + $0x2e0] sm:$0xff]
        %v339 = vld [vmem:[#allocation7 + $0x2e8] sm:$0xff]
        %v340 = vld [vmem:[#allocation7 + $0x2f0] sm:$0xff]
        %v341 = vld [vmem:[#allocation7 + $0x2f8] sm:$0xff]
        %v342 = vld [vmem:[#allocation7 + $0x300] sm:$0xff]
        %v343 = vld [vmem:[#allocation7 + $0x308] sm:$0xff]
        %v344 = vld [vmem:[#allocation7 + $0x310] sm:$0xff]
        %v345 = vld [vmem:[#allocation7 + $0x318] sm:$0xff]
        %v346 = vld [vmem:[#allocation7 + $0x320] sm:$0xff]
        %v347 = vld [vmem:[#allocation7 + $0x328] sm:$0xff]
        %v348 = vld [vmem:[#allocation7 + $0x330] sm:$0xff]
        %v349 = vld [vmem:[#allocation7 + $0x338] sm:$0xff]
        %v350 = vld [vmem:[#allocation7 + $0x340] sm:$0xff]
        %v351 = vld [vmem:[#allocation7 + $0x348] sm:$0xff]
        %v352 = vld [vmem:[#allocation7 + $0x350] sm:$0xff]
        %v353 = vld [vmem:[#allocation7 + $0x358] sm:$0xff]
        %v354 = vld [vmem:[#allocation7 + $0x360] sm:$0xff]
        %v355 = vld [vmem:[#allocation7 + $0x368] sm:$0xff]
        %v356 = vld [vmem:[#allocation7 + $0x370] sm:$0xff]
        %v357 = vld [vmem:[#allocation7 + $0x378] sm:$0xff]
        %v358 = vld [vmem:[#allocation7 + $0x380] sm:$0xff]
        %v359 = vld [vmem:[#allocation7 + $0x388] sm:$0xff]
        %v360 = vld [vmem:[#allocation7 + $0x390] sm:$0xff]
        %v361 = vld [vmem:[#allocation7 + $0x398] sm:$0xff]
        %v362 = vld [vmem:[#allocation7 + $0x3a0] sm:$0xff]
        %v363 = vld [vmem:[#allocation7 + $0x3a8] sm:$0xff]
        %v364 = vld [vmem:[#allocation7 + $0x3b0] sm:$0xff]
        %v365 = vld [vmem:[#allocation7 + $0x3b8] sm:$0xff]
        %v366 = vld [vmem:[#allocation7 + $0x3c0] sm:$0xff]
        %v367 = vld [vmem:[#allocation7 + $0x3c8] sm:$0xff]
        %v368 = vld [vmem:[#allocation7 + $0x3d0] sm:$0xff]
        %v369 = vld [vmem:[#allocation7 + $0x3d8] sm:$0xff]
        %v370 = vld [vmem:[#allocation7 + $0x3e0] sm:$0xff]
        %v371 = vld [vmem:[#allocation7 + $0x3e8] sm:$0xff]
        %v372 = vld [vmem:[#allocation7 + $0x3f0] sm:$0xff]
        %v373 = vld [vmem:[#allocation7 + $0x3f8] sm:$0xff]
        %374 = vmatprep.subr.mxu0 0.0
        %v375 = vand.u32 %v246, 4294901760
        %376 = vmatpush1.msra.mxu0 %v375
        %377 = vmatprep.subr.mxu0 0.0
        %v378 = vand.u32 %v247, 4294901760
        %379 = vmatpush1.msra.mxu0 %v378
        %380 = vmatprep.subr.mxu0 0.0
        %v381 = vand.u32 %v248, 4294901760
        %382 = vmatpush1.msra.mxu0 %v381
        %383 = vmatprep.subr.mxu0 0.0
        %v384 = vand.u32 %v249, 4294901760
        %385 = vmatpush1.msra.mxu0 %v384
        %386 = vmatprep.subr.mxu0 0.0
        %v387 = vand.u32 %v250, 4294901760
        %388 = vmatpush1.msra.mxu0 %v387
        %389 = vmatprep.subr.mxu0 0.0
        %v390 = vand.u32 %v251, 4294901760
        %391 = vmatpush1.msra.mxu0 %v390
        %392 = vmatprep.subr.mxu0 0.0
        %v393 = vand.u32 %v252, 4294901760
        %394 = vmatpush1.msra.mxu0 %v393
        %395 = vmatprep.subr.mxu0 0.0
        %v396 = vand.u32 %v253, 4294901760
        %397 = vmatpush1.msra.mxu0 %v396
        %398 = vmatprep.subr.mxu0 0.0
        %v399 = vand.u32 %v254, 4294901760
        %400 = vmatpush1.msra.mxu0 %v399
        %401 = vmatprep.subr.mxu0 0.0
        %v402 = vand.u32 %v255, 4294901760
        %403 = vmatpush1.msra.mxu0 %v402
        %404 = vmatprep.subr.mxu0 0.0
        %v405 = vand.u32 %v256, 4294901760
        %406 = vmatpush1.msra.mxu0 %v405
        %407 = vmatprep.subr.mxu0 0.0
        %v408 = vand.u32 %v257, 4294901760
        %409 = vmatpush1.msra.mxu0 %v408
        %410 = vmatprep.subr.mxu0 0.0
        %v411 = vand.u32 %v258, 4294901760
        %412 = vmatpush1.msra.mxu0 %v411
        %413 = vmatprep.subr.mxu0 0.0
        %v414 = vand.u32 %v259, 4294901760
        %415 = vmatpush1.msra.mxu0 %v414
        %416 = vmatprep.subr.mxu0 0.0
        %v417 = vand.u32 %v260, 4294901760
        %418 = vmatpush1.msra.mxu0 %v417
        %419 = vmatprep.subr.mxu0 0.0
        %v420 = vand.u32 %v261, 4294901760
        %421 = vmatpush1.msra.mxu0 %v420
        %422 = vmatprep.subr.mxu0 0.0
        %v423 = vand.u32 %v262, 4294901760
        %424 = vmatpush1.msra.mxu0 %v423
        %425 = vmatprep.subr.mxu0 0.0
        %v426 = vand.u32 %v263, 4294901760
        %427 = vmatpush1.msra.mxu0 %v426
        %428 = vmatprep.subr.mxu0 0.0
        %v429 = vand.u32 %v264, 4294901760
        %430 = vmatpush1.msra.mxu0 %v429
        %431 = vmatprep.subr.mxu0 0.0
        %v432 = vand.u32 %v265, 4294901760
        %433 = vmatpush1.msra.mxu0 %v432
        %434 = vmatprep.subr.mxu0 0.0
        %v435 = vand.u32 %v266, 4294901760
        %436 = vmatpush1.msra.mxu0 %v435
        %437 = vmatprep.subr.mxu0 0.0
        %v438 = vand.u32 %v267, 4294901760
        %439 = vmatpush1.msra.mxu0 %v438
        %440 = vmatprep.subr.mxu0 0.0
        %v441 = vand.u32 %v268, 4294901760
        %442 = vmatpush1.msra.mxu0 %v441
        %443 = vmatprep.subr.mxu0 0.0
        %v444 = vand.u32 %v269, 4294901760
        %445 = vmatpush1.msra.mxu0 %v444
        %446 = vmatprep.subr.mxu0 0.0
        %v447 = vand.u32 %v270, 4294901760
        %448 = vmatpush1.msra.mxu0 %v447
        %449 = vmatprep.subr.mxu0 0.0
        %v450 = vand.u32 %v271, 4294901760
        %451 = vmatpush1.msra.mxu0 %v450
        %452 = vmatprep.subr.mxu0 0.0
        %v453 = vand.u32 %v272, 4294901760
        %454 = vmatpush1.msra.mxu0 %v453
        %455 = vmatprep.subr.mxu0 0.0
        %v456 = vand.u32 %v273, 4294901760
        %457 = vmatpush1.msra.mxu0 %v456
        %458 = vmatprep.subr.mxu0 0.0
        %v459 = vand.u32 %v274, 4294901760
        %460 = vmatpush1.msra.mxu0 %v459
        %461 = vmatprep.subr.mxu0 0.0
        %v462 = vand.u32 %v275, 4294901760
        %463 = vmatpush1.msra.mxu0 %v462
        %464 = vmatprep.subr.mxu0 0.0
        %v465 = vand.u32 %v276, 4294901760
        %466 = vmatpush1.msra.mxu0 %v465
        %467 = vmatprep.subr.mxu0 0.0
        %v468 = vand.u32 %v277, 4294901760
        %469 = vmatpush1.msra.mxu0 %v468
        %v470 = vand.u32 %v239, 4294901760
        %v471 = vsub.f32 %v239, %v470
        %v472 = vand.u32 %v471, 4294901760
        %v473 = vsub.f32 %v471, %v472
        %v474 = vand.u32 %v473, 4294901760
        %475 = vmatprep.mubr.f32.mxu0 %v474
        %v476 = vand.u32 %v238, 4294901760
        %v477 = vsub.f32 %v238, %v476
        %v478 = vand.u32 %v477, 4294901760
        %v479 = vsub.f32 %v477, %v478
        %v480 = vand.u32 %v479, 4294901760
        %481 = vmatmul.mubr.f32.gmra.mrb[0].mxu0 %v480
        %v482 = vpop.f32.mrb[0].mxu0
        %v483 = vadd.f32 0.0, %v482
        %v484 = vpop.f32.mrb[0].mxu0
        %485 = vdwg.mxu0
        %486 = vmatprep.subr.mxu0 0.0
        %v487 = vand.u32 %v246, 4294901760
        %v488 = vsub.f32 %v246, %v487
        %v489 = vand.u32 %v488, 4294901760
        %v490 = vsub.f32 %v488, %v489
        %v491 = vand.u32 %v490, 4294901760
        %492 = vmatpush1.msra.mxu0 %v491
        %493 = vmatprep.subr.mxu0 0.0
        %v494 = vand.u32 %v247, 4294901760
        %v495 = vsub.f32 %v247, %v494
        %v496 = vand.u32 %v495, 4294901760
        %v497 = vsub.f32 %v495, %v496
        %v498 = vand.u32 %v497, 4294901760
        %499 = vmatpush1.msra.mxu0 %v498
        %500 = vmatprep.subr.mxu0 0.0
        %v501 = vand.u32 %v248, 4294901760
        %v502 = vsub.f32 %v248, %v501
        %v503 = vand.u32 %v502, 4294901760
        %v504 = vsub.f32 %v502, %v503
        %v505 = vand.u32 %v504, 4294901760
        %506 = vmatpush1.msra.mxu0 %v505
        %507 = vmatprep.subr.mxu0 0.0
        %v508 = vand.u32 %v249, 4294901760
        %v509 = vsub.f32 %v249, %v508
        %v510 = vand.u32 %v509, 4294901760
        %v511 = vsub.f32 %v509, %v510
        %v512 = vand.u32 %v511, 4294901760
        %513 = vmatpush1.msra.mxu0 %v512
        %514 = vmatprep.subr.mxu0 0.0
        %v515 = vand.u32 %v250, 4294901760
        %v516 = vsub.f32 %v250, %v515
        %v517 = vand.u32 %v516, 4294901760
        %v518 = vsub.f32 %v516, %v517
        %v519 = vand.u32 %v518, 4294901760
        %520 = vmatpush1.msra.mxu0 %v519
        %521 = vmatprep.subr.mxu0 0.0
        %v522 = vand.u32 %v251, 4294901760
        %v523 = vsub.f32 %v251, %v522
        %v524 = vand.u32 %v523, 4294901760
        %v525 = vsub.f32 %v523, %v524
        %v526 = vand.u32 %v525, 4294901760
        %527 = vmatpush1.msra.mxu0 %v526
        %528 = vmatprep.subr.mxu0 0.0
        %v529 = vand.u32 %v252, 4294901760
        %v530 = vsub.f32 %v252, %v529
        %v531 = vand.u32 %v530, 4294901760
        %v532 = vsub.f32 %v530, %v531
        %v533 = vand.u32 %v532, 4294901760
        %534 = vmatpush1.msra.mxu0 %v533
        %535 = vmatprep.subr.mxu0 0.0
        %v536 = vand.u32 %v253, 4294901760
        %v537 = vsub.f32 %v253, %v536
        %v538 = vand.u32 %v537, 4294901760
        %v539 = vsub.f32 %v537, %v538
        %v540 = vand.u32 %v539, 4294901760
        %541 = vmatpush1.msra.mxu0 %v540
        %542 = vmatprep.subr.mxu0 0.0
        %v543 = vand.u32 %v254, 4294901760
        %v544 = vsub.f32 %v254, %v543
        %v545 = vand.u32 %v544, 4294901760
        %v546 = vsub.f32 %v544, %v545
        %v547 = vand.u32 %v546, 4294901760
        %548 = vmatpush1.msra.mxu0 %v547
        %549 = vmatprep.subr.mxu0 0.0
        %v550 = vand.u32 %v255, 4294901760
        %v551 = vsub.f32 %v255, %v550
        %v552 = vand.u32 %v551, 4294901760
        %v553 = vsub.f32 %v551, %v552
        %v554 = vand.u32 %v553, 4294901760
        %555 = vmatpush1.msra.mxu0 %v554
        %556 = vmatprep.subr.mxu0 0.0
        %v557 = vand.u32 %v256, 4294901760
        %v558 = vsub.f32 %v256, %v557
        %v559 = vand.u32 %v558, 4294901760
        %v560 = vsub.f32 %v558, %v559
        %v561 = vand.u32 %v560, 4294901760
        %562 = vmatpush1.msra.mxu0 %v561
        %563 = vmatprep.subr.mxu0 0.0
        %v564 = vand.u32 %v257, 4294901760
        %v565 = vsub.f32 %v257, %v564
        %v566 = vand.u32 %v565, 4294901760
        %v567 = vsub.f32 %v565, %v566
        %v568 = vand.u32 %v567, 4294901760
        %569 = vmatpush1.msra.mxu0 %v568
        %570 = vmatprep.subr.mxu0 0.0
        %v571 = vand.u32 %v258, 4294901760
        %v572 = vsub.f32 %v258, %v571
        %v573 = vand.u32 %v572, 4294901760
        %v574 = vsub.f32 %v572, %v573
        %v575 = vand.u32 %v574, 4294901760
        %576 = vmatpush1.msra.mxu0 %v575
        %577 = vmatprep.subr.mxu0 0.0
        %v578 = vand.u32 %v259, 4294901760
        %v579 = vsub.f32 %v259, %v578
        %v580 = vand.u32 %v579, 4294901760
        %v581 = vsub.f32 %v579, %v580
        %v582 = vand.u32 %v581, 4294901760
        %583 = vmatpush1.msra.mxu0 %v582
        %584 = vmatprep.subr.mxu0 0.0
        %v585 = vand.u32 %v260, 4294901760
        %v586 = vsub.f32 %v260, %v585
        %v587 = vand.u32 %v586, 4294901760
        %v588 = vsub.f32 %v586, %v587
        %v589 = vand.u32 %v588, 4294901760
        %590 = vmatpush1.msra.mxu0 %v589
        %591 = vmatprep.subr.mxu0 0.0
        %v592 = vand.u32 %v261, 4294901760
        %v593 = vsub.f32 %v261, %v592
        %v594 = vand.u32 %v593, 4294901760
        %v595 = vsub.f32 %v593, %v594
        %v596 = vand.u32 %v595, 4294901760
        %597 = vmatpush1.msra.mxu0 %v596
        %598 = vmatprep.subr.mxu0 0.0
        %v599 = vand.u32 %v262, 4294901760
        %v600 = vsub.f32 %v262, %v599
        %v601 = vand.u32 %v600, 4294901760
        %v602 = vsub.f32 %v600, %v601
        %v603 = vand.u32 %v602, 4294901760
        %604 = vmatpush1.msra.mxu0 %v603
        %605 = vmatprep.subr.mxu0 0.0
        %v606 = vand.u32 %v263, 4294901760
        %v607 = vsub.f32 %v263, %v606
        %v608 = vand.u32 %v607, 4294901760
        %v609 = vsub.f32 %v607, %v608
        %v610 = vand.u32 %v609, 4294901760
        %611 = vmatpush1.msra.mxu0 %v610
        %612 = vmatprep.subr.mxu0 0.0
        %v613 = vand.u32 %v264, 4294901760
        %v614 = vsub.f32 %v264, %v613
        %v615 = vand.u32 %v614, 4294901760
        %v616 = vsub.f32 %v614, %v615
        %v617 = vand.u32 %v616, 4294901760
        %618 = vmatpush1.msra.mxu0 %v617
        %619 = vmatprep.subr.mxu0 0.0
        %v620 = vand.u32 %v265, 4294901760
        %v621 = vsub.f32 %v265, %v620
        %v622 = vand.u32 %v621, 4294901760
        %v623 = vsub.f32 %v621, %v622
        %v624 = vand.u32 %v623, 4294901760
        %625 = vmatpush1.msra.mxu0 %v624
        %626 = vmatprep.subr.mxu0 0.0
        %v627 = vand.u32 %v266, 4294901760
        %v628 = vsub.f32 %v266, %v627
        %v629 = vand.u32 %v628, 4294901760
        %v630 = vsub.f32 %v628, %v629
        %v631 = vand.u32 %v630, 4294901760
        %632 = vmatpush1.msra.mxu0 %v631
        %633 = vmatprep.subr.mxu0 0.0
        %v634 = vand.u32 %v267, 4294901760
        %v635 = vsub.f32 %v267, %v634
        %v636 = vand.u32 %v635, 4294901760
        %v637 = vsub.f32 %v635, %v636
        %v638 = vand.u32 %v637, 4294901760
        %639 = vmatpush1.msra.mxu0 %v638
        %640 = vmatprep.subr.mxu0 0.0
        %v641 = vand.u32 %v268, 4294901760
        %v642 = vsub.f32 %v268, %v641
        %v643 = vand.u32 %v642, 4294901760
        %v644 = vsub.f32 %v642, %v643
        %v645 = vand.u32 %v644, 4294901760
        %646 = vmatpush1.msra.mxu0 %v645
        %647 = vmatprep.subr.mxu0 0.0
        %v648 = vand.u32 %v269, 4294901760
        %v649 = vsub.f32 %v269, %v648
        %v650 = vand.u32 %v649, 4294901760
        %v651 = vsub.f32 %v649, %v650
        %v652 = vand.u32 %v651, 4294901760
        %653 = vmatpush1.msra.mxu0 %v652
        %654 = vmatprep.subr.mxu0 0.0
        %v655 = vand.u32 %v270, 4294901760
        %v656 = vsub.f32 %v270, %v655
        %v657 = vand.u32 %v656, 4294901760
        %v658 = vsub.f32 %v656, %v657
        %v659 = vand.u32 %v658, 4294901760
        %660 = vmatpush1.msra.mxu0 %v659
        %661 = vmatprep.subr.mxu0 0.0
        %v662 = vand.u32 %v271, 4294901760
        %v663 = vsub.f32 %v271, %v662
        %v664 = vand.u32 %v663, 4294901760
        %v665 = vsub.f32 %v663, %v664
        %v666 = vand.u32 %v665, 4294901760
        %667 = vmatpush1.msra.mxu0 %v666
        %668 = vmatprep.subr.mxu0 0.0
        %v669 = vand.u32 %v272, 4294901760
        %v670 = vsub.f32 %v272, %v669
        %v671 = vand.u32 %v670, 4294901760
        %v672 = vsub.f32 %v670, %v671
        %v673 = vand.u32 %v672, 4294901760
        %674 = vmatpush1.msra.mxu0 %v673
        %675 = vmatprep.subr.mxu0 0.0
        %v676 = vand.u32 %v273, 4294901760
        %v677 = vsub.f32 %v273, %v676
        %v678 = vand.u32 %v677, 4294901760
        %v679 = vsub.f32 %v677, %v678
        %v680 = vand.u32 %v679, 4294901760
        %681 = vmatpush1.msra.mxu0 %v680
        %682 = vmatprep.subr.mxu0 0.0
        %v683 = vand.u32 %v274, 4294901760
        %v684 = vsub.f32 %v274, %v683
        %v685 = vand.u32 %v684, 4294901760
        %v686 = vsub.f32 %v684, %v685
        %v687 = vand.u32 %v686, 4294901760
        %688 = vmatpush1.msra.mxu0 %v687
        %689 = vmatprep.subr.mxu0 0.0
        %v690 = vand.u32 %v275, 4294901760
        %v691 = vsub.f32 %v275, %v690
        %v692 = vand.u32 %v691, 4294901760
        %v693 = vsub.f32 %v691, %v692
        %v694 = vand.u32 %v693, 4294901760
        %695 = vmatpush1.msra.mxu0 %v694
        %696 = vmatprep.subr.mxu0 0.0
        %v697 = vand.u32 %v276, 4294901760
        %v698 = vsub.f32 %v276, %v697
        %v699 = vand.u32 %v698, 4294901760
        %v700 = vsub.f32 %v698, %v699
        %v701 = vand.u32 %v700, 4294901760
        %702 = vmatpush1.msra.mxu0 %v701
        %703 = vmatprep.subr.mxu0 0.0
        %v704 = vand.u32 %v277, 4294901760
        %v705 = vsub.f32 %v277, %v704
        %v706 = vand.u32 %v705, 4294901760
        %v707 = vsub.f32 %v705, %v706
        %v708 = vand.u32 %v707, 4294901760
        %709 = vmatpush1.msra.mxu0 %v708
        %v710 = vand.u32 %v239, 4294901760
        %711 = vmatprep.mubr.f32.mxu0 %v710
        %v712 = vand.u32 %v238, 4294901760
        %713 = vmatmul.mubr.f32.gmra.mrb[0].mxu0 %v712
        %v714 = vpop.f32.mrb[0].mxu0
        %v715 = vadd.f32 %v483, %v714
        %v716 = vpop.f32.mrb[0].mxu0
        %717 = vdwg.mxu0
        %718 = vmatprep.subr.mxu0 0.0
        %v719 = vand.u32 %v246, 4294901760
        %v720 = vsub.f32 %v246, %v719
        %721 = vmatpush1.msra.mxu0 %v720
        %722 = vmatprep.subr.mxu0 0.0
        %v723 = vand.u32 %v247, 4294901760
        %v724 = vsub.f32 %v247, %v723
        %725 = vmatpush1.msra.mxu0 %v724
        %726 = vmatprep.subr.mxu0 0.0
        %v727 = vand.u32 %v248, 4294901760
        %v728 = vsub.f32 %v248, %v727
        %729 = vmatpush1.msra.mxu0 %v728
        %730 = vmatprep.subr.mxu0 0.0
        %v731 = vand.u32 %v249, 4294901760
        %v732 = vsub.f32 %v249, %v731
        %733 = vmatpush1.msra.mxu0 %v732
        %734 = vmatprep.subr.mxu0 0.0
        %v735 = vand.u32 %v250, 4294901760
        %v736 = vsub.f32 %v250, %v735
        %737 = vmatpush1.msra.mxu0 %v736
        %738 = vmatprep.subr.mxu0 0.0
        %v739 = vand.u32 %v251, 4294901760
        %v740 = vsub.f32 %v251, %v739
        %741 = vmatpush1.msra.mxu0 %v740
        %742 = vmatprep.subr.mxu0 0.0
        %v743 = vand.u32 %v252, 4294901760
        %v744 = vsub.f32 %v252, %v743
        %745 = vmatpush1.msra.mxu0 %v744
        %746 = vmatprep.subr.mxu0 0.0
        %v747 = vand.u32 %v253, 4294901760
        %v748 = vsub.f32 %v253, %v747
        %749 = vmatpush1.msra.mxu0 %v748
        %750 = vmatprep.subr.mxu0 0.0
        %v751 = vand.u32 %v254, 4294901760
        %v752 = vsub.f32 %v254, %v751
        %753 = vmatpush1.msra.mxu0 %v752
        %754 = vmatprep.subr.mxu0 0.0
        %v755 = vand.u32 %v255, 4294901760
        %v756 = vsub.f32 %v255, %v755
        %757 = vmatpush1.msra.mxu0 %v756
        %758 = vmatprep.subr.mxu0 0.0
        %v759 = vand.u32 %v256, 4294901760
        %v760 = vsub.f32 %v256, %v759
        %761 = vmatpush1.msra.mxu0 %v760
        %762 = vmatprep.subr.mxu0 0.0
        %v763 = vand.u32 %v257, 4294901760
        %v764 = vsub.f32 %v257, %v763
        %765 = vmatpush1.msra.mxu0 %v764
        %766 = vmatprep.subr.mxu0 0.0
        %v767 = vand.u32 %v258, 4294901760
        %v768 = vsub.f32 %v258, %v767
        %769 = vmatpush1.msra.mxu0 %v768
        %770 = vmatprep.subr.mxu0 0.0
        %v771 = vand.u32 %v259, 4294901760
        %v772 = vsub.f32 %v259, %v771
        %773 = vmatpush1.msra.mxu0 %v772
        %774 = vmatprep.subr.mxu0 0.0
        %v775 = vand.u32 %v260, 4294901760
        %v776 = vsub.f32 %v260, %v775
        %777 = vmatpush1.msra.mxu0 %v776
        %778 = vmatprep.subr.mxu0 0.0
        %v779 = vand.u32 %v261, 4294901760
        %v780 = vsub.f32 %v261, %v779
        %781 = vmatpush1.msra.mxu0 %v780
        %782 = vmatprep.subr.mxu0 0.0
        %v783 = vand.u32 %v262, 4294901760
        %v784 = vsub.f32 %v262, %v783
        %785 = vmatpush1.msra.mxu0 %v784
        %786 = vmatprep.subr.mxu0 0.0
        %v787 = vand.u32 %v263, 4294901760
        %v788 = vsub.f32 %v263, %v787
        %789 = vmatpush1.msra.mxu0 %v788
        %790 = vmatprep.subr.mxu0 0.0
        %v791 = vand.u32 %v264, 4294901760
        %v792 = vsub.f32 %v264, %v791
        %793 = vmatpush1.msra.mxu0 %v792
        %794 = vmatprep.subr.mxu0 0.0
        %v795 = vand.u32 %v265, 4294901760
        %v796 = vsub.f32 %v265, %v795
        %797 = vmatpush1.msra.mxu0 %v796
        %798 = vmatprep.subr.mxu0 0.0
        %v799 = vand.u32 %v266, 4294901760
        %v800 = vsub.f32 %v266, %v799
        %801 = vmatpush1.msra.mxu0 %v800
        %802 = vmatprep.subr.mxu0 0.0
        %v803 = vand.u32 %v267, 4294901760
        %v804 = vsub.f32 %v267, %v803
        %805 = vmatpush1.msra.mxu0 %v804
        %806 = vmatprep.subr.mxu0 0.0
        %v807 = vand.u32 %v268, 4294901760
        %v808 = vsub.f32 %v268, %v807
        %809 = vmatpush1.msra.mxu0 %v808
        %810 = vmatprep.subr.mxu0 0.0
        %v811 = vand.u32 %v269, 4294901760
        %v812 = vsub.f32 %v269, %v811
        %813 = vmatpush1.msra.mxu0 %v812
        %814 = vmatprep.subr.mxu0 0.0
        %v815 = vand.u32 %v270, 4294901760
        %v816 = vsub.f32 %v270, %v815
        %817 = vmatpush1.msra.mxu0 %v816
        %818 = vmatprep.subr.mxu0 0.0
        %v819 = vand.u32 %v271, 4294901760
        %v820 = vsub.f32 %v271, %v819
        %821 = vmatpush1.msra.mxu0 %v820
        %822 = vmatprep.subr.mxu0 0.0
        %v823 = vand.u32 %v272, 4294901760
        %v824 = vsub.f32 %v272, %v823
        %825 = vmatpush1.msra.mxu0 %v824
        %826 = vmatprep.subr.mxu0 0.0
        %v827 = vand.u32 %v273, 4294901760
        %v828 = vsub.f32 %v273, %v827
        %829 = vmatpush1.msra.mxu0 %v828
        %830 = vmatprep.subr.mxu0 0.0
        %v831 = vand.u32 %v274, 4294901760
        %v832 = vsub.f32 %v274, %v831
        %833 = vmatpush1.msra.mxu0 %v832
        %834 = vmatprep.subr.mxu0 0.0
        %v835 = vand.u32 %v275, 4294901760
        %v836 = vsub.f32 %v275, %v835
        %837 = vmatpush1.msra.mxu0 %v836
        %838 = vmatprep.subr.mxu0 0.0
        %v839 = vand.u32 %v276, 4294901760
        %v840 = vsub.f32 %v276, %v839
        %841 = vmatpush1.msra.mxu0 %v840
        %842 = vmatprep.subr.mxu0 0.0
        %v843 = vand.u32 %v277, 4294901760
        %v844 = vsub.f32 %v277, %v843
        %845 = vmatpush1.msra.mxu0 %v844
        %v846 = vand.u32 %v239, 4294901760
        %v847 = vsub.f32 %v239, %v846
        %848 = vmatprep.mubr.f32.mxu0 %v847
        %v849 = vand.u32 %v238, 4294901760
        %v850 = vsub.f32 %v238, %v849
        %851 = vmatmul.mubr.f32.gmra.mrb[0].mxu0 %v850
        %v852 = vpop.f32.mrb[0].mxu0
        %v853 = vadd.f32 %v715, %v852
        %v854 = vpop.f32.mrb[0].mxu0
        %855 = vdwg.mxu0
        %856 = vmatprep.subr.mxu0 0.0
        %v857 = vand.u32 %v246, 4294901760
        %858 = vmatpush1.msra.mxu0 %v857
        %859 = vmatprep.subr.mxu0 0.0
        %v860 = vand.u32 %v247, 4294901760
        %861 = vmatpush1.msra.mxu0 %v860
        %862 = vmatprep.subr.mxu0 0.0
        %v863 = vand.u32 %v248, 4294901760
        %864 = vmatpush1.msra.mxu0 %v863
        %865 = vmatprep.subr.mxu0 0.0
        %v866 = vand.u32 %v249, 4294901760
        %867 = vmatpush1.msra.mxu0 %v866
        %868 = vmatprep.subr.mxu0 0.0
        %v869 = vand.u32 %v250, 4294901760
        %870 = vmatpush1.msra.mxu0 %v869
        %871 = vmatprep.subr.mxu0 0.0
        %v872 = vand.u32 %v251, 4294901760
        %873 = vmatpush1.msra.mxu0 %v872
        %874 = vmatprep.subr.mxu0 0.0
        %v875 = vand.u32 %v252, 4294901760
        %876 = vmatpush1.msra.mxu0 %v875
        %877 = vmatprep.subr.mxu0 0.0
        %v878 = vand.u32 %v253, 4294901760
        %879 = vmatpush1.msra.mxu0 %v878
        %880 = vmatprep.subr.mxu0 0.0
        %v881 = vand.u32 %v254, 4294901760
        %882 = vmatpush1.msra.mxu0 %v881
        %883 = vmatprep.subr.mxu0 0.0
        %v884 = vand.u32 %v255, 4294901760
        %885 = vmatpush1.msra.mxu0 %v884
        %886 = vmatprep.subr.mxu0 0.0
        %v887 = vand.u32 %v256, 4294901760
        %888 = vmatpush1.msra.mxu0 %v887
        %889 = vmatprep.subr.mxu0 0.0
        %v890 = vand.u32 %v257, 4294901760
        %891 = vmatpush1.msra.mxu0 %v890
        %892 = vmatprep.subr.mxu0 0.0
        %v893 = vand.u32 %v258, 4294901760
        %894 = vmatpush1.msra.mxu0 %v893
        %895 = vmatprep.subr.mxu0 0.0
        %v896 = vand.u32 %v259, 4294901760
        %897 = vmatpush1.msra.mxu0 %v896
        %898 = vmatprep.subr.mxu0 0.0
        %v899 = vand.u32 %v260, 4294901760
        %900 = vmatpush1.msra.mxu0 %v899
        %901 = vmatprep.subr.mxu0 0.0
        %v902 = vand.u32 %v261, 4294901760
        %903 = vmatpush1.msra.mxu0 %v902
        %904 = vmatprep.subr.mxu0 0.0
        %v905 = vand.u32 %v262, 4294901760
        %906 = vmatpush1.msra.mxu0 %v905
        %907 = vmatprep.subr.mxu0 0.0
        %v908 = vand.u32 %v263, 4294901760
        %909 = vmatpush1.msra.mxu0 %v908
        %910 = vmatprep.subr.mxu0 0.0
        %v911 = vand.u32 %v264, 4294901760
        %912 = vmatpush1.msra.mxu0 %v911
        %913 = vmatprep.subr.mxu0 0.0
        %v914 = vand.u32 %v265, 4294901760
        %915 = vmatpush1.msra.mxu0 %v914
        %916 = vmatprep.subr.mxu0 0.0
        %v917 = vand.u32 %v266, 4294901760
        %918 = vmatpush1.msra.mxu0 %v917
        %919 = vmatprep.subr.mxu0 0.0
        %v920 = vand.u32 %v267, 4294901760
        %921 = vmatpush1.msra.mxu0 %v920
        %922 = vmatprep.subr.mxu0 0.0
        %v923 = vand.u32 %v268, 4294901760
        %924 = vmatpush1.msra.mxu0 %v923
        %925 = vmatprep.subr.mxu0 0.0
        %v926 = vand.u32 %v269, 4294901760
        %927 = vmatpush1.msra.mxu0 %v926
        %928 = vmatprep.subr.mxu0 0.0
        %v929 = vand.u32 %v270, 4294901760
        %930 = vmatpush1.msra.mxu0 %v929
        %931 = vmatprep.subr.mxu0 0.0
        %v932 = vand.u32 %v271, 4294901760
        %933 = vmatpush1.msra.mxu0 %v932
        %934 = vmatprep.subr.mxu0 0.0
        %v935 = vand.u32 %v272, 4294901760
        %936 = vmatpush1.msra.mxu0 %v935
        %937 = vmatprep.subr.mxu0 0.0
        %v938 = vand.u32 %v273, 4294901760
        %939 = vmatpush1.msra.mxu0 %v938
        %940 = vmatprep.subr.mxu0 0.0
        %v941 = vand.u32 %v274, 4294901760
        %942 = vmatpush1.msra.mxu0 %v941
        %943 = vmatprep.subr.mxu0 0.0
        %v944 = vand.u32 %v275, 4294901760
        %945 = vmatpush1.msra.mxu0 %v944
        %946 = vmatprep.subr.mxu0 0.0
        %v947 = vand.u32 %v276, 4294901760
        %948 = vmatpush1.msra.mxu0 %v947
        %949 = vmatprep.subr.mxu0 0.0
        %v950 = vand.u32 %v277, 4294901760
        %951 = vmatpush1.msra.mxu0 %v950
        %v952 = vand.u32 %v239, 4294901760
        %v953 = vsub.f32 %v239, %v952
        %v954 = vand.u32 %v953, 4294901760
        %955 = vmatprep.mubr.f32.mxu0 %v954
        %v956 = vand.u32 %v238, 4294901760
        %v957 = vsub.f32 %v238, %v956
        %v958 = vand.u32 %v957, 4294901760
        %959 = vmatmul.mubr.f32.gmra.mrb[0].mxu0 %v958
        %v960 = vpop.f32.mrb[0].mxu0
        %v961 = vadd.f32 %v853, %v960
        %v962 = vpop.f32.mrb[0].mxu0
        %963 = vdwg.mxu0
        %964 = vmatprep.subr.mxu0 0.0
        %v965 = vand.u32 %v246, 4294901760
        %v966 = vsub.f32 %v246, %v965
        %v967 = vand.u32 %v966, 4294901760
        %968 = vmatpush1.msra.mxu0 %v967
        %969 = vmatprep.subr.mxu0 0.0
        %v970 = vand.u32 %v247, 4294901760
        %v971 = vsub.f32 %v247, %v970
        %v972 = vand.u32 %v971, 4294901760
        %973 = vmatpush1.msra.mxu0 %v972
        %974 = vmatprep.subr.mxu0 0.0
        %v975 = vand.u32 %v248, 4294901760
        %v976 = vsub.f32 %v248, %v975
        %v977 = vand.u32 %v976, 4294901760
        %978 = vmatpush1.msra.mxu0 %v977
        %979 = vmatprep.subr.mxu0 0.0
        %v980 = vand.u32 %v249, 4294901760
        %v981 = vsub.f32 %v249, %v980
        %v982 = vand.u32 %v981, 4294901760
        %983 = vmatpush1.msra.mxu0 %v982
        %984 = vmatprep.subr.mxu0 0.0
        %v985 = vand.u32 %v250, 4294901760
        %v986 = vsub.f32 %v250, %v985
        %v987 = vand.u32 %v986, 4294901760
        %988 = vmatpush1.msra.mxu0 %v987
        %989 = vmatprep.subr.mxu0 0.0
        %v990 = vand.u32 %v251, 4294901760
        %v991 = vsub.f32 %v251, %v990
        %v992 = vand.u32 %v991, 4294901760
        %993 = vmatpush1.msra.mxu0 %v992
        %994 = vmatprep.subr.mxu0 0.0
        %v995 = vand.u32 %v252, 4294901760
        %v996 = vsub.f32 %v252, %v995
        %v997 = vand.u32 %v996, 4294901760
        %998 = vmatpush1.msra.mxu0 %v997
        %999 = vmatprep.subr.mxu0 0.0
        %v1000 = vand.u32 %v253, 4294901760
        %v1001 = vsub.f32 %v253, %v1000
        %v1002 = vand.u32 %v1001, 4294901760
        %1003 = vmatpush1.msra.mxu0 %v1002
        %1004 = vmatprep.subr.mxu0 0.0
        %v1005 = vand.u32 %v254, 4294901760
        %v1006 = vsub.f32 %v254, %v1005
        %v1007 = vand.u32 %v1006, 4294901760
        %1008 = vmatpush1.msra.mxu0 %v1007
        %1009 = vmatprep.subr.mxu0 0.0
        %v1010 = vand.u32 %v255, 4294901760
        %v1011 = vsub.f32 %v255, %v1010
        %v1012 = vand.u32 %v1011, 4294901760
        %1013 = vmatpush1.msra.mxu0 %v1012
        %1014 = vmatprep.subr.mxu0 0.0
        %v1015 = vand.u32 %v256, 4294901760
        %v1016 = vsub.f32 %v256, %v1015
        %v1017 = vand.u32 %v1016, 4294901760
        %1018 = vmatpush1.msra.mxu0 %v1017
        %1019 = vmatprep.subr.mxu0 0.0
        %v1020 = vand.u32 %v257, 4294901760
        %v1021 = vsub.f32 %v257, %v1020
        %v1022 = vand.u32 %v1021, 4294901760
        %1023 = vmatpush1.msra.mxu0 %v1022
        %1024 = vmatprep.subr.mxu0 0.0
        %v1025 = vand.u32 %v258, 4294901760
        %v1026 = vsub.f32 %v258, %v1025
        %v1027 = vand.u32 %v1026, 4294901760
        %1028 = vmatpush1.msra.mxu0 %v1027
        %1029 = vmatprep.subr.mxu0 0.0
        %v1030 = vand.u32 %v259, 4294901760
        %v1031 = vsub.f32 %v259, %v1030
        %v1032 = vand.u32 %v1031, 4294901760
        %1033 = vmatpush1.msra.mxu0 %v1032
        %1034 = vmatprep.subr.mxu0 0.0
        %v1035 = vand.u32 %v260, 4294901760
        %v1036 = vsub.f32 %v260, %v1035
        %v1037 = vand.u32 %v1036, 4294901760
        %1038 = vmatpush1.msra.mxu0 %v1037
        %1039 = vmatprep.subr.mxu0 0.0
        %v1040 = vand.u32 %v261, 4294901760
        %v1041 = vsub.f32 %v261, %v1040
        %v1042 = vand.u32 %v1041, 4294901760
        %1043 = vmatpush1.msra.mxu0 %v1042
        %1044 = vmatprep.subr.mxu0 0.0
        %v1045 = vand.u32 %v262, 4294901760
        %v1046 = vsub.f32 %v262, %v1045
        %v1047 = vand.u32 %v1046, 4294901760
        %1048 = vmatpush1.msra.mxu0 %v1047
        %1049 = vmatprep.subr.mxu0 0.0
        %v1050 = vand.u32 %v263, 4294901760
        %v1051 = vsub.f32 %v263, %v1050
        %v1052 = vand.u32 %v1051, 4294901760
        %1053 = vmatpush1.msra.mxu0 %v1052
        %1054 = vmatprep.subr.mxu0 0.0
        %v1055 = vand.u32 %v264, 4294901760
        %v1056 = vsub.f32 %v264, %v1055
        %v1057 = vand.u32 %v1056, 4294901760
        %1058 = vmatpush1.msra.mxu0 %v1057
        %1059 = vmatprep.subr.mxu0 0.0
        %v1060 = vand.u32 %v265, 4294901760
        %v1061 = vsub.f32 %v265, %v1060
        %v1062 = vand.u32 %v1061, 4294901760
        %1063 = vmatpush1.msra.mxu0 %v1062
        %1064 = vmatprep.subr.mxu0 0.0
        %v1065 = vand.u32 %v266, 4294901760
        %v1066 = vsub.f32 %v266, %v1065
        %v1067 = vand.u32 %v1066, 4294901760
        %1068 = vmatpush1.msra.mxu0 %v1067
        %1069 = vmatprep.subr.mxu0 0.0
        %v1070 = vand.u32 %v267, 4294901760
        %v1071 = vsub.f32 %v267, %v1070
        %v1072 = vand.u32 %v1071, 4294901760
        %1073 = vmatpush1.msra.mxu0 %v1072
        %1074 = vmatprep.subr.mxu0 0.0
        %v1075 = vand.u32 %v268, 4294901760
        %v1076 = vsub.f32 %v268, %v1075
        %v1077 = vand.u32 %v1076, 4294901760
        %1078 = vmatpush1.msra.mxu0 %v1077
        %1079 = vmatprep.subr.mxu0 0.0
        %v1080 = vand.u32 %v269, 4294901760
        %v1081 = vsub.f32 %v269, %v1080
        %v1082 = vand.u32 %v1081, 4294901760
        %1083 = vmatpush1.msra.mxu0 %v1082
        %1084 = vmatprep.subr.mxu0 0.0
        %v1085 = vand.u32 %v270, 4294901760
        %v1086 = vsub.f32 %v270, %v1085
        %v1087 = vand.u32 %v1086, 4294901760
        %1088 = vmatpush1.msra.mxu0 %v1087
        %1089 = vmatprep.subr.mxu0 0.0
        %v1090 = vand.u32 %v271, 4294901760
        %v1091 = vsub.f32 %v271, %v1090
        %v1092 = vand.u32 %v1091, 4294901760
        %1093 = vmatpush1.msra.mxu0 %v1092
        %1094 = vmatprep.subr.mxu0 0.0
        %v1095 = vand.u32 %v272, 4294901760
        %v1096 = vsub.f32 %v272, %v1095
        %v1097 = vand.u32 %v1096, 4294901760
        %1098 = vmatpush1.msra.mxu0 %v1097
        %1099 = vmatprep.subr.mxu0 0.0
        %v1100 = vand.u32 %v273, 4294901760
        %v1101 = vsub.f32 %v273, %v1100
        %v1102 = vand.u32 %v1101, 4294901760
        %1103 = vmatpush1.msra.mxu0 %v1102
        %1104 = vmatprep.subr.mxu0 0.0
        %v1105 = vand.u32 %v274, 4294901760
        %v1106 = vsub.f32 %v274, %v1105
        %v1107 = vand.u32 %v1106, 4294901760
        %1108 = vmatpush1.msra.mxu0 %v1107
        %1109 = vmatprep.subr.mxu0 0.0
        %v1110 = vand.u32 %v275, 4294901760
        %v1111 = vsub.f32 %v275, %v1110
        %v1112 = vand.u32 %v1111, 4294901760
        %1113 = vmatpush1.msra.mxu0 %v1112
        %1114 = vmatprep.subr.mxu0 0.0
        %v1115 = vand.u32 %v276, 4294901760
        %v1116 = vsub.f32 %v276, %v1115
        %v1117 = vand.u32 %v1116, 4294901760
        %1118 = vmatpush1.msra.mxu0 %v1117
        %1119 = vmatprep.subr.mxu0 0.0
        %v1120 = vand.u32 %v277, 4294901760
        %v1121 = vsub.f32 %v277, %v1120
        %v1122 = vand.u32 %v1121, 4294901760
        %1123 = vmatpush1.msra.mxu0 %v1122
        %v1124 = vand.u32 %v239, 4294901760
        %1125 = vmatprep.mubr.f32.mxu0 %v1124
        %v1126 = vand.u32 %v238, 4294901760
        %1127 = vmatmul.mubr.f32.gmra.mrb[0].mxu0 %v1126
        %v1128 = vpop.f32.mrb[0].mxu0
        %v1129 = vadd.f32 %v961, %v1128
        %v1130 = vpop.f32.mrb[0].mxu0
        %1131 = vdwg.mxu0
        %1132 = vmatprep.subr.mxu0 0.0
        %v1133 = vand.u32 %v246, 4294901760
        %1134 = vmatpush1.msra.mxu0 %v1133
        %1135 = vmatprep.subr.mxu0 0.0
        %v1136 = vand.u32 %v247, 4294901760
        %1137 = vmatpush1.msra.mxu0 %v1136
        %1138 = vmatprep.subr.mxu0 0.0
        %v1139 = vand.u32 %v248, 4294901760
        %1140 = vmatpush1.msra.mxu0 %v1139
        %1141 = vmatprep.subr.mxu0 0.0
        %v1142 = vand.u32 %v249, 4294901760
        %1143 = vmatpush1.msra.mxu0 %v1142
        %1144 = vmatprep.subr.mxu0 0.0
        %v1145 = vand.u32 %v250, 4294901760
        %1146 = vmatpush1.msra.mxu0 %v1145
        %1147 = vmatprep.subr.mxu0 0.0
        %v1148 = vand.u32 %v251, 4294901760
        %1149 = vmatpush1.msra.mxu0 %v1148
        %1150 = vmatprep.subr.mxu0 0.0
        %v1151 = vand.u32 %v252, 4294901760
        %1152 = vmatpush1.msra.mxu0 %v1151
        %1153 = vmatprep.subr.mxu0 0.0
        %v1154 = vand.u32 %v253, 4294901760
        %1155 = vmatpush1.msra.mxu0 %v1154
        %1156 = vmatprep.subr.mxu0 0.0
        %v1157 = vand.u32 %v254, 4294901760
        %1158 = vmatpush1.msra.mxu0 %v1157
        %1159 = vmatprep.subr.mxu0 0.0
        %v1160 = vand.u32 %v255, 4294901760
        %1161 = vmatpush1.msra.mxu0 %v1160
        %1162 = vmatprep.subr.mxu0 0.0
        %v1163 = vand.u32 %v256, 4294901760
        %1164 = vmatpush1.msra.mxu0 %v1163
        %1165 = vmatprep.subr.mxu0 0.0
        %v1166 = vand.u32 %v257, 4294901760
        %1167 = vmatpush1.msra.mxu0 %v1166
        %1168 = vmatprep.subr.mxu0 0.0
        %v1169 = vand.u32 %v258, 4294901760
        %1170 = vmatpush1.msra.mxu0 %v1169
        %1171 = vmatprep.subr.mxu0 0.0
        %v1172 = vand.u32 %v259, 4294901760
        %1173 = vmatpush1.msra.mxu0 %v1172
        %1174 = vmatprep.subr.mxu0 0.0
        %v1175 = vand.u32 %v260, 4294901760
        %1176 = vmatpush1.msra.mxu0 %v1175
        %1177 = vmatprep.subr.mxu0 0.0
        %v1178 = vand.u32 %v261, 4294901760
        %1179 = vmatpush1.msra.mxu0 %v1178
        %1180 = vmatprep.subr.mxu0 0.0
        %v1181 = vand.u32 %v262, 4294901760
        %1182 = vmatpush1.msra.mxu0 %v1181
        %1183 = vmatprep.subr.mxu0 0.0
        %v1184 = vand.u32 %v263, 4294901760
        %1185 = vmatpush1.msra.mxu0 %v1184
        %1186 = vmatprep.subr.mxu0 0.0
        %v1187 = vand.u32 %v264, 4294901760
        %1188 = vmatpush1.msra.mxu0 %v1187
        %1189 = vmatprep.subr.mxu0 0.0
        %v1190 = vand.u32 %v265, 4294901760
        %1191 = vmatpush1.msra.mxu0 %v1190
        %1192 = vmatprep.subr.mxu0 0.0
        %v1193 = vand.u32 %v266, 4294901760
        %1194 = vmatpush1.msra.mxu0 %v1193
        %1195 = vmatprep.subr.mxu0 0.0
        %v1196 = vand.u32 %v267, 4294901760
        %1197 = vmatpush1.msra.mxu0 %v1196
        %1198 = vmatprep.subr.mxu0 0.0
        %v1199 = vand.u32 %v268, 4294901760
        %1200 = vmatpush1.msra.mxu0 %v1199
        %1201 = vmatprep.subr.mxu0 0.0
        %v1202 = vand.u32 %v269, 4294901760
        %1203 = vmatpush1.msra.mxu0 %v1202
        %1204 = vmatprep.subr.mxu0 0.0
        %v1205 = vand.u32 %v270, 4294901760
        %1206 = vmatpush1.msra.mxu0 %v1205
        %1207 = vmatprep.subr.mxu0 0.0
        %v1208 = vand.u32 %v271, 4294901760
        %1209 = vmatpush1.msra.mxu0 %v1208
        %1210 = vmatprep.subr.mxu0 0.0
        %v1211 = vand.u32 %v272, 4294901760
        %1212 = vmatpush1.msra.mxu0 %v1211
        %1213 = vmatprep.subr.mxu0 0.0
        %v1214 = vand.u32 %v273, 4294901760
        %1215 = vmatpush1.msra.mxu0 %v1214
        %1216 = vmatprep.subr.mxu0 0.0
        %v1217 = vand.u32 %v274, 4294901760
        %1218 = vmatpush1.msra.mxu0 %v1217
        %1219 = vmatprep.subr.mxu0 0.0
        %v1220 = vand.u32 %v275, 4294901760
        %1221 = vmatpush1.msra.mxu0 %v1220
        %1222 = vmatprep.subr.mxu0 0.0
        %v1223 = vand.u32 %v276, 4294901760
        %1224 = vmatpush1.msra.mxu0 %v1223
        %1225 = vmatprep.subr.mxu0 0.0
        %v1226 = vand.u32 %v277, 4294901760
        %1227 = vmatpush1.msra.mxu0 %v1226
        %v1228 = vand.u32 %v239, 4294901760
        %1229 = vmatprep.mubr.f32.mxu0 %v1228
        %v1230 = vand.u32 %v238, 4294901760
        %1231 = vmatmul.mubr.f32.gmra.mrb[0].mxu0 %v1230
        %v1232 = vpop.f32.mrb[0].mxu0
        %v1233 = vadd.f32 %v1129, %v1232
        %v1234 = vpop.f32.mrb[0].mxu0
        %1235 = vdwg.mxu0
        %1236 = vmatprep.subr.mxu0 0.0
        %v1237 = vand.u32 %v278, 4294901760
        %1238 = vmatpush1.msra.mxu0 %v1237
        %1239 = vmatprep.subr.mxu0 0.0
        %v1240 = vand.u32 %v279, 4294901760
        %1241 = vmatpush1.msra.mxu0 %v1240
        %1242 = vmatprep.subr.mxu0 0.0
        %v1243 = vand.u32 %v280, 4294901760
        %1244 = vmatpush1.msra.mxu0 %v1243
        %1245 = vmatprep.subr.mxu0 0.0
        %v1246 = vand.u32 %v281, 4294901760
        %1247 = vmatpush1.msra.mxu0 %v1246
        %1248 = vmatprep.subr.mxu0 0.0
        %v1249 = vand.u32 %v282, 4294901760
        %1250 = vmatpush1.msra.mxu0 %v1249
        %1251 = vmatprep.subr.mxu0 0.0
        %v1252 = vand.u32 %v283, 4294901760
        %1253 = vmatpush1.msra.mxu0 %v1252
        %1254 = vmatprep.subr.mxu0 0.0
        %v1255 = vand.u32 %v284, 4294901760
        %1256 = vmatpush1.msra.mxu0 %v1255
        %1257 = vmatprep.subr.mxu0 0.0
        %v1258 = vand.u32 %v285, 4294901760
        %1259 = vmatpush1.msra.mxu0 %v1258
        %1260 = vmatprep.subr.mxu0 0.0
        %v1261 = vand.u32 %v286, 4294901760
        %1262 = vmatpush1.msra.mxu0 %v1261
        %1263 = vmatprep.subr.mxu0 0.0
        %v1264 = vand.u32 %v287, 4294901760
        %1265 = vmatpush1.msra.mxu0 %v1264
        %1266 = vmatprep.subr.mxu0 0.0
        %v1267 = vand.u32 %v288, 4294901760
        %1268 = vmatpush1.msra.mxu0 %v1267
        %1269 = vmatprep.subr.mxu0 0.0
        %v1270 = vand.u32 %v289, 4294901760
        %1271 = vmatpush1.msra.mxu0 %v1270
        %1272 = vmatprep.subr.mxu0 0.0
        %v1273 = vand.u32 %v290, 4294901760
        %1274 = vmatpush1.msra.mxu0 %v1273
        %1275 = vmatprep.subr.mxu0 0.0
        %v1276 = vand.u32 %v291, 4294901760
        %1277 = vmatpush1.msra.mxu0 %v1276
        %1278 = vmatprep.subr.mxu0 0.0
        %v1279 = vand.u32 %v292, 4294901760
        %1280 = vmatpush1.msra.mxu0 %v1279
        %1281 = vmatprep.subr.mxu0 0.0
        %v1282 = vand.u32 %v293, 4294901760
        %1283 = vmatpush1.msra.mxu0 %v1282
        %1284 = vmatprep.subr.mxu0 0.0
        %v1285 = vand.u32 %v294, 4294901760
        %1286 = vmatpush1.msra.mxu0 %v1285
        %1287 = vmatprep.subr.mxu0 0.0
        %v1288 = vand.u32 %v295, 4294901760
        %1289 = vmatpush1.msra.mxu0 %v1288
        %1290 = vmatprep.subr.mxu0 0.0
        %v1291 = vand.u32 %v296, 4294901760
        %1292 = vmatpush1.msra.mxu0 %v1291
        %1293 = vmatprep.subr.mxu0 0.0
        %v1294 = vand.u32 %v297, 4294901760
        %1295 = vmatpush1.msra.mxu0 %v1294
        %1296 = vmatprep.subr.mxu0 0.0
        %v1297 = vand.u32 %v298, 4294901760
        %1298 = vmatpush1.msra.mxu0 %v1297
        %1299 = vmatprep.subr.mxu0 0.0
        %v1300 = vand.u32 %v299, 4294901760
        %1301 = vmatpush1.msra.mxu0 %v1300
        %1302 = vmatprep.subr.mxu0 0.0
        %v1303 = vand.u32 %v300, 4294901760
        %1304 = vmatpush1.msra.mxu0 %v1303
        %1305 = vmatprep.subr.mxu0 0.0
        %v1306 = vand.u32 %v301, 4294901760
        %1307 = vmatpush1.msra.mxu0 %v1306
        %1308 = vmatprep.subr.mxu0 0.0
        %v1309 = vand.u32 %v302, 4294901760
        %1310 = vmatpush1.msra.mxu0 %v1309
        %1311 = vmatprep.subr.mxu0 0.0
        %v1312 = vand.u32 %v303, 4294901760
        %1313 = vmatpush1.msra.mxu0 %v1312
        %1314 = vmatprep.subr.mxu0 0.0
        %v1315 = vand.u32 %v304, 4294901760
        %1316 = vmatpush1.msra.mxu0 %v1315
        %1317 = vmatprep.subr.mxu0 0.0
        %v1318 = vand.u32 %v305, 4294901760
        %1319 = vmatpush1.msra.mxu0 %v1318
        %1320 = vmatprep.subr.mxu0 0.0
        %v1321 = vand.u32 %v306, 4294901760
        %1322 = vmatpush1.msra.mxu0 %v1321
        %1323 = vmatprep.subr.mxu0 0.0
        %v1324 = vand.u32 %v307, 4294901760
        %1325 = vmatpush1.msra.mxu0 %v1324
        %1326 = vmatprep.subr.mxu0 0.0
        %v1327 = vand.u32 %v308, 4294901760
        %1328 = vmatpush1.msra.mxu0 %v1327
        %1329 = vmatprep.subr.mxu0 0.0
        %v1330 = vand.u32 %v309, 4294901760
        %1331 = vmatpush1.msra.mxu0 %v1330
        %v1332 = vand.u32 %v241, 4294901760
        %v1333 = vsub.f32 %v241, %v1332
        %v1334 = vand.u32 %v1333, 4294901760
        %v1335 = vsub.f32 %v1333, %v1334
        %v1336 = vand.u32 %v1335, 4294901760
        %1337 = vmatprep.mubr.f32.mxu0 %v1336
        %v1338 = vand.u32 %v240, 4294901760
        %v1339 = vsub.f32 %v240, %v1338
        %v1340 = vand.u32 %v1339, 4294901760
        %v1341 = vsub.f32 %v1339, %v1340
        %v1342 = vand.u32 %v1341, 4294901760
        %1343 = vmatmul.mubr.f32.gmra.mrb[0].mxu0 %v1342
        %v1344 = vpop.f32.mrb[0].mxu0
        %v1345 = vadd.f32 %v1233, %v1344
        %v1346 = vpop.f32.mrb[0].mxu0
        %1347 = vdwg.mxu0
        %1348 = vmatprep.subr.mxu0 0.0
        %v1349 = vand.u32 %v278, 4294901760
        %v1350 = vsub.f32 %v278, %v1349
        %v1351 = vand.u32 %v1350, 4294901760
        %v1352 = vsub.f32 %v1350, %v1351
        %v1353 = vand.u32 %v1352, 4294901760
        %1354 = vmatpush1.msra.mxu0 %v1353
        %1355 = vmatprep.subr.mxu0 0.0
        %v1356 = vand.u32 %v279, 4294901760
        %v1357 = vsub.f32 %v279, %v1356
        %v1358 = vand.u32 %v1357, 4294901760
        %v1359 = vsub.f32 %v1357, %v1358
        %v1360 = vand.u32 %v1359, 4294901760
        %1361 = vmatpush1.msra.mxu0 %v1360
        %1362 = vmatprep.subr.mxu0 0.0
        %v1363 = vand.u32 %v280, 4294901760
        %v1364 = vsub.f32 %v280, %v1363
        %v1365 = vand.u32 %v1364, 4294901760
        %v1366 = vsub.f32 %v1364, %v1365
        %v1367 = vand.u32 %v1366, 4294901760
        %1368 = vmatpush1.msra.mxu0 %v1367
        %1369 = vmatprep.subr.mxu0 0.0
        %v1370 = vand.u32 %v281, 4294901760
        %v1371 = vsub.f32 %v281, %v1370
        %v1372 = vand.u32 %v1371, 4294901760
        %v1373 = vsub.f32 %v1371, %v1372
        %v1374 = vand.u32 %v1373, 4294901760
        %1375 = vmatpush1.msra.mxu0 %v1374
        %1376 = vmatprep.subr.mxu0 0.0
        %v1377 = vand.u32 %v282, 4294901760
        %v1378 = vsub.f32 %v282, %v1377
        %v1379 = vand.u32 %v1378, 4294901760
        %v1380 = vsub.f32 %v1378, %v1379
        %v1381 = vand.u32 %v1380, 4294901760
        %1382 = vmatpush1.msra.mxu0 %v1381
        %1383 = vmatprep.subr.mxu0 0.0
        %v1384 = vand.u32 %v283, 4294901760
        %v1385 = vsub.f32 %v283, %v1384
        %v1386 = vand.u32 %v1385, 4294901760
        %v1387 = vsub.f32 %v1385, %v1386
        %v1388 = vand.u32 %v1387, 4294901760
        %1389 = vmatpush1.msra.mxu0 %v1388
        %1390 = vmatprep.subr.mxu0 0.0
        %v1391 = vand.u32 %v284, 4294901760
        %v1392 = vsub.f32 %v284, %v1391
        %v1393 = vand.u32 %v1392, 4294901760
        %v1394 = vsub.f32 %v1392, %v1393
        %v1395 = vand.u32 %v1394, 4294901760
        %1396 = vmatpush1.msra.mxu0 %v1395
        %1397 = vmatprep.subr.mxu0 0.0
        %v1398 = vand.u32 %v285, 4294901760
        %v1399 = vsub.f32 %v285, %v1398
        %v1400 = vand.u32 %v1399, 4294901760
        %v1401 = vsub.f32 %v1399, %v1400
        %v1402 = vand.u32 %v1401, 4294901760
        %1403 = vmatpush1.msra.mxu0 %v1402
        %1404 = vmatprep.subr.mxu0 0.0
        %v1405 = vand.u32 %v286, 4294901760
        %v1406 = vsub.f32 %v286, %v1405
        %v1407 = vand.u32 %v1406, 4294901760
        %v1408 = vsub.f32 %v1406, %v1407
        %v1409 = vand.u32 %v1408, 4294901760
        %1410 = vmatpush1.msra.mxu0 %v1409
        %1411 = vmatprep.subr.mxu0 0.0
        %v1412 = vand.u32 %v287, 4294901760
        %v1413 = vsub.f32 %v287, %v1412
        %v1414 = vand.u32 %v1413, 4294901760
        %v1415 = vsub.f32 %v1413, %v1414
        %v1416 = vand.u32 %v1415, 4294901760
        %1417 = vmatpush1.msra.mxu0 %v1416
        %1418 = vmatprep.subr.mxu0 0.0
        %v1419 = vand.u32 %v288, 4294901760
        %v1420 = vsub.f32 %v288, %v1419
        %v1421 = vand.u32 %v1420, 4294901760
        %v1422 = vsub.f32 %v1420, %v1421
        %v1423 = vand.u32 %v1422, 4294901760
        %1424 = vmatpush1.msra.mxu0 %v1423
        %1425 = vmatprep.subr.mxu0 0.0
        %v1426 = vand.u32 %v289, 4294901760
        %v1427 = vsub.f32 %v289, %v1426
        %v1428 = vand.u32 %v1427, 4294901760
        %v1429 = vsub.f32 %v1427, %v1428
        %v1430 = vand.u32 %v1429, 4294901760
        %1431 = vmatpush1.msra.mxu0 %v1430
        %1432 = vmatprep.subr.mxu0 0.0
        %v1433 = vand.u32 %v290, 4294901760
        %v1434 = vsub.f32 %v290, %v1433
        %v1435 = vand.u32 %v1434, 4294901760
        %v1436 = vsub.f32 %v1434, %v1435
        %v1437 = vand.u32 %v1436, 4294901760
        %1438 = vmatpush1.msra.mxu0 %v1437
        %1439 = vmatprep.subr.mxu0 0.0
        %v1440 = vand.u32 %v291, 4294901760
        %v1441 = vsub.f32 %v291, %v1440
        %v1442 = vand.u32 %v1441, 4294901760
        %v1443 = vsub.f32 %v1441, %v1442
        %v1444 = vand.u32 %v1443, 4294901760
        %1445 = vmatpush1.msra.mxu0 %v1444
        %1446 = vmatprep.subr.mxu0 0.0
        %v1447 = vand.u32 %v292, 4294901760
        %v1448 = vsub.f32 %v292, %v1447
        %v1449 = vand.u32 %v1448, 4294901760
        %v1450 = vsub.f32 %v1448, %v1449
        %v1451 = vand.u32 %v1450, 4294901760
        %1452 = vmatpush1.msra.mxu0 %v1451
        %1453 = vmatprep.subr.mxu0 0.0
        %v1454 = vand.u32 %v293, 4294901760
        %v1455 = vsub.f32 %v293, %v1454
        %v1456 = vand.u32 %v1455, 4294901760
        %v1457 = vsub.f32 %v1455, %v1456
        %v1458 = vand.u32 %v1457, 4294901760
        %1459 = vmatpush1.msra.mxu0 %v1458
        %1460 = vmatprep.subr.mxu0 0.0
        %v1461 = vand.u32 %v294, 4294901760
        %v1462 = vsub.f32 %v294, %v1461
        %v1463 = vand.u32 %v1462, 4294901760
        %v1464 = vsub.f32 %v1462, %v1463
        %v1465 = vand.u32 %v1464, 4294901760
        %1466 = vmatpush1.msra.mxu0 %v1465
        %1467 = vmatprep.subr.mxu0 0.0
        %v1468 = vand.u32 %v295, 4294901760
        %v1469 = vsub.f32 %v295, %v1468
        %v1470 = vand.u32 %v1469, 4294901760
        %v1471 = vsub.f32 %v1469, %v1470
        %v1472 = vand.u32 %v1471, 4294901760
        %1473 = vmatpush1.msra.mxu0 %v1472
        %1474 = vmatprep.subr.mxu0 0.0
        %v1475 = vand.u32 %v296, 4294901760
        %v1476 = vsub.f32 %v296, %v1475
        %v1477 = vand.u32 %v1476, 4294901760
        %v1478 = vsub.f32 %v1476, %v1477
        %v1479 = vand.u32 %v1478, 4294901760
        %1480 = vmatpush1.msra.mxu0 %v1479
        %1481 = vmatprep.subr.mxu0 0.0
        %v1482 = vand.u32 %v297, 4294901760
        %v1483 = vsub.f32 %v297, %v1482
        %v1484 = vand.u32 %v1483, 4294901760
        %v1485 = vsub.f32 %v1483, %v1484
        %v1486 = vand.u32 %v1485, 4294901760
        %1487 = vmatpush1.msra.mxu0 %v1486
        %1488 = vmatprep.subr.mxu0 0.0
        %v1489 = vand.u32 %v298, 4294901760
        %v1490 = vsub.f32 %v298, %v1489
        %v1491 = vand.u32 %v1490, 4294901760
        %v1492 = vsub.f32 %v1490, %v1491
        %v1493 = vand.u32 %v1492, 4294901760
        %1494 = vmatpush1.msra.mxu0 %v1493
        %1495 = vmatprep.subr.mxu0 0.0
        %v1496 = vand.u32 %v299, 4294901760
        %v1497 = vsub.f32 %v299, %v1496
        %v1498 = vand.u32 %v1497, 4294901760
        %v1499 = vsub.f32 %v1497, %v1498
        %v1500 = vand.u32 %v1499, 4294901760
        %1501 = vmatpush1.msra.mxu0 %v1500
        %1502 = vmatprep.subr.mxu0 0.0
        %v1503 = vand.u32 %v300, 4294901760
        %v1504 = vsub.f32 %v300, %v1503
        %v1505 = vand.u32 %v1504, 4294901760
        %v1506 = vsub.f32 %v1504, %v1505
        %v1507 = vand.u32 %v1506, 4294901760
        %1508 = vmatpush1.msra.mxu0 %v1507
        %1509 = vmatprep.subr.mxu0 0.0
        %v1510 = vand.u32 %v301, 4294901760
        %v1511 = vsub.f32 %v301, %v1510
        %v1512 = vand.u32 %v1511, 4294901760
        %v1513 = vsub.f32 %v1511, %v1512
        %v1514 = vand.u32 %v1513, 4294901760
        %1515 = vmatpush1.msra.mxu0 %v1514
        %1516 = vmatprep.subr.mxu0 0.0
        %v1517 = vand.u32 %v302, 4294901760
        %v1518 = vsub.f32 %v302, %v1517
        %v1519 = vand.u32 %v1518, 4294901760
        %v1520 = vsub.f32 %v1518, %v1519
        %v1521 = vand.u32 %v1520, 4294901760
        %1522 = vmatpush1.msra.mxu0 %v1521
        %1523 = vmatprep.subr.mxu0 0.0
        %v1524 = vand.u32 %v303, 4294901760
        %v1525 = vsub.f32 %v303, %v1524
        %v1526 = vand.u32 %v1525, 4294901760
        %v1527 = vsub.f32 %v1525, %v1526
        %v1528 = vand.u32 %v1527, 4294901760
        %1529 = vmatpush1.msra.mxu0 %v1528
        %1530 = vmatprep.subr.mxu0 0.0
        %v1531 = vand.u32 %v304, 4294901760
        %v1532 = vsub.f32 %v304, %v1531
        %v1533 = vand.u32 %v1532, 4294901760
        %v1534 = vsub.f32 %v1532, %v1533
        %v1535 = vand.u32 %v1534, 4294901760
        %1536 = vmatpush1.msra.mxu0 %v1535
        %1537 = vmatprep.subr.mxu0 0.0
        %v1538 = vand.u32 %v305, 4294901760
        %v1539 = vsub.f32 %v305, %v1538
        %v1540 = vand.u32 %v1539, 4294901760
        %v1541 = vsub.f32 %v1539, %v1540
        %v1542 = vand.u32 %v1541, 4294901760
        %1543 = vmatpush1.msra.mxu0 %v1542
        %1544 = vmatprep.subr.mxu0 0.0
        %v1545 = vand.u32 %v306, 4294901760
        %v1546 = vsub.f32 %v306, %v1545
        %v1547 = vand.u32 %v1546, 4294901760
        %v1548 = vsub.f32 %v1546, %v1547
        %v1549 = vand.u32 %v1548, 4294901760
        %1550 = vmatpush1.msra.mxu0 %v1549
        %1551 = vmatprep.subr.mxu0 0.0
        %v1552 = vand.u32 %v307, 4294901760
        %v1553 = vsub.f32 %v307, %v1552
        %v1554 = vand.u32 %v1553, 4294901760
        %v1555 = vsub.f32 %v1553, %v1554
        %v1556 = vand.u32 %v1555, 4294901760
        %1557 = vmatpush1.msra.mxu0 %v1556
        %1558 = vmatprep.subr.mxu0 0.0
        %v1559 = vand.u32 %v308, 4294901760
        %v1560 = vsub.f32 %v308, %v1559
        %v1561 = vand.u32 %v1560, 4294901760
        %v1562 = vsub.f32 %v1560, %v1561
        %v1563 = vand.u32 %v1562, 4294901760
        %1564 = vmatpush1.msra.mxu0 %v1563
        %1565 = vmatprep.subr.mxu0 0.0
        %v1566 = vand.u32 %v309, 4294901760
        %v1567 = vsub.f32 %v309, %v1566
        %v1568 = vand.u32 %v1567, 4294901760
        %v1569 = vsub.f32 %v1567, %v1568
        %v1570 = vand.u32 %v1569, 4294901760
        %1571 = vmatpush1.msra.mxu0 %v1570
        %v1572 = vand.u32 %v241, 4294901760
        %1573 = vmatprep.mubr.f32.mxu0 %v1572
        %v1574 = vand.u32 %v240, 4294901760
        %1575 = vmatmul.mubr.f32.gmra.mrb[0].mxu0 %v1574
        %v1576 = vpop.f32.mrb[0].mxu0
        %v1577 = vadd.f32 %v1345, %v1576
        %v1578 = vpop.f32.mrb[0].mxu0
        %1579 = vdwg.mxu0
        %1580 = vmatprep.subr.mxu0 0.0
        %v1581 = vand.u32 %v278, 4294901760
        %v1582 = vsub.f32 %v278, %v1581
        %1583 = vmatpush1.msra.mxu0 %v1582
        %1584 = vmatprep.subr.mxu0 0.0
        %v1585 = vand.u32 %v279, 4294901760
        %v1586 = vsub.f32 %v279, %v1585
        %1587 = vmatpush1.msra.mxu0 %v1586
        %1588 = vmatprep.subr.mxu0 0.0
        %v1589 = vand.u32 %v280, 4294901760
        %v1590 = vsub.f32 %v280, %v1589
        %1591 = vmatpush1.msra.mxu0 %v1590
        %1592 = vmatprep.subr.mxu0 0.0
        %v1593 = vand.u32 %v281, 4294901760
        %v1594 = vsub.f32 %v281, %v1593
        %1595 = vmatpush1.msra.mxu0 %v1594
        %1596 = vmatprep.subr.mxu0 0.0
        %v1597 = vand.u32 %v282, 4294901760
        %v1598 = vsub.f32 %v282, %v1597
        %1599 = vmatpush1.msra.mxu0 %v1598
        %1600 = vmatprep.subr.mxu0 0.0
        %v1601 = vand.u32 %v283, 4294901760
        %v1602 = vsub.f32 %v283, %v1601
        %1603 = vmatpush1.msra.mxu0 %v1602
        %1604 = vmatprep.subr.mxu0 0.0
        %v1605 = vand.u32 %v284, 4294901760
        %v1606 = vsub.f32 %v284, %v1605
        %1607 = vmatpush1.msra.mxu0 %v1606
        %1608 = vmatprep.subr.mxu0 0.0
        %v1609 = vand.u32 %v285, 4294901760
        %v1610 = vsub.f32 %v285, %v1609
        %1611 = vmatpush1.msra.mxu0 %v1610
        %1612 = vmatprep.subr.mxu0 0.0
        %v1613 = vand.u32 %v286, 4294901760
        %v1614 = vsub.f32 %v286, %v1613
        %1615 = vmatpush1.msra.mxu0 %v1614
        %1616 = vmatprep.subr.mxu0 0.0
        %v1617 = vand.u32 %v287, 4294901760
        %v1618 = vsub.f32 %v287, %v1617
        %1619 = vmatpush1.msra.mxu0 %v1618
        %1620 = vmatprep.subr.mxu0 0.0
        %v1621 = vand.u32 %v288, 4294901760
        %v1622 = vsub.f32 %v288, %v1621
        %1623 = vmatpush1.msra.mxu0 %v1622
        %1624 = vmatprep.subr.mxu0 0.0
        %v1625 = vand.u32 %v289, 4294901760
        %v1626 = vsub.f32 %v289, %v1625
        %1627 = vmatpush1.msra.mxu0 %v1626
        %1628 = vmatprep.subr.mxu0 0.0
        %v1629 = vand.u32 %v290, 4294901760
        %v1630 = vsub.f32 %v290, %v1629
        %1631 = vmatpush1.msra.mxu0 %v1630
        %1632 = vmatprep.subr.mxu0 0.0
        %v1633 = vand.u32 %v291, 4294901760
        %v1634 = vsub.f32 %v291, %v1633
        %1635 = vmatpush1.msra.mxu0 %v1634
        %1636 = vmatprep.subr.mxu0 0.0
        %v1637 = vand.u32 %v292, 4294901760
        %v1638 = vsub.f32 %v292, %v1637
        %1639 = vmatpush1.msra.mxu0 %v1638
        %1640 = vmatprep.subr.mxu0 0.0
        %v1641 = vand.u32 %v293, 4294901760
        %v1642 = vsub.f32 %v293, %v1641
        %1643 = vmatpush1.msra.mxu0 %v1642
        %1644 = vmatprep.subr.mxu0 0.0
        %v1645 = vand.u32 %v294, 4294901760
        %v1646 = vsub.f32 %v294, %v1645
        %1647 = vmatpush1.msra.mxu0 %v1646
        %1648 = vmatprep.subr.mxu0 0.0
        %v1649 = vand.u32 %v295, 4294901760
        %v1650 = vsub.f32 %v295, %v1649
        %1651 = vmatpush1.msra.mxu0 %v1650
        %1652 = vmatprep.subr.mxu0 0.0
        %v1653 = vand.u32 %v296, 4294901760
        %v1654 = vsub.f32 %v296, %v1653
        %1655 = vmatpush1.msra.mxu0 %v1654
        %1656 = vmatprep.subr.mxu0 0.0
        %v1657 = vand.u32 %v297, 4294901760
        %v1658 = vsub.f32 %v297, %v1657
        %1659 = vmatpush1.msra.mxu0 %v1658
        %1660 = vmatprep.subr.mxu0 0.0
        %v1661 = vand.u32 %v298, 4294901760
        %v1662 = vsub.f32 %v298, %v1661
        %1663 = vmatpush1.msra.mxu0 %v1662
        %1664 = vmatprep.subr.mxu0 0.0
        %v1665 = vand.u32 %v299, 4294901760
        %v1666 = vsub.f32 %v299, %v1665
        %1667 = vmatpush1.msra.mxu0 %v1666
        %1668 = vmatprep.subr.mxu0 0.0
        %v1669 = vand.u32 %v300, 4294901760
        %v1670 = vsub.f32 %v300, %v1669
        %1671 = vmatpush1.msra.mxu0 %v1670
        %1672 = vmatprep.subr.mxu0 0.0
        %v1673 = vand.u32 %v301, 4294901760
        %v1674 = vsub.f32 %v301, %v1673
        %1675 = vmatpush1.msra.mxu0 %v1674
        %1676 = vmatprep.subr.mxu0 0.0
        %v1677 = vand.u32 %v302, 4294901760
        %v1678 = vsub.f32 %v302, %v1677
        %1679 = vmatpush1.msra.mxu0 %v1678
        %1680 = vmatprep.subr.mxu0 0.0
        %v1681 = vand.u32 %v303, 4294901760
        %v1682 = vsub.f32 %v303, %v1681
        %1683 = vmatpush1.msra.mxu0 %v1682
        %1684 = vmatprep.subr.mxu0 0.0
        %v1685 = vand.u32 %v304, 4294901760
        %v1686 = vsub.f32 %v304, %v1685
        %1687 = vmatpush1.msra.mxu0 %v1686
        %1688 = vmatprep.subr.mxu0 0.0
        %v1689 = vand.u32 %v305, 4294901760
        %v1690 = vsub.f32 %v305, %v1689
        %1691 = vmatpush1.msra.mxu0 %v1690
        %1692 = vmatprep.subr.mxu0 0.0
        %v1693 = vand.u32 %v306, 4294901760
        %v1694 = vsub.f32 %v306, %v1693
        %1695 = vmatpush1.msra.mxu0 %v1694
        %1696 = vmatprep.subr.mxu0 0.0
        %v1697 = vand.u32 %v307, 4294901760
        %v1698 = vsub.f32 %v307, %v1697
        %1699 = vmatpush1.msra.mxu0 %v1698
        %1700 = vmatprep.subr.mxu0 0.0
        %v1701 = vand.u32 %v308, 4294901760
        %v1702 = vsub.f32 %v308, %v1701
        %1703 = vmatpush1.msra.mxu0 %v1702
        %1704 = vmatprep.subr.mxu0 0.0
        %v1705 = vand.u32 %v309, 4294901760
        %v1706 = vsub.f32 %v309, %v1705
        %1707 = vmatpush1.msra.mxu0 %v1706
        %v1708 = vand.u32 %v241, 4294901760
        %v1709 = vsub.f32 %v241, %v1708
        %1710 = vmatprep.mubr.f32.mxu0 %v1709
        %v1711 = vand.u32 %v240, 4294901760
        %v1712 = vsub.f32 %v240, %v1711
        %1713 = vmatmul.mubr.f32.gmra.mrb[0].mxu0 %v1712
        %v1714 = vpop.f32.mrb[0].mxu0
        %v1715 = vadd.f32 %v1577, %v1714
        %v1716 = vpop.f32.mrb[0].mxu0
        %1717 = vdwg.mxu0
        %1718 = vmatprep.subr.mxu0 0.0
        %v1719 = vand.u32 %v278, 4294901760
        %1720 = vmatpush1.msra.mxu0 %v1719
        %1721 = vmatprep.subr.mxu0 0.0
        %v1722 = vand.u32 %v279, 4294901760
        %1723 = vmatpush1.msra.mxu0 %v1722
        %1724 = vmatprep.subr.mxu0 0.0
        %v1725 = vand.u32 %v280, 4294901760
        %1726 = vmatpush1.msra.mxu0 %v1725
        %1727 = vmatprep.subr.mxu0 0.0
        %v1728 = vand.u32 %v281, 4294901760
        %1729 = vmatpush1.msra.mxu0 %v1728
        %1730 = vmatprep.subr.mxu0 0.0
        %v1731 = vand.u32 %v282, 4294901760
        %1732 = vmatpush1.msra.mxu0 %v1731
        %1733 = vmatprep.subr.mxu0 0.0
        %v1734 = vand.u32 %v283, 4294901760
        %1735 = vmatpush1.msra.mxu0 %v1734
        %1736 = vmatprep.subr.mxu0 0.0
        %v1737 = vand.u32 %v284, 4294901760
        %1738 = vmatpush1.msra.mxu0 %v1737
        %1739 = vmatprep.subr.mxu0 0.0
        %v1740 = vand.u32 %v285, 4294901760
        %1741 = vmatpush1.msra.mxu0 %v1740
        %1742 = vmatprep.subr.mxu0 0.0
        %v1743 = vand.u32 %v286, 4294901760
        %1744 = vmatpush1.msra.mxu0 %v1743
        %1745 = vmatprep.subr.mxu0 0.0
        %v1746 = vand.u32 %v287, 4294901760
        %1747 = vmatpush1.msra.mxu0 %v1746
        %1748 = vmatprep.subr.mxu0 0.0
        %v1749 = vand.u32 %v288, 4294901760
        %1750 = vmatpush1.msra.mxu0 %v1749
        %1751 = vmatprep.subr.mxu0 0.0
        %v1752 = vand.u32 %v289, 4294901760
        %1753 = vmatpush1.msra.mxu0 %v1752
        %1754 = vmatprep.subr.mxu0 0.0
        %v1755 = vand.u32 %v290, 4294901760
        %1756 = vmatpush1.msra.mxu0 %v1755
        %1757 = vmatprep.subr.mxu0 0.0
        %v1758 = vand.u32 %v291, 4294901760
        %1759 = vmatpush1.msra.mxu0 %v1758
        %1760 = vmatprep.subr.mxu0 0.0
        %v1761 = vand.u32 %v292, 4294901760
        %1762 = vmatpush1.msra.mxu0 %v1761
        %1763 = vmatprep.subr.mxu0 0.0
        %v1764 = vand.u32 %v293, 4294901760
        %1765 = vmatpush1.msra.mxu0 %v1764
        %1766 = vmatprep.subr.mxu0 0.0
        %v1767 = vand.u32 %v294, 4294901760
        %1768 = vmatpush1.msra.mxu0 %v1767
        %1769 = vmatprep.subr.mxu0 0.0
        %v1770 = vand.u32 %v295, 4294901760
        %1771 = vmatpush1.msra.mxu0 %v1770
        %1772 = vmatprep.subr.mxu0 0.0
        %v1773 = vand.u32 %v296, 4294901760
        %1774 = vmatpush1.msra.mxu0 %v1773
        %1775 = vmatprep.subr.mxu0 0.0
        %v1776 = vand.u32 %v297, 4294901760
        %1777 = vmatpush1.msra.mxu0 %v1776
        %1778 = vmatprep.subr.mxu0 0.0
        %v1779 = vand.u32 %v298, 4294901760
        %1780 = vmatpush1.msra.mxu0 %v1779
        %1781 = vmatprep.subr.mxu0 0.0
        %v1782 = vand.u32 %v299, 4294901760
        %1783 = vmatpush1.msra.mxu0 %v1782
        %1784 = vmatprep.subr.mxu0 0.0
        %v1785 = vand.u32 %v300, 4294901760
        %1786 = vmatpush1.msra.mxu0 %v1785
        %1787 = vmatprep.subr.mxu0 0.0
        %v1788 = vand.u32 %v301, 4294901760
        %1789 = vmatpush1.msra.mxu0 %v1788
        %1790 = vmatprep.subr.mxu0 0.0
        %v1791 = vand.u32 %v302, 4294901760
        %1792 = vmatpush1.msra.mxu0 %v1791
        %1793 = vmatprep.subr.mxu0 0.0
        %v1794 = vand.u32 %v303, 4294901760
        %1795 = vmatpush1.msra.mxu0 %v1794
        %1796 = vmatprep.subr.mxu0 0.0
        %v1797 = vand.u32 %v304, 4294901760
        %1798 = vmatpush1.msra.mxu0 %v1797
        %1799 = vmatprep.subr.mxu0 0.0
        %v1800 = vand.u32 %v305, 4294901760
        %1801 = vmatpush1.msra.mxu0 %v1800
        %1802 = vmatprep.subr.mxu0 0.0
        %v1803 = vand.u32 %v306, 4294901760
        %1804 = vmatpush1.msra.mxu0 %v1803
        %1805 = vmatprep.subr.mxu0 0.0
        %v1806 = vand.u32 %v307, 4294901760
        %1807 = vmatpush1.msra.mxu0 %v1806
        %1808 = vmatprep.subr.mxu0 0.0
        %v1809 = vand.u32 %v308, 4294901760
        %1810 = vmatpush1.msra.mxu0 %v1809
        %1811 = vmatprep.subr.mxu0 0.0
        %v1812 = vand.u32 %v309, 4294901760
        %1813 = vmatpush1.msra.mxu0 %v1812
        %v1814 = vand.u32 %v241, 4294901760
        %v1815 = vsub.f32 %v241, %v1814
        %v1816 = vand.u32 %v1815, 4294901760
        %1817 = vmatprep.mubr.f32.mxu0 %v1816
        %v1818 = vand.u32 %v240, 4294901760
        %v1819 = vsub.f32 %v240, %v1818
        %v1820 = vand.u32 %v1819, 4294901760
        %1821 = vmatmul.mubr.f32.gmra.mrb[0].mxu0 %v1820
        %v1822 = vpop.f32.mrb[0].mxu0
        %v1823 = vadd.f32 %v1715, %v1822
        %v1824 = vpop.f32.mrb[0].mxu0
        %1825 = vdwg.mxu0
        %1826 = vmatprep.subr.mxu0 0.0
        %v1827 = vand.u32 %v278, 4294901760
        %v1828 = vsub.f32 %v278, %v1827
        %v1829 = vand.u32 %v1828, 4294901760
        %1830 = vmatpush1.msra.mxu0 %v1829
        %1831 = vmatprep.subr.mxu0 0.0
        %v1832 = vand.u32 %v279, 4294901760
        %v1833 = vsub.f32 %v279, %v1832
        %v1834 = vand.u32 %v1833, 4294901760
        %1835 = vmatpush1.msra.mxu0 %v1834
        %1836 = vmatprep.subr.mxu0 0.0
        %v1837 = vand.u32 %v280, 4294901760
        %v1838 = vsub.f32 %v280, %v1837
        %v1839 = vand.u32 %v1838, 4294901760
        %1840 = vmatpush1.msra.mxu0 %v1839
        %1841 = vmatprep.subr.mxu0 0.0
        %v1842 = vand.u32 %v281, 4294901760
        %v1843 = vsub.f32 %v281, %v1842
        %v1844 = vand.u32 %v1843, 4294901760
        %1845 = vmatpush1.msra.mxu0 %v1844
        %1846 = vmatprep.subr.mxu0 0.0
        %v1847 = vand.u32 %v282, 4294901760
        %v1848 = vsub.f32 %v282, %v1847
        %v1849 = vand.u32 %v1848, 4294901760
        %1850 = vmatpush1.msra.mxu0 %v1849
        %1851 = vmatprep.subr.mxu0 0.0
        %v1852 = vand.u32 %v283, 4294901760
        %v1853 = vsub.f32 %v283, %v1852
        %v1854 = vand.u32 %v1853, 4294901760
        %1855 = vmatpush1.msra.mxu0 %v1854
        %1856 = vmatprep.subr.mxu0 0.0
        %v1857 = vand.u32 %v284, 4294901760
        %v1858 = vsub.f32 %v284, %v1857
        %v1859 = vand.u32 %v1858, 4294901760
        %1860 = vmatpush1.msra.mxu0 %v1859
        %1861 = vmatprep.subr.mxu0 0.0
        %v1862 = vand.u32 %v285, 4294901760
        %v1863 = vsub.f32 %v285, %v1862
        %v1864 = vand.u32 %v1863, 4294901760
        %1865 = vmatpush1.msra.mxu0 %v1864
        %1866 = vmatprep.subr.mxu0 0.0
        %v1867 = vand.u32 %v286, 4294901760
        %v1868 = vsub.f32 %v286, %v1867
        %v1869 = vand.u32 %v1868, 4294901760
        %1870 = vmatpush1.msra.mxu0 %v1869
        %1871 = vmatprep.subr.mxu0 0.0
        %v1872 = vand.u32 %v287, 4294901760
        %v1873 = vsub.f32 %v287, %v1872
        %v1874 = vand.u32 %v1873, 4294901760
        %1875 = vmatpush1.msra.mxu0 %v1874
        %1876 = vmatprep.subr.mxu0 0.0
        %v1877 = vand.u32 %v288, 4294901760
        %v1878 = vsub.f32 %v288, %v1877
        %v1879 = vand.u32 %v1878, 4294901760
        %1880 = vmatpush1.msra.mxu0 %v1879
        %1881 = vmatprep.subr.mxu0 0.0
        %v1882 = vand.u32 %v289, 4294901760
        %v1883 = vsub.f32 %v289, %v1882
        %v1884 = vand.u32 %v1883, 4294901760
        %1885 = vmatpush1.msra.mxu0 %v1884
        %1886 = vmatprep.subr.mxu0 0.0
        %v1887 = vand.u32 %v290, 4294901760
        %v1888 = vsub.f32 %v290, %v1887
        %v1889 = vand.u32 %v1888, 4294901760
        %1890 = vmatpush1.msra.mxu0 %v1889
        %1891 = vmatprep.subr.mxu0 0.0
        %v1892 = vand.u32 %v291, 4294901760
        %v1893 = vsub.f32 %v291, %v1892
        %v1894 = vand.u32 %v1893, 4294901760
        %1895 = vmatpush1.msra.mxu0 %v1894
        %1896 = vmatprep.subr.mxu0 0.0
        %v1897 = vand.u32 %v292, 4294901760
        %v1898 = vsub.f32 %v292, %v1897
        %v1899 = vand.u32 %v1898, 4294901760
        %1900 = vmatpush1.msra.mxu0 %v1899
        %1901 = vmatprep.subr.mxu0 0.0
        %v1902 = vand.u32 %v293, 4294901760
        %v1903 = vsub.f32 %v293, %v1902
        %v1904 = vand.u32 %v1903, 4294901760
        %1905 = vmatpush1.msra.mxu0 %v1904
        %1906 = vmatprep.subr.mxu0 0.0
        %v1907 = vand.u32 %v294, 4294901760
        %v1908 = vsub.f32 %v294, %v1907
        %v1909 = vand.u32 %v1908, 4294901760
        %1910 = vmatpush1.msra.mxu0 %v1909
        %1911 = vmatprep.subr.mxu0 0.0
        %v1912 = vand.u32 %v295, 4294901760
        %v1913 = vsub.f32 %v295, %v1912
        %v1914 = vand.u32 %v1913, 4294901760
        %1915 = vmatpush1.msra.mxu0 %v1914
        %1916 = vmatprep.subr.mxu0 0.0
        %v1917 = vand.u32 %v296, 4294901760
        %v1918 = vsub.f32 %v296, %v1917
        %v1919 = vand.u32 %v1918, 4294901760
        %1920 = vmatpush1.msra.mxu0 %v1919
        %1921 = vmatprep.subr.mxu0 0.0
        %v1922 = vand.u32 %v297, 4294901760
        %v1923 = vsub.f32 %v297, %v1922
        %v1924 = vand.u32 %v1923, 4294901760
        %1925 = vmatpush1.msra.mxu0 %v1924
        %1926 = vmatprep.subr.mxu0 0.0
        %v1927 = vand.u32 %v298, 4294901760
        %v1928 = vsub.f32 %v298, %v1927
        %v1929 = vand.u32 %v1928, 4294901760
        %1930 = vmatpush1.msra.mxu0 %v1929
        %1931 = vmatprep.subr.mxu0 0.0
        %v1932 = vand.u32 %v299, 4294901760
        %v1933 = vsub.f32 %v299, %v1932
        %v1934 = vand.u32 %v1933, 4294901760
        %1935 = vmatpush1.msra.mxu0 %v1934
        %1936 = vmatprep.subr.mxu0 0.0
        %v1937 = vand.u32 %v300, 4294901760
        %v1938 = vsub.f32 %v300, %v1937
        %v1939 = vand.u32 %v1938, 4294901760
        %1940 = vmatpush1.msra.mxu0 %v1939
        %1941 = vmatprep.subr.mxu0 0.0
        %v1942 = vand.u32 %v301, 4294901760
        %v1943 = vsub.f32 %v301, %v1942
        %v1944 = vand.u32 %v1943, 4294901760
        %1945 = vmatpush1.msra.mxu0 %v1944
        %1946 = vmatprep.subr.mxu0 0.0
        %v1947 = vand.u32 %v302, 4294901760
        %v1948 = vsub.f32 %v302, %v1947
        %v1949 = vand.u32 %v1948, 4294901760
        %1950 = vmatpush1.msra.mxu0 %v1949
        %1951 = vmatprep.subr.mxu0 0.0
        %v1952 = vand.u32 %v303, 4294901760
        %v1953 = vsub.f32 %v303, %v1952
        %v1954 = vand.u32 %v1953, 4294901760
        %1955 = vmatpush1.msra.mxu0 %v1954
        %1956 = vmatprep.subr.mxu0 0.0
        %v1957 = vand.u32 %v304, 4294901760
        %v1958 = vsub.f32 %v304, %v1957
        %v1959 = vand.u32 %v1958, 4294901760
        %1960 = vmatpush1.msra.mxu0 %v1959
        %1961 = vmatprep.subr.mxu0 0.0
        %v1962 = vand.u32 %v305, 4294901760
        %v1963 = vsub.f32 %v305, %v1962
        %v1964 = vand.u32 %v1963, 4294901760
        %1965 = vmatpush1.msra.mxu0 %v1964
        %1966 = vmatprep.subr.mxu0 0.0
        %v1967 = vand.u32 %v306, 4294901760
        %v1968 = vsub.f32 %v306, %v1967
        %v1969 = vand.u32 %v1968, 4294901760
        %1970 = vmatpush1.msra.mxu0 %v1969
        %1971 = vmatprep.subr.mxu0 0.0
        %v1972 = vand.u32 %v307, 4294901760
        %v1973 = vsub.f32 %v307, %v1972
        %v1974 = vand.u32 %v1973, 4294901760
        %1975 = vmatpush1.msra.mxu0 %v1974
        %1976 = vmatprep.subr.mxu0 0.0
        %v1977 = vand.u32 %v308, 4294901760
        %v1978 = vsub.f32 %v308, %v1977
        %v1979 = vand.u32 %v1978, 4294901760
        %1980 = vmatpush1.msra.mxu0 %v1979
        %1981 = vmatprep.subr.mxu0 0.0
        %v1982 = vand.u32 %v309, 4294901760
        %v1983 = vsub.f32 %v309, %v1982
        %v1984 = vand.u32 %v1983, 4294901760
        %1985 = vmatpush1.msra.mxu0 %v1984
        %v1986 = vand.u32 %v241, 4294901760
        %1987 = vmatprep.mubr.f32.mxu0 %v1986
        %v1988 = vand.u32 %v240, 4294901760
        %1989 = vmatmul.mubr.f32.gmra.mrb[0].mxu0 %v1988
        %v1990 = vpop.f32.mrb[0].mxu0
        %v1991 = vadd.f32 %v1823, %v1990
        %v1992 = vpop.f32.mrb[0].mxu0
        %1993 = vdwg.mxu0
        %1994 = vmatprep.subr.mxu0 0.0
        %v1995 = vand.u32 %v278, 4294901760
        %1996 = vmatpush1.msra.mxu0 %v1995
        %1997 = vmatprep.subr.mxu0 0.0
        %v1998 = vand.u32 %v279, 4294901760
        %1999 = vmatpush1.msra.mxu0 %v1998
        %2000 = vmatprep.subr.mxu0 0.0
        %v2001 = vand.u32 %v280, 4294901760
        %2002 = vmatpush1.msra.mxu0 %v2001
        %2003 = vmatprep.subr.mxu0 0.0
        %v2004 = vand.u32 %v281, 4294901760
        %2005 = vmatpush1.msra.mxu0 %v2004
        %2006 = vmatprep.subr.mxu0 0.0
        %v2007 = vand.u32 %v282, 4294901760
        %2008 = vmatpush1.msra.mxu0 %v2007
        %2009 = vmatprep.subr.mxu0 0.0
        %v2010 = vand.u32 %v283, 4294901760
        %2011 = vmatpush1.msra.mxu0 %v2010
        %2012 = vmatprep.subr.mxu0 0.0
        %v2013 = vand.u32 %v284, 4294901760
        %2014 = vmatpush1.msra.mxu0 %v2013
        %2015 = vmatprep.subr.mxu0 0.0
        %v2016 = vand.u32 %v285, 4294901760
        %2017 = vmatpush1.msra.mxu0 %v2016
        %2018 = vmatprep.subr.mxu0 0.0
        %v2019 = vand.u32 %v286, 4294901760
        %2020 = vmatpush1.msra.mxu0 %v2019
        %2021 = vmatprep.subr.mxu0 0.0
        %v2022 = vand.u32 %v287, 4294901760
        %2023 = vmatpush1.msra.mxu0 %v2022
        %2024 = vmatprep.subr.mxu0 0.0
        %v2025 = vand.u32 %v288, 4294901760
        %2026 = vmatpush1.msra.mxu0 %v2025
        %2027 = vmatprep.subr.mxu0 0.0
        %v2028 = vand.u32 %v289, 4294901760
        %2029 = vmatpush1.msra.mxu0 %v2028
        %2030 = vmatprep.subr.mxu0 0.0
        %v2031 = vand.u32 %v290, 4294901760
        %2032 = vmatpush1.msra.mxu0 %v2031
        %2033 = vmatprep.subr.mxu0 0.0
        %v2034 = vand.u32 %v291, 4294901760
        %2035 = vmatpush1.msra.mxu0 %v2034
        %2036 = vmatprep.subr.mxu0 0.0
        %v2037 = vand.u32 %v292, 4294901760
        %2038 = vmatpush1.msra.mxu0 %v2037
        %2039 = vmatprep.subr.mxu0 0.0
        %v2040 = vand.u32 %v293, 4294901760
        %2041 = vmatpush1.msra.mxu0 %v2040
        %2042 = vmatprep.subr.mxu0 0.0
        %v2043 = vand.u32 %v294, 4294901760
        %2044 = vmatpush1.msra.mxu0 %v2043
        %2045 = vmatprep.subr.mxu0 0.0
        %v2046 = vand.u32 %v295, 4294901760
        %2047 = vmatpush1.msra.mxu0 %v2046
        %2048 = vmatprep.subr.mxu0 0.0
        %v2049 = vand.u32 %v296, 4294901760
        %2050 = vmatpush1.msra.mxu0 %v2049
        %2051 = vmatprep.subr.mxu0 0.0
        %v2052 = vand.u32 %v297, 4294901760
        %2053 = vmatpush1.msra.mxu0 %v2052
        %2054 = vmatprep.subr.mxu0 0.0
        %v2055 = vand.u32 %v298, 4294901760
        %2056 = vmatpush1.msra.mxu0 %v2055
        %2057 = vmatprep.subr.mxu0 0.0
        %v2058 = vand.u32 %v299, 4294901760
        %2059 = vmatpush1.msra.mxu0 %v2058
        %2060 = vmatprep.subr.mxu0 0.0
        %v2061 = vand.u32 %v300, 4294901760
        %2062 = vmatpush1.msra.mxu0 %v2061
        %2063 = vmatprep.subr.mxu0 0.0
        %v2064 = vand.u32 %v301, 4294901760
        %2065 = vmatpush1.msra.mxu0 %v2064
        %2066 = vmatprep.subr.mxu0 0.0
        %v2067 = vand.u32 %v302, 4294901760
        %2068 = vmatpush1.msra.mxu0 %v2067
        %2069 = vmatprep.subr.mxu0 0.0
        %v2070 = vand.u32 %v303, 4294901760
        %2071 = vmatpush1.msra.mxu0 %v2070
        %2072 = vmatprep.subr.mxu0 0.0
        %v2073 = vand.u32 %v304, 4294901760
        %2074 = vmatpush1.msra.mxu0 %v2073
        %2075 = vmatprep.subr.mxu0 0.0
        %v2076 = vand.u32 %v305, 4294901760
        %2077 = vmatpush1.msra.mxu0 %v2076
        %2078 = vmatprep.subr.mxu0 0.0
        %v2079 = vand.u32 %v306, 4294901760
        %2080 = vmatpush1.msra.mxu0 %v2079
        %2081 = vmatprep.subr.mxu0 0.0
        %v2082 = vand.u32 %v307, 4294901760
        %2083 = vmatpush1.msra.mxu0 %v2082
        %2084 = vmatprep.subr.mxu0 0.0
        %v2085 = vand.u32 %v308, 4294901760
        %2086 = vmatpush1.msra.mxu0 %v2085
        %2087 = vmatprep.subr.mxu0 0.0
        %v2088 = vand.u32 %v309, 4294901760
        %2089 = vmatpush1.msra.mxu0 %v2088
        %v2090 = vand.u32 %v241, 4294901760
        %2091 = vmatprep.mubr.f32.mxu0 %v2090
        %v2092 = vand.u32 %v240, 4294901760
        %2093 = vmatmul.mubr.f32.gmra.mrb[0].mxu0 %v2092
        %v2094 = vpop.f32.mrb[0].mxu0
        %v2095 = vadd.f32 %v1991, %v2094
        %v2096 = vpop.f32.mrb[0].mxu0
        %2097 = vdwg.mxu0
        %2098 = vmatprep.subr.mxu0 0.0
        %v2099 = vand.u32 %v310, 4294901760
        %2100 = vmatpush1.msra.mxu0 %v2099
        %2101 = vmatprep.subr.mxu0 0.0
        %v2102 = vand.u32 %v311, 4294901760
        %2103 = vmatpush1.msra.mxu0 %v2102
        %2104 = vmatprep.subr.mxu0 0.0
        %v2105 = vand.u32 %v312, 4294901760
        %2106 = vmatpush1.msra.mxu0 %v2105
        %2107 = vmatprep.subr.mxu0 0.0
        %v2108 = vand.u32 %v313, 4294901760
        %2109 = vmatpush1.msra.mxu0 %v2108
        %2110 = vmatprep.subr.mxu0 0.0
        %v2111 = vand.u32 %v314, 4294901760
        %2112 = vmatpush1.msra.mxu0 %v2111
        %2113 = vmatprep.subr.mxu0 0.0
        %v2114 = vand.u32 %v315, 4294901760
        %2115 = vmatpush1.msra.mxu0 %v2114
        %2116 = vmatprep.subr.mxu0 0.0
        %v2117 = vand.u32 %v316, 4294901760
        %2118 = vmatpush1.msra.mxu0 %v2117
        %2119 = vmatprep.subr.mxu0 0.0
        %v2120 = vand.u32 %v317, 4294901760
        %2121 = vmatpush1.msra.mxu0 %v2120
        %2122 = vmatprep.subr.mxu0 0.0
        %v2123 = vand.u32 %v318, 4294901760
        %2124 = vmatpush1.msra.mxu0 %v2123
        %2125 = vmatprep.subr.mxu0 0.0
        %v2126 = vand.u32 %v319, 4294901760
        %2127 = vmatpush1.msra.mxu0 %v2126
        %2128 = vmatprep.subr.mxu0 0.0
        %v2129 = vand.u32 %v320, 4294901760
        %2130 = vmatpush1.msra.mxu0 %v2129
        %2131 = vmatprep.subr.mxu0 0.0
        %v2132 = vand.u32 %v321, 4294901760
        %2133 = vmatpush1.msra.mxu0 %v2132
        %2134 = vmatprep.subr.mxu0 0.0
        %v2135 = vand.u32 %v322, 4294901760
        %2136 = vmatpush1.msra.mxu0 %v2135
        %2137 = vmatprep.subr.mxu0 0.0
        %v2138 = vand.u32 %v323, 4294901760
        %2139 = vmatpush1.msra.mxu0 %v2138
        %2140 = vmatprep.subr.mxu0 0.0
        %v2141 = vand.u32 %v324, 4294901760
        %2142 = vmatpush1.msra.mxu0 %v2141
        %2143 = vmatprep.subr.mxu0 0.0
        %v2144 = vand.u32 %v325, 4294901760
        %2145 = vmatpush1.msra.mxu0 %v2144
        %2146 = vmatprep.subr.mxu0 0.0
        %v2147 = vand.u32 %v326, 4294901760
        %2148 = vmatpush1.msra.mxu0 %v2147
        %2149 = vmatprep.subr.mxu0 0.0
        %v2150 = vand.u32 %v327, 4294901760
        %2151 = vmatpush1.msra.mxu0 %v2150
        %2152 = vmatprep.subr.mxu0 0.0
        %v2153 = vand.u32 %v328, 4294901760
        %2154 = vmatpush1.msra.mxu0 %v2153
        %2155 = vmatprep.subr.mxu0 0.0
        %v2156 = vand.u32 %v329, 4294901760
        %2157 = vmatpush1.msra.mxu0 %v2156
        %2158 = vmatprep.subr.mxu0 0.0
        %v2159 = vand.u32 %v330, 4294901760
        %2160 = vmatpush1.msra.mxu0 %v2159
        %2161 = vmatprep.subr.mxu0 0.0
        %v2162 = vand.u32 %v331, 4294901760
        %2163 = vmatpush1.msra.mxu0 %v2162
        %2164 = vmatprep.subr.mxu0 0.0
        %v2165 = vand.u32 %v332, 4294901760
        %2166 = vmatpush1.msra.mxu0 %v2165
        %2167 = vmatprep.subr.mxu0 0.0
        %v2168 = vand.u32 %v333, 4294901760
        %2169 = vmatpush1.msra.mxu0 %v2168
        %2170 = vmatprep.subr.mxu0 0.0
        %v2171 = vand.u32 %v334, 4294901760
        %2172 = vmatpush1.msra.mxu0 %v2171
        %2173 = vmatprep.subr.mxu0 0.0
        %v2174 = vand.u32 %v335, 4294901760
        %2175 = vmatpush1.msra.mxu0 %v2174
        %2176 = vmatprep.subr.mxu0 0.0
        %v2177 = vand.u32 %v336, 4294901760
        %2178 = vmatpush1.msra.mxu0 %v2177
        %2179 = vmatprep.subr.mxu0 0.0
        %v2180 = vand.u32 %v337, 4294901760
        %2181 = vmatpush1.msra.mxu0 %v2180
        %2182 = vmatprep.subr.mxu0 0.0
        %v2183 = vand.u32 %v338, 4294901760
        %2184 = vmatpush1.msra.mxu0 %v2183
        %2185 = vmatprep.subr.mxu0 0.0
        %v2186 = vand.u32 %v339, 4294901760
        %2187 = vmatpush1.msra.mxu0 %v2186
        %2188 = vmatprep.subr.mxu0 0.0
        %v2189 = vand.u32 %v340, 4294901760
        %2190 = vmatpush1.msra.mxu0 %v2189
        %2191 = vmatprep.subr.mxu0 0.0
        %v2192 = vand.u32 %v341, 4294901760
        %2193 = vmatpush1.msra.mxu0 %v2192
        %v2194 = vand.u32 %v243, 4294901760
        %v2195 = vsub.f32 %v243, %v2194
        %v2196 = vand.u32 %v2195, 4294901760
        %v2197 = vsub.f32 %v2195, %v2196
        %v2198 = vand.u32 %v2197, 4294901760
        %2199 = vmatprep.mubr.f32.mxu0 %v2198
        %v2200 = vand.u32 %v242, 4294901760
        %v2201 = vsub.f32 %v242, %v2200
        %v2202 = vand.u32 %v2201, 4294901760
        %v2203 = vsub.f32 %v2201, %v2202
        %v2204 = vand.u32 %v2203, 4294901760
        %2205 = vmatmul.mubr.f32.gmra.mrb[0].mxu0 %v2204
        %v2206 = vpop.f32.mrb[0].mxu0
        %v2207 = vadd.f32 %v2095, %v2206
        %v2208 = vpop.f32.mrb[0].mxu0
        %2209 = vdwg.mxu0
        %2210 = vmatprep.subr.mxu0 0.0
        %v2211 = vand.u32 %v310, 4294901760
        %v2212 = vsub.f32 %v310, %v2211
        %v2213 = vand.u32 %v2212, 4294901760
        %v2214 = vsub.f32 %v2212, %v2213
        %v2215 = vand.u32 %v2214, 4294901760
        %2216 = vmatpush1.msra.mxu0 %v2215
        %2217 = vmatprep.subr.mxu0 0.0
        %v2218 = vand.u32 %v311, 4294901760
        %v2219 = vsub.f32 %v311, %v2218
        %v2220 = vand.u32 %v2219, 4294901760
        %v2221 = vsub.f32 %v2219, %v2220
        %v2222 = vand.u32 %v2221, 4294901760
        %2223 = vmatpush1.msra.mxu0 %v2222
        %2224 = vmatprep.subr.mxu0 0.0
        %v2225 = vand.u32 %v312, 4294901760
        %v2226 = vsub.f32 %v312, %v2225
        %v2227 = vand.u32 %v2226, 4294901760
        %v2228 = vsub.f32 %v2226, %v2227
        %v2229 = vand.u32 %v2228, 4294901760
        %2230 = vmatpush1.msra.mxu0 %v2229
        %2231 = vmatprep.subr.mxu0 0.0
        %v2232 = vand.u32 %v313, 4294901760
        %v2233 = vsub.f32 %v313, %v2232
        %v2234 = vand.u32 %v2233, 4294901760
        %v2235 = vsub.f32 %v2233, %v2234
        %v2236 = vand.u32 %v2235, 4294901760
        %2237 = vmatpush1.msra.mxu0 %v2236
        %2238 = vmatprep.subr.mxu0 0.0
        %v2239 = vand.u32 %v314, 4294901760
        %v2240 = vsub.f32 %v314, %v2239
        %v2241 = vand.u32 %v2240, 4294901760
        %v2242 = vsub.f32 %v2240, %v2241
        %v2243 = vand.u32 %v2242, 4294901760
        %2244 = vmatpush1.msra.mxu0 %v2243
        %2245 = vmatprep.subr.mxu0 0.0
        %v2246 = vand.u32 %v315, 4294901760
        %v2247 = vsub.f32 %v315, %v2246
        %v2248 = vand.u32 %v2247, 4294901760
        %v2249 = vsub.f32 %v2247, %v2248
        %v2250 = vand.u32 %v2249, 4294901760
        %2251 = vmatpush1.msra.mxu0 %v2250
        %2252 = vmatprep.subr.mxu0 0.0
        %v2253 = vand.u32 %v316, 4294901760
        %v2254 = vsub.f32 %v316, %v2253
        %v2255 = vand.u32 %v2254, 4294901760
        %v2256 = vsub.f32 %v2254, %v2255
        %v2257 = vand.u32 %v2256, 4294901760
        %2258 = vmatpush1.msra.mxu0 %v2257
        %2259 = vmatprep.subr.mxu0 0.0
        %v2260 = vand.u32 %v317, 4294901760
        %v2261 = vsub.f32 %v317, %v2260
        %v2262 = vand.u32 %v2261, 4294901760
        %v2263 = vsub.f32 %v2261, %v2262
        %v2264 = vand.u32 %v2263, 4294901760
        %2265 = vmatpush1.msra.mxu0 %v2264
        %2266 = vmatprep.subr.mxu0 0.0
        %v2267 = vand.u32 %v318, 4294901760
        %v2268 = vsub.f32 %v318, %v2267
        %v2269 = vand.u32 %v2268, 4294901760
        %v2270 = vsub.f32 %v2268, %v2269
        %v2271 = vand.u32 %v2270, 4294901760
        %2272 = vmatpush1.msra.mxu0 %v2271
        %2273 = vmatprep.subr.mxu0 0.0
        %v2274 = vand.u32 %v319, 4294901760
        %v2275 = vsub.f32 %v319, %v2274
        %v2276 = vand.u32 %v2275, 4294901760
        %v2277 = vsub.f32 %v2275, %v2276
        %v2278 = vand.u32 %v2277, 4294901760
        %2279 = vmatpush1.msra.mxu0 %v2278
        %2280 = vmatprep.subr.mxu0 0.0
        %v2281 = vand.u32 %v320, 4294901760
        %v2282 = vsub.f32 %v320, %v2281
        %v2283 = vand.u32 %v2282, 4294901760
        %v2284 = vsub.f32 %v2282, %v2283
        %v2285 = vand.u32 %v2284, 4294901760
        %2286 = vmatpush1.msra.mxu0 %v2285
        %2287 = vmatprep.subr.mxu0 0.0
        %v2288 = vand.u32 %v321, 4294901760
        %v2289 = vsub.f32 %v321, %v2288
        %v2290 = vand.u32 %v2289, 4294901760
        %v2291 = vsub.f32 %v2289, %v2290
        %v2292 = vand.u32 %v2291, 4294901760
        %2293 = vmatpush1.msra.mxu0 %v2292
        %2294 = vmatprep.subr.mxu0 0.0
        %v2295 = vand.u32 %v322, 4294901760
        %v2296 = vsub.f32 %v322, %v2295
        %v2297 = vand.u32 %v2296, 4294901760
        %v2298 = vsub.f32 %v2296, %v2297
        %v2299 = vand.u32 %v2298, 4294901760
        %2300 = vmatpush1.msra.mxu0 %v2299
        %2301 = vmatprep.subr.mxu0 0.0
        %v2302 = vand.u32 %v323, 4294901760
        %v2303 = vsub.f32 %v323, %v2302
        %v2304 = vand.u32 %v2303, 4294901760
        %v2305 = vsub.f32 %v2303, %v2304
        %v2306 = vand.u32 %v2305, 4294901760
        %2307 = vmatpush1.msra.mxu0 %v2306
        %2308 = vmatprep.subr.mxu0 0.0
        %v2309 = vand.u32 %v324, 4294901760
        %v2310 = vsub.f32 %v324, %v2309
        %v2311 = vand.u32 %v2310, 4294901760
        %v2312 = vsub.f32 %v2310, %v2311
        %v2313 = vand.u32 %v2312, 4294901760
        %2314 = vmatpush1.msra.mxu0 %v2313
        %2315 = vmatprep.subr.mxu0 0.0
        %v2316 = vand.u32 %v325, 4294901760
        %v2317 = vsub.f32 %v325, %v2316
        %v2318 = vand.u32 %v2317, 4294901760
        %v2319 = vsub.f32 %v2317, %v2318
        %v2320 = vand.u32 %v2319, 4294901760
        %2321 = vmatpush1.msra.mxu0 %v2320
        %2322 = vmatprep.subr.mxu0 0.0
        %v2323 = vand.u32 %v326, 4294901760
        %v2324 = vsub.f32 %v326, %v2323
        %v2325 = vand.u32 %v2324, 4294901760
        %v2326 = vsub.f32 %v2324, %v2325
        %v2327 = vand.u32 %v2326, 4294901760
        %2328 = vmatpush1.msra.mxu0 %v2327
        %2329 = vmatprep.subr.mxu0 0.0
        %v2330 = vand.u32 %v327, 4294901760
        %v2331 = vsub.f32 %v327, %v2330
        %v2332 = vand.u32 %v2331, 4294901760
        %v2333 = vsub.f32 %v2331, %v2332
        %v2334 = vand.u32 %v2333, 4294901760
        %2335 = vmatpush1.msra.mxu0 %v2334
        %2336 = vmatprep.subr.mxu0 0.0
        %v2337 = vand.u32 %v328, 4294901760
        %v2338 = vsub.f32 %v328, %v2337
        %v2339 = vand.u32 %v2338, 4294901760
        %v2340 = vsub.f32 %v2338, %v2339
        %v2341 = vand.u32 %v2340, 4294901760
        %2342 = vmatpush1.msra.mxu0 %v2341
        %2343 = vmatprep.subr.mxu0 0.0
        %v2344 = vand.u32 %v329, 4294901760
        %v2345 = vsub.f32 %v329, %v2344
        %v2346 = vand.u32 %v2345, 4294901760
        %v2347 = vsub.f32 %v2345, %v2346
        %v2348 = vand.u32 %v2347, 4294901760
        %2349 = vmatpush1.msra.mxu0 %v2348
        %2350 = vmatprep.subr.mxu0 0.0
        %v2351 = vand.u32 %v330, 4294901760
        %v2352 = vsub.f32 %v330, %v2351
        %v2353 = vand.u32 %v2352, 4294901760
        %v2354 = vsub.f32 %v2352, %v2353
        %v2355 = vand.u32 %v2354, 4294901760
        %2356 = vmatpush1.msra.mxu0 %v2355
        %2357 = vmatprep.subr.mxu0 0.0
        %v2358 = vand.u32 %v331, 4294901760
        %v2359 = vsub.f32 %v331, %v2358
        %v2360 = vand.u32 %v2359, 4294901760
        %v2361 = vsub.f32 %v2359, %v2360
        %v2362 = vand.u32 %v2361, 4294901760
        %2363 = vmatpush1.msra.mxu0 %v2362
        %2364 = vmatprep.subr.mxu0 0.0
        %v2365 = vand.u32 %v332, 4294901760
        %v2366 = vsub.f32 %v332, %v2365
        %v2367 = vand.u32 %v2366, 4294901760
        %v2368 = vsub.f32 %v2366, %v2367
        %v2369 = vand.u32 %v2368, 4294901760
        %2370 = vmatpush1.msra.mxu0 %v2369
        %2371 = vmatprep.subr.mxu0 0.0
        %v2372 = vand.u32 %v333, 4294901760
        %v2373 = vsub.f32 %v333, %v2372
        %v2374 = vand.u32 %v2373, 4294901760
        %v2375 = vsub.f32 %v2373, %v2374
        %v2376 = vand.u32 %v2375, 4294901760
        %2377 = vmatpush1.msra.mxu0 %v2376
        %2378 = vmatprep.subr.mxu0 0.0
        %v2379 = vand.u32 %v334, 4294901760
        %v2380 = vsub.f32 %v334, %v2379
        %v2381 = vand.u32 %v2380, 4294901760
        %v2382 = vsub.f32 %v2380, %v2381
        %v2383 = vand.u32 %v2382, 4294901760
        %2384 = vmatpush1.msra.mxu0 %v2383
        %2385 = vmatprep.subr.mxu0 0.0
        %v2386 = vand.u32 %v335, 4294901760
        %v2387 = vsub.f32 %v335, %v2386
        %v2388 = vand.u32 %v2387, 4294901760
        %v2389 = vsub.f32 %v2387, %v2388
        %v2390 = vand.u32 %v2389, 4294901760
        %2391 = vmatpush1.msra.mxu0 %v2390
        %2392 = vmatprep.subr.mxu0 0.0
        %v2393 = vand.u32 %v336, 4294901760
        %v2394 = vsub.f32 %v336, %v2393
        %v2395 = vand.u32 %v2394, 4294901760
        %v2396 = vsub.f32 %v2394, %v2395
        %v2397 = vand.u32 %v2396, 4294901760
        %2398 = vmatpush1.msra.mxu0 %v2397
        %2399 = vmatprep.subr.mxu0 0.0
        %v2400 = vand.u32 %v337, 4294901760
        %v2401 = vsub.f32 %v337, %v2400
        %v2402 = vand.u32 %v2401, 4294901760
        %v2403 = vsub.f32 %v2401, %v2402
        %v2404 = vand.u32 %v2403, 4294901760
        %2405 = vmatpush1.msra.mxu0 %v2404
        %2406 = vmatprep.subr.mxu0 0.0
        %v2407 = vand.u32 %v338, 4294901760
        %v2408 = vsub.f32 %v338, %v2407
        %v2409 = vand.u32 %v2408, 4294901760
        %v2410 = vsub.f32 %v2408, %v2409
        %v2411 = vand.u32 %v2410, 4294901760
        %2412 = vmatpush1.msra.mxu0 %v2411
        %2413 = vmatprep.subr.mxu0 0.0
        %v2414 = vand.u32 %v339, 4294901760
        %v2415 = vsub.f32 %v339, %v2414
        %v2416 = vand.u32 %v2415, 4294901760
        %v2417 = vsub.f32 %v2415, %v2416
        %v2418 = vand.u32 %v2417, 4294901760
        %2419 = vmatpush1.msra.mxu0 %v2418
        %2420 = vmatprep.subr.mxu0 0.0
        %v2421 = vand.u32 %v340, 4294901760
        %v2422 = vsub.f32 %v340, %v2421
        %v2423 = vand.u32 %v2422, 4294901760
        %v2424 = vsub.f32 %v2422, %v2423
        %v2425 = vand.u32 %v2424, 4294901760
        %2426 = vmatpush1.msra.mxu0 %v2425
        %2427 = vmatprep.subr.mxu0 0.0
        %v2428 = vand.u32 %v341, 4294901760
        %v2429 = vsub.f32 %v341, %v2428
        %v2430 = vand.u32 %v2429, 4294901760
        %v2431 = vsub.f32 %v2429, %v2430
        %v2432 = vand.u32 %v2431, 4294901760
        %2433 = vmatpush1.msra.mxu0 %v2432
        %v2434 = vand.u32 %v243, 4294901760
        %2435 = vmatprep.mubr.f32.mxu0 %v2434
        %v2436 = vand.u32 %v242, 4294901760
        %2437 = vmatmul.mubr.f32.gmra.mrb[0].mxu0 %v2436
        %v2438 = vpop.f32.mrb[0].mxu0
        %v2439 = vadd.f32 %v2207, %v2438
        %v2440 = vpop.f32.mrb[0].mxu0
        %2441 = vdwg.mxu0
        %2442 = vmatprep.subr.mxu0 0.0
        %v2443 = vand.u32 %v310, 4294901760
        %v2444 = vsub.f32 %v310, %v2443
        %2445 = vmatpush1.msra.mxu0 %v2444
        %2446 = vmatprep.subr.mxu0 0.0
        %v2447 = vand.u32 %v311, 4294901760
        %v2448 = vsub.f32 %v311, %v2447
        %2449 = vmatpush1.msra.mxu0 %v2448
        %2450 = vmatprep.subr.mxu0 0.0
        %v2451 = vand.u32 %v312, 4294901760
        %v2452 = vsub.f32 %v312, %v2451
        %2453 = vmatpush1.msra.mxu0 %v2452
        %2454 = vmatprep.subr.mxu0 0.0
        %v2455 = vand.u32 %v313, 4294901760
        %v2456 = vsub.f32 %v313, %v2455
        %2457 = vmatpush1.msra.mxu0 %v2456
        %2458 = vmatprep.subr.mxu0 0.0
        %v2459 = vand.u32 %v314, 4294901760
        %v2460 = vsub.f32 %v314, %v2459
        %2461 = vmatpush1.msra.mxu0 %v2460
        %2462 = vmatprep.subr.mxu0 0.0
        %v2463 = vand.u32 %v315, 4294901760
        %v2464 = vsub.f32 %v315, %v2463
        %2465 = vmatpush1.msra.mxu0 %v2464
        %2466 = vmatprep.subr.mxu0 0.0
        %v2467 = vand.u32 %v316, 4294901760
        %v2468 = vsub.f32 %v316, %v2467
        %2469 = vmatpush1.msra.mxu0 %v2468
        %2470 = vmatprep.subr.mxu0 0.0
        %v2471 = vand.u32 %v317, 4294901760
        %v2472 = vsub.f32 %v317, %v2471
        %2473 = vmatpush1.msra.mxu0 %v2472
        %2474 = vmatprep.subr.mxu0 0.0
        %v2475 = vand.u32 %v318, 4294901760
        %v2476 = vsub.f32 %v318, %v2475
        %2477 = vmatpush1.msra.mxu0 %v2476
        %2478 = vmatprep.subr.mxu0 0.0
        %v2479 = vand.u32 %v319, 4294901760
        %v2480 = vsub.f32 %v319, %v2479
        %2481 = vmatpush1.msra.mxu0 %v2480
        %2482 = vmatprep.subr.mxu0 0.0
        %v2483 = vand.u32 %v320, 4294901760
        %v2484 = vsub.f32 %v320, %v2483
        %2485 = vmatpush1.msra.mxu0 %v2484
        %2486 = vmatprep.subr.mxu0 0.0
        %v2487 = vand.u32 %v321, 4294901760
        %v2488 = vsub.f32 %v321, %v2487
        %2489 = vmatpush1.msra.mxu0 %v2488
        %2490 = vmatprep.subr.mxu0 0.0
        %v2491 = vand.u32 %v322, 4294901760
        %v2492 = vsub.f32 %v322, %v2491
        %2493 = vmatpush1.msra.mxu0 %v2492
        %2494 = vmatprep.subr.mxu0 0.0
        %v2495 = vand.u32 %v323, 4294901760
        %v2496 = vsub.f32 %v323, %v2495
        %2497 = vmatpush1.msra.mxu0 %v2496
        %2498 = vmatprep.subr.mxu0 0.0
        %v2499 = vand.u32 %v324, 4294901760
        %v2500 = vsub.f32 %v324, %v2499
        %2501 = vmatpush1.msra.mxu0 %v2500
        %2502 = vmatprep.subr.mxu0 0.0
        %v2503 = vand.u32 %v325, 4294901760
        %v2504 = vsub.f32 %v325, %v2503
        %2505 = vmatpush1.msra.mxu0 %v2504
        %2506 = vmatprep.subr.mxu0 0.0
        %v2507 = vand.u32 %v326, 4294901760
        %v2508 = vsub.f32 %v326, %v2507
        %2509 = vmatpush1.msra.mxu0 %v2508
        %2510 = vmatprep.subr.mxu0 0.0
        %v2511 = vand.u32 %v327, 4294901760
        %v2512 = vsub.f32 %v327, %v2511
        %2513 = vmatpush1.msra.mxu0 %v2512
        %2514 = vmatprep.subr.mxu0 0.0
        %v2515 = vand.u32 %v328, 4294901760
        %v2516 = vsub.f32 %v328, %v2515
        %2517 = vmatpush1.msra.mxu0 %v2516
        %2518 = vmatprep.subr.mxu0 0.0
        %v2519 = vand.u32 %v329, 4294901760
        %v2520 = vsub.f32 %v329, %v2519
        %2521 = vmatpush1.msra.mxu0 %v2520
        %2522 = vmatprep.subr.mxu0 0.0
        %v2523 = vand.u32 %v330, 4294901760
        %v2524 = vsub.f32 %v330, %v2523
        %2525 = vmatpush1.msra.mxu0 %v2524
        %2526 = vmatprep.subr.mxu0 0.0
        %v2527 = vand.u32 %v331, 4294901760
        %v2528 = vsub.f32 %v331, %v2527
        %2529 = vmatpush1.msra.mxu0 %v2528
        %2530 = vmatprep.subr.mxu0 0.0
        %v2531 = vand.u32 %v332, 4294901760
        %v2532 = vsub.f32 %v332, %v2531
        %2533 = vmatpush1.msra.mxu0 %v2532
        %2534 = vmatprep.subr.mxu0 0.0
        %v2535 = vand.u32 %v333, 4294901760
        %v2536 = vsub.f32 %v333, %v2535
        %2537 = vmatpush1.msra.mxu0 %v2536
        %2538 = vmatprep.subr.mxu0 0.0
        %v2539 = vand.u32 %v334, 4294901760
        %v2540 = vsub.f32 %v334, %v2539
        %2541 = vmatpush1.msra.mxu0 %v2540
        %2542 = vmatprep.subr.mxu0 0.0
        %v2543 = vand.u32 %v335, 4294901760
        %v2544 = vsub.f32 %v335, %v2543
        %2545 = vmatpush1.msra.mxu0 %v2544
        %2546 = vmatprep.subr.mxu0 0.0
        %v2547 = vand.u32 %v336, 4294901760
        %v2548 = vsub.f32 %v336, %v2547
        %2549 = vmatpush1.msra.mxu0 %v2548
        %2550 = vmatprep.subr.mxu0 0.0
        %v2551 = vand.u32 %v337, 4294901760
        %v2552 = vsub.f32 %v337, %v2551
        %2553 = vmatpush1.msra.mxu0 %v2552
        %2554 = vmatprep.subr.mxu0 0.0
        %v2555 = vand.u32 %v338, 4294901760
        %v2556 = vsub.f32 %v338, %v2555
        %2557 = vmatpush1.msra.mxu0 %v2556
        %2558 = vmatprep.subr.mxu0 0.0
        %v2559 = vand.u32 %v339, 4294901760
        %v2560 = vsub.f32 %v339, %v2559
        %2561 = vmatpush1.msra.mxu0 %v2560
        %2562 = vmatprep.subr.mxu0 0.0
        %v2563 = vand.u32 %v340, 4294901760
        %v2564 = vsub.f32 %v340, %v2563
        %2565 = vmatpush1.msra.mxu0 %v2564
        %2566 = vmatprep.subr.mxu0 0.0
        %v2567 = vand.u32 %v341, 4294901760
        %v2568 = vsub.f32 %v341, %v2567
        %2569 = vmatpush1.msra.mxu0 %v2568
        %v2570 = vand.u32 %v243, 4294901760
        %v2571 = vsub.f32 %v243, %v2570
        %2572 = vmatprep.mubr.f32.mxu0 %v2571
        %v2573 = vand.u32 %v242, 4294901760
        %v2574 = vsub.f32 %v242, %v2573
        %2575 = vmatmul.mubr.f32.gmra.mrb[0].mxu0 %v2574
        %v2576 = vpop.f32.mrb[0].mxu0
        %v2577 = vadd.f32 %v2439, %v2576
        %v2578 = vpop.f32.mrb[0].mxu0
        %2579 = vdwg.mxu0
        %2580 = vmatprep.subr.mxu0 0.0
        %v2581 = vand.u32 %v310, 4294901760
        %2582 = vmatpush1.msra.mxu0 %v2581
        %2583 = vmatprep.subr.mxu0 0.0
        %v2584 = vand.u32 %v311, 4294901760
        %2585 = vmatpush1.msra.mxu0 %v2584
        %2586 = vmatprep.subr.mxu0 0.0
        %v2587 = vand.u32 %v312, 4294901760
        %2588 = vmatpush1.msra.mxu0 %v2587
        %2589 = vmatprep.subr.mxu0 0.0
        %v2590 = vand.u32 %v313, 4294901760
        %2591 = vmatpush1.msra.mxu0 %v2590
        %2592 = vmatprep.subr.mxu0 0.0
        %v2593 = vand.u32 %v314, 4294901760
        %2594 = vmatpush1.msra.mxu0 %v2593
        %2595 = vmatprep.subr.mxu0 0.0
        %v2596 = vand.u32 %v315, 4294901760
        %2597 = vmatpush1.msra.mxu0 %v2596
        %2598 = vmatprep.subr.mxu0 0.0
        %v2599 = vand.u32 %v316, 4294901760
        %2600 = vmatpush1.msra.mxu0 %v2599
        %2601 = vmatprep.subr.mxu0 0.0
        %v2602 = vand.u32 %v317, 4294901760
        %2603 = vmatpush1.msra.mxu0 %v2602
        %2604 = vmatprep.subr.mxu0 0.0
        %v2605 = vand.u32 %v318, 4294901760
        %2606 = vmatpush1.msra.mxu0 %v2605
        %2607 = vmatprep.subr.mxu0 0.0
        %v2608 = vand.u32 %v319, 4294901760
        %2609 = vmatpush1.msra.mxu0 %v2608
        %2610 = vmatprep.subr.mxu0 0.0
        %v2611 = vand.u32 %v320, 4294901760
        %2612 = vmatpush1.msra.mxu0 %v2611
        %2613 = vmatprep.subr.mxu0 0.0
        %v2614 = vand.u32 %v321, 4294901760
        %2615 = vmatpush1.msra.mxu0 %v2614
        %2616 = vmatprep.subr.mxu0 0.0
        %v2617 = vand.u32 %v322, 4294901760
        %2618 = vmatpush1.msra.mxu0 %v2617
        %2619 = vmatprep.subr.mxu0 0.0
        %v2620 = vand.u32 %v323, 4294901760
        %2621 = vmatpush1.msra.mxu0 %v2620
        %2622 = vmatprep.subr.mxu0 0.0
        %v2623 = vand.u32 %v324, 4294901760
        %2624 = vmatpush1.msra.mxu0 %v2623
        %2625 = vmatprep.subr.mxu0 0.0
        %v2626 = vand.u32 %v325, 4294901760
        %2627 = vmatpush1.msra.mxu0 %v2626
        %2628 = vmatprep.subr.mxu0 0.0
        %v2629 = vand.u32 %v326, 4294901760
        %2630 = vmatpush1.msra.mxu0 %v2629
        %2631 = vmatprep.subr.mxu0 0.0
        %v2632 = vand.u32 %v327, 4294901760
        %2633 = vmatpush1.msra.mxu0 %v2632
        %2634 = vmatprep.subr.mxu0 0.0
        %v2635 = vand.u32 %v328, 4294901760
        %2636 = vmatpush1.msra.mxu0 %v2635
        %2637 = vmatprep.subr.mxu0 0.0
        %v2638 = vand.u32 %v329, 4294901760
        %2639 = vmatpush1.msra.mxu0 %v2638
        %2640 = vmatprep.subr.mxu0 0.0
        %v2641 = vand.u32 %v330, 4294901760
        %2642 = vmatpush1.msra.mxu0 %v2641
        %2643 = vmatprep.subr.mxu0 0.0
        %v2644 = vand.u32 %v331, 4294901760
        %2645 = vmatpush1.msra.mxu0 %v2644
        %2646 = vmatprep.subr.mxu0 0.0
        %v2647 = vand.u32 %v332, 4294901760
        %2648 = vmatpush1.msra.mxu0 %v2647
        %2649 = vmatprep.subr.mxu0 0.0
        %v2650 = vand.u32 %v333, 4294901760
        %2651 = vmatpush1.msra.mxu0 %v2650
        %2652 = vmatprep.subr.mxu0 0.0
        %v2653 = vand.u32 %v334, 4294901760
        %2654 = vmatpush1.msra.mxu0 %v2653
        %2655 = vmatprep.subr.mxu0 0.0
        %v2656 = vand.u32 %v335, 4294901760
        %2657 = vmatpush1.msra.mxu0 %v2656
        %2658 = vmatprep.subr.mxu0 0.0
        %v2659 = vand.u32 %v336, 4294901760
        %2660 = vmatpush1.msra.mxu0 %v2659
        %2661 = vmatprep.subr.mxu0 0.0
        %v2662 = vand.u32 %v337, 4294901760
        %2663 = vmatpush1.msra.mxu0 %v2662
        %2664 = vmatprep.subr.mxu0 0.0
        %v2665 = vand.u32 %v338, 4294901760
        %2666 = vmatpush1.msra.mxu0 %v2665
        %2667 = vmatprep.subr.mxu0 0.0
        %v2668 = vand.u32 %v339, 4294901760
        %2669 = vmatpush1.msra.mxu0 %v2668
        %2670 = vmatprep.subr.mxu0 0.0
        %v2671 = vand.u32 %v340, 4294901760
        %2672 = vmatpush1.msra.mxu0 %v2671
        %2673 = vmatprep.subr.mxu0 0.0
        %v2674 = vand.u32 %v341, 4294901760
        %2675 = vmatpush1.msra.mxu0 %v2674
        %v2676 = vand.u32 %v243, 4294901760
        %v2677 = vsub.f32 %v243, %v2676
        %v2678 = vand.u32 %v2677, 4294901760
        %2679 = vmatprep.mubr.f32.mxu0 %v2678
        %v2680 = vand.u32 %v242, 4294901760
        %v2681 = vsub.f32 %v242, %v2680
        %v2682 = vand.u32 %v2681, 4294901760
        %2683 = vmatmul.mubr.f32.gmra.mrb[0].mxu0 %v2682
        %v2684 = vpop.f32.mrb[0].mxu0
        %v2685 = vadd.f32 %v2577, %v2684
        %v2686 = vpop.f32.mrb[0].mxu0
        %2687 = vdwg.mxu0
        %2688 = vmatprep.subr.mxu0 0.0
        %v2689 = vand.u32 %v310, 4294901760
        %v2690 = vsub.f32 %v310, %v2689
        %v2691 = vand.u32 %v2690, 4294901760
        %2692 = vmatpush1.msra.mxu0 %v2691
        %2693 = vmatprep.subr.mxu0 0.0
        %v2694 = vand.u32 %v311, 4294901760
        %v2695 = vsub.f32 %v311, %v2694
        %v2696 = vand.u32 %v2695, 4294901760
        %2697 = vmatpush1.msra.mxu0 %v2696
        %2698 = vmatprep.subr.mxu0 0.0
        %v2699 = vand.u32 %v312, 4294901760
        %v2700 = vsub.f32 %v312, %v2699
        %v2701 = vand.u32 %v2700, 4294901760
        %2702 = vmatpush1.msra.mxu0 %v2701
        %2703 = vmatprep.subr.mxu0 0.0
        %v2704 = vand.u32 %v313, 4294901760
        %v2705 = vsub.f32 %v313, %v2704
        %v2706 = vand.u32 %v2705, 4294901760
        %2707 = vmatpush1.msra.mxu0 %v2706
        %2708 = vmatprep.subr.mxu0 0.0
        %v2709 = vand.u32 %v314, 4294901760
        %v2710 = vsub.f32 %v314, %v2709
        %v2711 = vand.u32 %v2710, 4294901760
        %2712 = vmatpush1.msra.mxu0 %v2711
        %2713 = vmatprep.subr.mxu0 0.0
        %v2714 = vand.u32 %v315, 4294901760
        %v2715 = vsub.f32 %v315, %v2714
        %v2716 = vand.u32 %v2715, 4294901760
        %2717 = vmatpush1.msra.mxu0 %v2716
        %2718 = vmatprep.subr.mxu0 0.0
        %v2719 = vand.u32 %v316, 4294901760
        %v2720 = vsub.f32 %v316, %v2719
        %v2721 = vand.u32 %v2720, 4294901760
        %2722 = vmatpush1.msra.mxu0 %v2721
        %2723 = vmatprep.subr.mxu0 0.0
        %v2724 = vand.u32 %v317, 4294901760
        %v2725 = vsub.f32 %v317, %v2724
        %v2726 = vand.u32 %v2725, 4294901760
        %2727 = vmatpush1.msra.mxu0 %v2726
        %2728 = vmatprep.subr.mxu0 0.0
        %v2729 = vand.u32 %v318, 4294901760
        %v2730 = vsub.f32 %v318, %v2729
        %v2731 = vand.u32 %v2730, 4294901760
        %2732 = vmatpush1.msra.mxu0 %v2731
        %2733 = vmatprep.subr.mxu0 0.0
        %v2734 = vand.u32 %v319, 4294901760
        %v2735 = vsub.f32 %v319, %v2734
        %v2736 = vand.u32 %v2735, 4294901760
        %2737 = vmatpush1.msra.mxu0 %v2736
        %2738 = vmatprep.subr.mxu0 0.0
        %v2739 = vand.u32 %v320, 4294901760
        %v2740 = vsub.f32 %v320, %v2739
        %v2741 = vand.u32 %v2740, 4294901760
        %2742 = vmatpush1.msra.mxu0 %v2741
        %2743 = vmatprep.subr.mxu0 0.0
        %v2744 = vand.u32 %v321, 4294901760
        %v2745 = vsub.f32 %v321, %v2744
        %v2746 = vand.u32 %v2745, 4294901760
        %2747 = vmatpush1.msra.mxu0 %v2746
        %2748 = vmatprep.subr.mxu0 0.0
        %v2749 = vand.u32 %v322, 4294901760
        %v2750 = vsub.f32 %v322, %v2749
        %v2751 = vand.u32 %v2750, 4294901760
        %2752 = vmatpush1.msra.mxu0 %v2751
        %2753 = vmatprep.subr.mxu0 0.0
        %v2754 = vand.u32 %v323, 4294901760
        %v2755 = vsub.f32 %v323, %v2754
        %v2756 = vand.u32 %v2755, 4294901760
        %2757 = vmatpush1.msra.mxu0 %v2756
        %2758 = vmatprep.subr.mxu0 0.0
        %v2759 = vand.u32 %v324, 4294901760
        %v2760 = vsub.f32 %v324, %v2759
        %v2761 = vand.u32 %v2760, 4294901760
        %2762 = vmatpush1.msra.mxu0 %v2761
        %2763 = vmatprep.subr.mxu0 0.0
        %v2764 = vand.u32 %v325, 4294901760
        %v2765 = vsub.f32 %v325, %v2764
        %v2766 = vand.u32 %v2765, 4294901760
        %2767 = vmatpush1.msra.mxu0 %v2766
        %2768 = vmatprep.subr.mxu0 0.0
        %v2769 = vand.u32 %v326, 4294901760
        %v2770 = vsub.f32 %v326, %v2769
        %v2771 = vand.u32 %v2770, 4294901760
        %2772 = vmatpush1.msra.mxu0 %v2771
        %2773 = vmatprep.subr.mxu0 0.0
        %v2774 = vand.u32 %v327, 4294901760
        %v2775 = vsub.f32 %v327, %v2774
        %v2776 = vand.u32 %v2775, 4294901760
        %2777 = vmatpush1.msra.mxu0 %v2776
        %2778 = vmatprep.subr.mxu0 0.0
        %v2779 = vand.u32 %v328, 4294901760
        %v2780 = vsub.f32 %v328, %v2779
        %v2781 = vand.u32 %v2780, 4294901760
        %2782 = vmatpush1.msra.mxu0 %v2781
        %2783 = vmatprep.subr.mxu0 0.0
        %v2784 = vand.u32 %v329, 4294901760
        %v2785 = vsub.f32 %v329, %v2784
        %v2786 = vand.u32 %v2785, 4294901760
        %2787 = vmatpush1.msra.mxu0 %v2786
        %2788 = vmatprep.subr.mxu0 0.0
        %v2789 = vand.u32 %v330, 4294901760
        %v2790 = vsub.f32 %v330, %v2789
        %v2791 = vand.u32 %v2790, 4294901760
        %2792 = vmatpush1.msra.mxu0 %v2791
        %2793 = vmatprep.subr.mxu0 0.0
        %v2794 = vand.u32 %v331, 4294901760
        %v2795 = vsub.f32 %v331, %v2794
        %v2796 = vand.u32 %v2795, 4294901760
        %2797 = vmatpush1.msra.mxu0 %v2796
        %2798 = vmatprep.subr.mxu0 0.0
        %v2799 = vand.u32 %v332, 4294901760
        %v2800 = vsub.f32 %v332, %v2799
        %v2801 = vand.u32 %v2800, 4294901760
        %2802 = vmatpush1.msra.mxu0 %v2801
        %2803 = vmatprep.subr.mxu0 0.0
        %v2804 = vand.u32 %v333, 4294901760
        %v2805 = vsub.f32 %v333, %v2804
        %v2806 = vand.u32 %v2805, 4294901760
        %2807 = vmatpush1.msra.mxu0 %v2806
        %2808 = vmatprep.subr.mxu0 0.0
        %v2809 = vand.u32 %v334, 4294901760
        %v2810 = vsub.f32 %v334, %v2809
        %v2811 = vand.u32 %v2810, 4294901760
        %2812 = vmatpush1.msra.mxu0 %v2811
        %2813 = vmatprep.subr.mxu0 0.0
        %v2814 = vand.u32 %v335, 4294901760
        %v2815 = vsub.f32 %v335, %v2814
        %v2816 = vand.u32 %v2815, 4294901760
        %2817 = vmatpush1.msra.mxu0 %v2816
        %2818 = vmatprep.subr.mxu0 0.0
        %v2819 = vand.u32 %v336, 4294901760
        %v2820 = vsub.f32 %v336, %v2819
        %v2821 = vand.u32 %v2820, 4294901760
        %2822 = vmatpush1.msra.mxu0 %v2821
        %2823 = vmatprep.subr.mxu0 0.0
        %v2824 = vand.u32 %v337, 4294901760
        %v2825 = vsub.f32 %v337, %v2824
        %v2826 = vand.u32 %v2825, 4294901760
        %2827 = vmatpush1.msra.mxu0 %v2826
        %2828 = vmatprep.subr.mxu0 0.0
        %v2829 = vand.u32 %v338, 4294901760
        %v2830 = vsub.f32 %v338, %v2829
        %v2831 = vand.u32 %v2830, 4294901760
        %2832 = vmatpush1.msra.mxu0 %v2831
        %2833 = vmatprep.subr.mxu0 0.0
        %v2834 = vand.u32 %v339, 4294901760
        %v2835 = vsub.f32 %v339, %v2834
        %v2836 = vand.u32 %v2835, 4294901760
        %2837 = vmatpush1.msra.mxu0 %v2836
        %2838 = vmatprep.subr.mxu0 0.0
        %v2839 = vand.u32 %v340, 4294901760
        %v2840 = vsub.f32 %v340, %v2839
        %v2841 = vand.u32 %v2840, 4294901760
        %2842 = vmatpush1.msra.mxu0 %v2841
        %2843 = vmatprep.subr.mxu0 0.0
        %v2844 = vand.u32 %v341, 4294901760
        %v2845 = vsub.f32 %v341, %v2844
        %v2846 = vand.u32 %v2845, 4294901760
        %2847 = vmatpush1.msra.mxu0 %v2846
        %v2848 = vand.u32 %v243, 4294901760
        %2849 = vmatprep.mubr.f32.mxu0 %v2848
        %v2850 = vand.u32 %v242, 4294901760
        %2851 = vmatmul.mubr.f32.gmra.mrb[0].mxu0 %v2850
        %v2852 = vpop.f32.mrb[0].mxu0
        %v2853 = vadd.f32 %v2685, %v2852
        %v2854 = vpop.f32.mrb[0].mxu0
        %2855 = vdwg.mxu0
        %2856 = vmatprep.subr.mxu0 0.0
        %v2857 = vand.u32 %v310, 4294901760
        %2858 = vmatpush1.msra.mxu0 %v2857
        %2859 = vmatprep.subr.mxu0 0.0
        %v2860 = vand.u32 %v311, 4294901760
        %2861 = vmatpush1.msra.mxu0 %v2860
        %2862 = vmatprep.subr.mxu0 0.0
        %v2863 = vand.u32 %v312, 4294901760
        %2864 = vmatpush1.msra.mxu0 %v2863
        %2865 = vmatprep.subr.mxu0 0.0
        %v2866 = vand.u32 %v313, 4294901760
        %2867 = vmatpush1.msra.mxu0 %v2866
        %2868 = vmatprep.subr.mxu0 0.0
        %v2869 = vand.u32 %v314, 4294901760
        %2870 = vmatpush1.msra.mxu0 %v2869
        %2871 = vmatprep.subr.mxu0 0.0
        %v2872 = vand.u32 %v315, 4294901760
        %2873 = vmatpush1.msra.mxu0 %v2872
        %2874 = vmatprep.subr.mxu0 0.0
        %v2875 = vand.u32 %v316, 4294901760
        %2876 = vmatpush1.msra.mxu0 %v2875
        %2877 = vmatprep.subr.mxu0 0.0
        %v2878 = vand.u32 %v317, 4294901760
        %2879 = vmatpush1.msra.mxu0 %v2878
        %2880 = vmatprep.subr.mxu0 0.0
        %v2881 = vand.u32 %v318, 4294901760
        %2882 = vmatpush1.msra.mxu0 %v2881
        %2883 = vmatprep.subr.mxu0 0.0
        %v2884 = vand.u32 %v319, 4294901760
        %2885 = vmatpush1.msra.mxu0 %v2884
        %2886 = vmatprep.subr.mxu0 0.0
        %v2887 = vand.u32 %v320, 4294901760
        %2888 = vmatpush1.msra.mxu0 %v2887
        %2889 = vmatprep.subr.mxu0 0.0
        %v2890 = vand.u32 %v321, 4294901760
        %2891 = vmatpush1.msra.mxu0 %v2890
        %2892 = vmatprep.subr.mxu0 0.0
        %v2893 = vand.u32 %v322, 4294901760
        %2894 = vmatpush1.msra.mxu0 %v2893
        %2895 = vmatprep.subr.mxu0 0.0
        %v2896 = vand.u32 %v323, 4294901760
        %2897 = vmatpush1.msra.mxu0 %v2896
        %2898 = vmatprep.subr.mxu0 0.0
        %v2899 = vand.u32 %v324, 4294901760
        %2900 = vmatpush1.msra.mxu0 %v2899
        %2901 = vmatprep.subr.mxu0 0.0
        %v2902 = vand.u32 %v325, 4294901760
        %2903 = vmatpush1.msra.mxu0 %v2902
        %2904 = vmatprep.subr.mxu0 0.0
        %v2905 = vand.u32 %v326, 4294901760
        %2906 = vmatpush1.msra.mxu0 %v2905
        %2907 = vmatprep.subr.mxu0 0.0
        %v2908 = vand.u32 %v327, 4294901760
        %2909 = vmatpush1.msra.mxu0 %v2908
        %2910 = vmatprep.subr.mxu0 0.0
        %v2911 = vand.u32 %v328, 4294901760
        %2912 = vmatpush1.msra.mxu0 %v2911
        %2913 = vmatprep.subr.mxu0 0.0
        %v2914 = vand.u32 %v329, 4294901760
        %2915 = vmatpush1.msra.mxu0 %v2914
        %2916 = vmatprep.subr.mxu0 0.0
        %v2917 = vand.u32 %v330, 4294901760
        %2918 = vmatpush1.msra.mxu0 %v2917
        %2919 = vmatprep.subr.mxu0 0.0
        %v2920 = vand.u32 %v331, 4294901760
        %2921 = vmatpush1.msra.mxu0 %v2920
        %2922 = vmatprep.subr.mxu0 0.0
        %v2923 = vand.u32 %v332, 4294901760
        %2924 = vmatpush1.msra.mxu0 %v2923
        %2925 = vmatprep.subr.mxu0 0.0
        %v2926 = vand.u32 %v333, 4294901760
        %2927 = vmatpush1.msra.mxu0 %v2926
        %2928 = vmatprep.subr.mxu0 0.0
        %v2929 = vand.u32 %v334, 4294901760
        %2930 = vmatpush1.msra.mxu0 %v2929
        %2931 = vmatprep.subr.mxu0 0.0
        %v2932 = vand.u32 %v335, 4294901760
        %2933 = vmatpush1.msra.mxu0 %v2932
        %2934 = vmatprep.subr.mxu0 0.0
        %v2935 = vand.u32 %v336, 4294901760
        %2936 = vmatpush1.msra.mxu0 %v2935
        %2937 = vmatprep.subr.mxu0 0.0
        %v2938 = vand.u32 %v337, 4294901760
        %2939 = vmatpush1.msra.mxu0 %v2938
        %2940 = vmatprep.subr.mxu0 0.0
        %v2941 = vand.u32 %v338, 4294901760
        %2942 = vmatpush1.msra.mxu0 %v2941
        %2943 = vmatprep.subr.mxu0 0.0
        %v2944 = vand.u32 %v339, 4294901760
        %2945 = vmatpush1.msra.mxu0 %v2944
        %2946 = vmatprep.subr.mxu0 0.0
        %v2947 = vand.u32 %v340, 4294901760
        %2948 = vmatpush1.msra.mxu0 %v2947
        %2949 = vmatprep.subr.mxu0 0.0
        %v2950 = vand.u32 %v341, 4294901760
        %2951 = vmatpush1.msra.mxu0 %v2950
        %v2952 = vand.u32 %v243, 4294901760
        %2953 = vmatprep.mubr.f32.mxu0 %v2952
        %v2954 = vand.u32 %v242, 4294901760
        %2955 = vmatmul.mubr.f32.gmra.mrb[0].mxu0 %v2954
        %v2956 = vpop.f32.mrb[0].mxu0
        %v2957 = vadd.f32 %v2853, %v2956
        %v2958 = vpop.f32.mrb[0].mxu0
        %2959 = vdwg.mxu0
        %2960 = vmatprep.subr.mxu0 0.0
        %v2961 = vand.u32 %v342, 4294901760
        %2962 = vmatpush1.msra.mxu0 %v2961
        %2963 = vmatprep.subr.mxu0 0.0
        %v2964 = vand.u32 %v343, 4294901760
        %2965 = vmatpush1.msra.mxu0 %v2964
        %2966 = vmatprep.subr.mxu0 0.0
        %v2967 = vand.u32 %v344, 4294901760
        %2968 = vmatpush1.msra.mxu0 %v2967
        %2969 = vmatprep.subr.mxu0 0.0
        %v2970 = vand.u32 %v345, 4294901760
        %2971 = vmatpush1.msra.mxu0 %v2970
        %2972 = vmatprep.subr.mxu0 0.0
        %v2973 = vand.u32 %v346, 4294901760
        %2974 = vmatpush1.msra.mxu0 %v2973
        %2975 = vmatprep.subr.mxu0 0.0
        %v2976 = vand.u32 %v347, 4294901760
        %2977 = vmatpush1.msra.mxu0 %v2976
        %2978 = vmatprep.subr.mxu0 0.0
        %v2979 = vand.u32 %v348, 4294901760
        %2980 = vmatpush1.msra.mxu0 %v2979
        %2981 = vmatprep.subr.mxu0 0.0
        %v2982 = vand.u32 %v349, 4294901760
        %2983 = vmatpush1.msra.mxu0 %v2982
        %2984 = vmatprep.subr.mxu0 0.0
        %v2985 = vand.u32 %v350, 4294901760
        %2986 = vmatpush1.msra.mxu0 %v2985
        %2987 = vmatprep.subr.mxu0 0.0
        %v2988 = vand.u32 %v351, 4294901760
        %2989 = vmatpush1.msra.mxu0 %v2988
        %2990 = vmatprep.subr.mxu0 0.0
        %v2991 = vand.u32 %v352, 4294901760
        %2992 = vmatpush1.msra.mxu0 %v2991
        %2993 = vmatprep.subr.mxu0 0.0
        %v2994 = vand.u32 %v353, 4294901760
        %2995 = vmatpush1.msra.mxu0 %v2994
        %2996 = vmatprep.subr.mxu0 0.0
        %v2997 = vand.u32 %v354, 4294901760
        %2998 = vmatpush1.msra.mxu0 %v2997
        %2999 = vmatprep.subr.mxu0 0.0
        %v3000 = vand.u32 %v355, 4294901760
        %3001 = vmatpush1.msra.mxu0 %v3000
        %3002 = vmatprep.subr.mxu0 0.0
        %v3003 = vand.u32 %v356, 4294901760
        %3004 = vmatpush1.msra.mxu0 %v3003
        %3005 = vmatprep.subr.mxu0 0.0
        %v3006 = vand.u32 %v357, 4294901760
        %3007 = vmatpush1.msra.mxu0 %v3006
        %3008 = vmatprep.subr.mxu0 0.0
        %v3009 = vand.u32 %v358, 4294901760
        %3010 = vmatpush1.msra.mxu0 %v3009
        %3011 = vmatprep.subr.mxu0 0.0
        %v3012 = vand.u32 %v359, 4294901760
        %3013 = vmatpush1.msra.mxu0 %v3012
        %3014 = vmatprep.subr.mxu0 0.0
        %v3015 = vand.u32 %v360, 4294901760
        %3016 = vmatpush1.msra.mxu0 %v3015
        %3017 = vmatprep.subr.mxu0 0.0
        %v3018 = vand.u32 %v361, 4294901760
        %3019 = vmatpush1.msra.mxu0 %v3018
        %3020 = vmatprep.subr.mxu0 0.0
        %v3021 = vand.u32 %v362, 4294901760
        %3022 = vmatpush1.msra.mxu0 %v3021
        %3023 = vmatprep.subr.mxu0 0.0
        %v3024 = vand.u32 %v363, 4294901760
        %3025 = vmatpush1.msra.mxu0 %v3024
        %3026 = vmatprep.subr.mxu0 0.0
        %v3027 = vand.u32 %v364, 4294901760
        %3028 = vmatpush1.msra.mxu0 %v3027
        %3029 = vmatprep.subr.mxu0 0.0
        %v3030 = vand.u32 %v365, 4294901760
        %3031 = vmatpush1.msra.mxu0 %v3030
        %3032 = vmatprep.subr.mxu0 0.0
        %v3033 = vand.u32 %v366, 4294901760
        %3034 = vmatpush1.msra.mxu0 %v3033
        %3035 = vmatprep.subr.mxu0 0.0
        %v3036 = vand.u32 %v367, 4294901760
        %3037 = vmatpush1.msra.mxu0 %v3036
        %3038 = vmatprep.subr.mxu0 0.0
        %v3039 = vand.u32 %v368, 4294901760
        %3040 = vmatpush1.msra.mxu0 %v3039
        %3041 = vmatprep.subr.mxu0 0.0
        %v3042 = vand.u32 %v369, 4294901760
        %3043 = vmatpush1.msra.mxu0 %v3042
        %3044 = vmatprep.subr.mxu0 0.0
        %v3045 = vand.u32 %v370, 4294901760
        %3046 = vmatpush1.msra.mxu0 %v3045
        %3047 = vmatprep.subr.mxu0 0.0
        %v3048 = vand.u32 %v371, 4294901760
        %3049 = vmatpush1.msra.mxu0 %v3048
        %3050 = vmatprep.subr.mxu0 0.0
        %v3051 = vand.u32 %v372, 4294901760
        %3052 = vmatpush1.msra.mxu0 %v3051
        %3053 = vmatprep.subr.mxu0 0.0
        %v3054 = vand.u32 %v373, 4294901760
        %3055 = vmatpush1.msra.mxu0 %v3054
        %v3056 = vand.u32 %v245, 4294901760
        %v3057 = vsub.f32 %v245, %v3056
        %v3058 = vand.u32 %v3057, 4294901760
        %v3059 = vsub.f32 %v3057, %v3058
        %v3060 = vand.u32 %v3059, 4294901760
        %3061 = vmatprep.mubr.f32.mxu0 %v3060
        %v3062 = vand.u32 %v244, 4294901760
        %v3063 = vsub.f32 %v244, %v3062
        %v3064 = vand.u32 %v3063, 4294901760
        %v3065 = vsub.f32 %v3063, %v3064
        %v3066 = vand.u32 %v3065, 4294901760
        %3067 = vmatmul.mubr.f32.gmra.mrb[0].mxu0 %v3066
        %v3068 = vpop.f32.mrb[0].mxu0
        %v3069 = vadd.f32 %v2957, %v3068
        %v3070 = vpop.f32.mrb[0].mxu0
        %3071 = vdwg.mxu0
        %3072 = vmatprep.subr.mxu0 0.0
        %v3073 = vand.u32 %v342, 4294901760
        %v3074 = vsub.f32 %v342, %v3073
        %v3075 = vand.u32 %v3074, 4294901760
        %v3076 = vsub.f32 %v3074, %v3075
        %v3077 = vand.u32 %v3076, 4294901760
        %3078 = vmatpush1.msra.mxu0 %v3077
        %3079 = vmatprep.subr.mxu0 0.0
        %v3080 = vand.u32 %v343, 4294901760
        %v3081 = vsub.f32 %v343, %v3080
        %v3082 = vand.u32 %v3081, 4294901760
        %v3083 = vsub.f32 %v3081, %v3082
        %v3084 = vand.u32 %v3083, 4294901760
        %3085 = vmatpush1.msra.mxu0 %v3084
        %3086 = vmatprep.subr.mxu0 0.0
        %v3087 = vand.u32 %v344, 4294901760
        %v3088 = vsub.f32 %v344, %v3087
        %v3089 = vand.u32 %v3088, 4294901760
        %v3090 = vsub.f32 %v3088, %v3089
        %v3091 = vand.u32 %v3090, 4294901760
        %3092 = vmatpush1.msra.mxu0 %v3091
        %3093 = vmatprep.subr.mxu0 0.0
        %v3094 = vand.u32 %v345, 4294901760
        %v3095 = vsub.f32 %v345, %v3094
        %v3096 = vand.u32 %v3095, 4294901760
        %v3097 = vsub.f32 %v3095, %v3096
        %v3098 = vand.u32 %v3097, 4294901760
        %3099 = vmatpush1.msra.mxu0 %v3098
        %3100 = vmatprep.subr.mxu0 0.0
        %v3101 = vand.u32 %v346, 4294901760
        %v3102 = vsub.f32 %v346, %v3101
        %v3103 = vand.u32 %v3102, 4294901760
        %v3104 = vsub.f32 %v3102, %v3103
        %v3105 = vand.u32 %v3104, 4294901760
        %3106 = vmatpush1.msra.mxu0 %v3105
        %3107 = vmatprep.subr.mxu0 0.0
        %v3108 = vand.u32 %v347, 4294901760
        %v3109 = vsub.f32 %v347, %v3108
        %v3110 = vand.u32 %v3109, 4294901760
        %v3111 = vsub.f32 %v3109, %v3110
        %v3112 = vand.u32 %v3111, 4294901760
        %3113 = vmatpush1.msra.mxu0 %v3112
        %3114 = vmatprep.subr.mxu0 0.0
        %v3115 = vand.u32 %v348, 4294901760
        %v3116 = vsub.f32 %v348, %v3115
        %v3117 = vand.u32 %v3116, 4294901760
        %v3118 = vsub.f32 %v3116, %v3117
        %v3119 = vand.u32 %v3118, 4294901760
        %3120 = vmatpush1.msra.mxu0 %v3119
        %3121 = vmatprep.subr.mxu0 0.0
        %v3122 = vand.u32 %v349, 4294901760
        %v3123 = vsub.f32 %v349, %v3122
        %v3124 = vand.u32 %v3123, 4294901760
        %v3125 = vsub.f32 %v3123, %v3124
        %v3126 = vand.u32 %v3125, 4294901760
        %3127 = vmatpush1.msra.mxu0 %v3126
        %3128 = vmatprep.subr.mxu0 0.0
        %v3129 = vand.u32 %v350, 4294901760
        %v3130 = vsub.f32 %v350, %v3129
        %v3131 = vand.u32 %v3130, 4294901760
        %v3132 = vsub.f32 %v3130, %v3131
        %v3133 = vand.u32 %v3132, 4294901760
        %3134 = vmatpush1.msra.mxu0 %v3133
        %3135 = vmatprep.subr.mxu0 0.0
        %v3136 = vand.u32 %v351, 4294901760
        %v3137 = vsub.f32 %v351, %v3136
        %v3138 = vand.u32 %v3137, 4294901760
        %v3139 = vsub.f32 %v3137, %v3138
        %v3140 = vand.u32 %v3139, 4294901760
        %3141 = vmatpush1.msra.mxu0 %v3140
        %3142 = vmatprep.subr.mxu0 0.0
        %v3143 = vand.u32 %v352, 4294901760
        %v3144 = vsub.f32 %v352, %v3143
        %v3145 = vand.u32 %v3144, 4294901760
        %v3146 = vsub.f32 %v3144, %v3145
        %v3147 = vand.u32 %v3146, 4294901760
        %3148 = vmatpush1.msra.mxu0 %v3147
        %3149 = vmatprep.subr.mxu0 0.0
        %v3150 = vand.u32 %v353, 4294901760
        %v3151 = vsub.f32 %v353, %v3150
        %v3152 = vand.u32 %v3151, 4294901760
        %v3153 = vsub.f32 %v3151, %v3152
        %v3154 = vand.u32 %v3153, 4294901760
        %3155 = vmatpush1.msra.mxu0 %v3154
        %3156 = vmatprep.subr.mxu0 0.0
        %v3157 = vand.u32 %v354, 4294901760
        %v3158 = vsub.f32 %v354, %v3157
        %v3159 = vand.u32 %v3158, 4294901760
        %v3160 = vsub.f32 %v3158, %v3159
        %v3161 = vand.u32 %v3160, 4294901760
        %3162 = vmatpush1.msra.mxu0 %v3161
        %3163 = vmatprep.subr.mxu0 0.0
        %v3164 = vand.u32 %v355, 4294901760
        %v3165 = vsub.f32 %v355, %v3164
        %v3166 = vand.u32 %v3165, 4294901760
        %v3167 = vsub.f32 %v3165, %v3166
        %v3168 = vand.u32 %v3167, 4294901760
        %3169 = vmatpush1.msra.mxu0 %v3168
        %3170 = vmatprep.subr.mxu0 0.0
        %v3171 = vand.u32 %v356, 4294901760
        %v3172 = vsub.f32 %v356, %v3171
        %v3173 = vand.u32 %v3172, 4294901760
        %v3174 = vsub.f32 %v3172, %v3173
        %v3175 = vand.u32 %v3174, 4294901760
        %3176 = vmatpush1.msra.mxu0 %v3175
        %3177 = vmatprep.subr.mxu0 0.0
        %v3178 = vand.u32 %v357, 4294901760
        %v3179 = vsub.f32 %v357, %v3178
        %v3180 = vand.u32 %v3179, 4294901760
        %v3181 = vsub.f32 %v3179, %v3180
        %v3182 = vand.u32 %v3181, 4294901760
        %3183 = vmatpush1.msra.mxu0 %v3182
        %3184 = vmatprep.subr.mxu0 0.0
        %v3185 = vand.u32 %v358, 4294901760
        %v3186 = vsub.f32 %v358, %v3185
        %v3187 = vand.u32 %v3186, 4294901760
        %v3188 = vsub.f32 %v3186, %v3187
        %v3189 = vand.u32 %v3188, 4294901760
        %3190 = vmatpush1.msra.mxu0 %v3189
        %3191 = vmatprep.subr.mxu0 0.0
        %v3192 = vand.u32 %v359, 4294901760
        %v3193 = vsub.f32 %v359, %v3192
        %v3194 = vand.u32 %v3193, 4294901760
        %v3195 = vsub.f32 %v3193, %v3194
        %v3196 = vand.u32 %v3195, 4294901760
        %3197 = vmatpush1.msra.mxu0 %v3196
        %3198 = vmatprep.subr.mxu0 0.0
        %v3199 = vand.u32 %v360, 4294901760
        %v3200 = vsub.f32 %v360, %v3199
        %v3201 = vand.u32 %v3200, 4294901760
        %v3202 = vsub.f32 %v3200, %v3201
        %v3203 = vand.u32 %v3202, 4294901760
        %3204 = vmatpush1.msra.mxu0 %v3203
        %3205 = vmatprep.subr.mxu0 0.0
        %v3206 = vand.u32 %v361, 4294901760
        %v3207 = vsub.f32 %v361, %v3206
        %v3208 = vand.u32 %v3207, 4294901760
        %v3209 = vsub.f32 %v3207, %v3208
        %v3210 = vand.u32 %v3209, 4294901760
        %3211 = vmatpush1.msra.mxu0 %v3210
        %3212 = vmatprep.subr.mxu0 0.0
        %v3213 = vand.u32 %v362, 4294901760
        %v3214 = vsub.f32 %v362, %v3213
        %v3215 = vand.u32 %v3214, 4294901760
        %v3216 = vsub.f32 %v3214, %v3215
        %v3217 = vand.u32 %v3216, 4294901760
        %3218 = vmatpush1.msra.mxu0 %v3217
        %3219 = vmatprep.subr.mxu0 0.0
        %v3220 = vand.u32 %v363, 4294901760
        %v3221 = vsub.f32 %v363, %v3220
        %v3222 = vand.u32 %v3221, 4294901760
        %v3223 = vsub.f32 %v3221, %v3222
        %v3224 = vand.u32 %v3223, 4294901760
        %3225 = vmatpush1.msra.mxu0 %v3224
        %3226 = vmatprep.subr.mxu0 0.0
        %v3227 = vand.u32 %v364, 4294901760
        %v3228 = vsub.f32 %v364, %v3227
        %v3229 = vand.u32 %v3228, 4294901760
        %v3230 = vsub.f32 %v3228, %v3229
        %v3231 = vand.u32 %v3230, 4294901760
        %3232 = vmatpush1.msra.mxu0 %v3231
        %3233 = vmatprep.subr.mxu0 0.0
        %v3234 = vand.u32 %v365, 4294901760
        %v3235 = vsub.f32 %v365, %v3234
        %v3236 = vand.u32 %v3235, 4294901760
        %v3237 = vsub.f32 %v3235, %v3236
        %v3238 = vand.u32 %v3237, 4294901760
        %3239 = vmatpush1.msra.mxu0 %v3238
        %3240 = vmatprep.subr.mxu0 0.0
        %v3241 = vand.u32 %v366, 4294901760
        %v3242 = vsub.f32 %v366, %v3241
        %v3243 = vand.u32 %v3242, 4294901760
        %v3244 = vsub.f32 %v3242, %v3243
        %v3245 = vand.u32 %v3244, 4294901760
        %3246 = vmatpush1.msra.mxu0 %v3245
        %3247 = vmatprep.subr.mxu0 0.0
        %v3248 = vand.u32 %v367, 4294901760
        %v3249 = vsub.f32 %v367, %v3248
        %v3250 = vand.u32 %v3249, 4294901760
        %v3251 = vsub.f32 %v3249, %v3250
        %v3252 = vand.u32 %v3251, 4294901760
        %3253 = vmatpush1.msra.mxu0 %v3252
        %3254 = vmatprep.subr.mxu0 0.0
        %v3255 = vand.u32 %v368, 4294901760
        %v3256 = vsub.f32 %v368, %v3255
        %v3257 = vand.u32 %v3256, 4294901760
        %v3258 = vsub.f32 %v3256, %v3257
        %v3259 = vand.u32 %v3258, 4294901760
        %3260 = vmatpush1.msra.mxu0 %v3259
        %3261 = vmatprep.subr.mxu0 0.0
        %v3262 = vand.u32 %v369, 4294901760
        %v3263 = vsub.f32 %v369, %v3262
        %v3264 = vand.u32 %v3263, 4294901760
        %v3265 = vsub.f32 %v3263, %v3264
        %v3266 = vand.u32 %v3265, 4294901760
        %3267 = vmatpush1.msra.mxu0 %v3266
        %3268 = vmatprep.subr.mxu0 0.0
        %v3269 = vand.u32 %v370, 4294901760
        %v3270 = vsub.f32 %v370, %v3269
        %v3271 = vand.u32 %v3270, 4294901760
        %v3272 = vsub.f32 %v3270, %v3271
        %v3273 = vand.u32 %v3272, 4294901760
        %3274 = vmatpush1.msra.mxu0 %v3273
        %3275 = vmatprep.subr.mxu0 0.0
        %v3276 = vand.u32 %v371, 4294901760
        %v3277 = vsub.f32 %v371, %v3276
        %v3278 = vand.u32 %v3277, 4294901760
        %v3279 = vsub.f32 %v3277, %v3278
        %v3280 = vand.u32 %v3279, 4294901760
        %3281 = vmatpush1.msra.mxu0 %v3280
        %3282 = vmatprep.subr.mxu0 0.0
        %v3283 = vand.u32 %v372, 4294901760
        %v3284 = vsub.f32 %v372, %v3283
        %v3285 = vand.u32 %v3284, 4294901760
        %v3286 = vsub.f32 %v3284, %v3285
        %v3287 = vand.u32 %v3286, 4294901760
        %3288 = vmatpush1.msra.mxu0 %v3287
        %3289 = vmatprep.subr.mxu0 0.0
        %v3290 = vand.u32 %v373, 4294901760
        %v3291 = vsub.f32 %v373, %v3290
        %v3292 = vand.u32 %v3291, 4294901760
        %v3293 = vsub.f32 %v3291, %v3292
        %v3294 = vand.u32 %v3293, 4294901760
        %3295 = vmatpush1.msra.mxu0 %v3294
        %v3296 = vand.u32 %v245, 4294901760
        %3297 = vmatprep.mubr.f32.mxu0 %v3296
        %v3298 = vand.u32 %v244, 4294901760
        %3299 = vmatmul.mubr.f32.gmra.mrb[0].mxu0 %v3298
        %v3300 = vpop.f32.mrb[0].mxu0
        %v3301 = vadd.f32 %v3069, %v3300
        %v3302 = vpop.f32.mrb[0].mxu0
        %3303 = vdwg.mxu0
        %3304 = vmatprep.subr.mxu0 0.0
        %v3305 = vand.u32 %v342, 4294901760
        %v3306 = vsub.f32 %v342, %v3305
        %3307 = vmatpush1.msra.mxu0 %v3306
        %3308 = vmatprep.subr.mxu0 0.0
        %v3309 = vand.u32 %v343, 4294901760
        %v3310 = vsub.f32 %v343, %v3309
        %3311 = vmatpush1.msra.mxu0 %v3310
        %3312 = vmatprep.subr.mxu0 0.0
        %v3313 = vand.u32 %v344, 4294901760
        %v3314 = vsub.f32 %v344, %v3313
        %3315 = vmatpush1.msra.mxu0 %v3314
        %3316 = vmatprep.subr.mxu0 0.0
        %v3317 = vand.u32 %v345, 4294901760
        %v3318 = vsub.f32 %v345, %v3317
        %3319 = vmatpush1.msra.mxu0 %v3318
        %3320 = vmatprep.subr.mxu0 0.0
        %v3321 = vand.u32 %v346, 4294901760
        %v3322 = vsub.f32 %v346, %v3321
        %3323 = vmatpush1.msra.mxu0 %v3322
        %3324 = vmatprep.subr.mxu0 0.0
        %v3325 = vand.u32 %v347, 4294901760
        %v3326 = vsub.f32 %v347, %v3325
        %3327 = vmatpush1.msra.mxu0 %v3326
        %3328 = vmatprep.subr.mxu0 0.0
        %v3329 = vand.u32 %v348, 4294901760
        %v3330 = vsub.f32 %v348, %v3329
        %3331 = vmatpush1.msra.mxu0 %v3330
        %3332 = vmatprep.subr.mxu0 0.0
        %v3333 = vand.u32 %v349, 4294901760
        %v3334 = vsub.f32 %v349, %v3333
        %3335 = vmatpush1.msra.mxu0 %v3334
        %3336 = vmatprep.subr.mxu0 0.0
        %v3337 = vand.u32 %v350, 4294901760
        %v3338 = vsub.f32 %v350, %v3337
        %3339 = vmatpush1.msra.mxu0 %v3338
        %3340 = vmatprep.subr.mxu0 0.0
        %v3341 = vand.u32 %v351, 4294901760
        %v3342 = vsub.f32 %v351, %v3341
        %3343 = vmatpush1.msra.mxu0 %v3342
        %3344 = vmatprep.subr.mxu0 0.0
        %v3345 = vand.u32 %v352, 4294901760
        %v3346 = vsub.f32 %v352, %v3345
        %3347 = vmatpush1.msra.mxu0 %v3346
        %3348 = vmatprep.subr.mxu0 0.0
        %v3349 = vand.u32 %v353, 4294901760
        %v3350 = vsub.f32 %v353, %v3349
        %3351 = vmatpush1.msra.mxu0 %v3350
        %3352 = vmatprep.subr.mxu0 0.0
        %v3353 = vand.u32 %v354, 4294901760
        %v3354 = vsub.f32 %v354, %v3353
        %3355 = vmatpush1.msra.mxu0 %v3354
        %3356 = vmatprep.subr.mxu0 0.0
        %v3357 = vand.u32 %v355, 4294901760
        %v3358 = vsub.f32 %v355, %v3357
        %3359 = vmatpush1.msra.mxu0 %v3358
        %3360 = vmatprep.subr.mxu0 0.0
        %v3361 = vand.u32 %v356, 4294901760
        %v3362 = vsub.f32 %v356, %v3361
        %3363 = vmatpush1.msra.mxu0 %v3362
        %3364 = vmatprep.subr.mxu0 0.0
        %v3365 = vand.u32 %v357, 4294901760
        %v3366 = vsub.f32 %v357, %v3365
        %3367 = vmatpush1.msra.mxu0 %v3366
        %3368 = vmatprep.subr.mxu0 0.0
        %v3369 = vand.u32 %v358, 4294901760
        %v3370 = vsub.f32 %v358, %v3369
        %3371 = vmatpush1.msra.mxu0 %v3370
        %3372 = vmatprep.subr.mxu0 0.0
        %v3373 = vand.u32 %v359, 4294901760
        %v3374 = vsub.f32 %v359, %v3373
        %3375 = vmatpush1.msra.mxu0 %v3374
        %3376 = vmatprep.subr.mxu0 0.0
        %v3377 = vand.u32 %v360, 4294901760
        %v3378 = vsub.f32 %v360, %v3377
        %3379 = vmatpush1.msra.mxu0 %v3378
        %3380 = vmatprep.subr.mxu0 0.0
        %v3381 = vand.u32 %v361, 4294901760
        %v3382 = vsub.f32 %v361, %v3381
        %3383 = vmatpush1.msra.mxu0 %v3382
        %3384 = vmatprep.subr.mxu0 0.0
        %v3385 = vand.u32 %v362, 4294901760
        %v3386 = vsub.f32 %v362, %v3385
        %3387 = vmatpush1.msra.mxu0 %v3386
        %3388 = vmatprep.subr.mxu0 0.0
        %v3389 = vand.u32 %v363, 4294901760
        %v3390 = vsub.f32 %v363, %v3389
        %3391 = vmatpush1.msra.mxu0 %v3390
        %3392 = vmatprep.subr.mxu0 0.0
        %v3393 = vand.u32 %v364, 4294901760
        %v3394 = vsub.f32 %v364, %v3393
        %3395 = vmatpush1.msra.mxu0 %v3394
        %3396 = vmatprep.subr.mxu0 0.0
        %v3397 = vand.u32 %v365, 4294901760
        %v3398 = vsub.f32 %v365, %v3397
        %3399 = vmatpush1.msra.mxu0 %v3398
        %3400 = vmatprep.subr.mxu0 0.0
        %v3401 = vand.u32 %v366, 4294901760
        %v3402 = vsub.f32 %v366, %v3401
        %3403 = vmatpush1.msra.mxu0 %v3402
        %3404 = vmatprep.subr.mxu0 0.0
        %v3405 = vand.u32 %v367, 4294901760
        %v3406 = vsub.f32 %v367, %v3405
        %3407 = vmatpush1.msra.mxu0 %v3406
        %3408 = vmatprep.subr.mxu0 0.0
        %v3409 = vand.u32 %v368, 4294901760
        %v3410 = vsub.f32 %v368, %v3409
        %3411 = vmatpush1.msra.mxu0 %v3410
        %3412 = vmatprep.subr.mxu0 0.0
        %v3413 = vand.u32 %v369, 4294901760
        %v3414 = vsub.f32 %v369, %v3413
        %3415 = vmatpush1.msra.mxu0 %v3414
        %3416 = vmatprep.subr.mxu0 0.0
        %v3417 = vand.u32 %v370, 4294901760
        %v3418 = vsub.f32 %v370, %v3417
        %3419 = vmatpush1.msra.mxu0 %v3418
        %3420 = vmatprep.subr.mxu0 0.0
        %v3421 = vand.u32 %v371, 4294901760
        %v3422 = vsub.f32 %v371, %v3421
        %3423 = vmatpush1.msra.mxu0 %v3422
        %3424 = vmatprep.subr.mxu0 0.0
        %v3425 = vand.u32 %v372, 4294901760
        %v3426 = vsub.f32 %v372, %v3425
        %3427 = vmatpush1.msra.mxu0 %v3426
        %3428 = vmatprep.subr.mxu0 0.0
        %v3429 = vand.u32 %v373, 4294901760
        %v3430 = vsub.f32 %v373, %v3429
        %3431 = vmatpush1.msra.mxu0 %v3430
        %v3432 = vand.u32 %v245, 4294901760
        %v3433 = vsub.f32 %v245, %v3432
        %3434 = vmatprep.mubr.f32.mxu0 %v3433
        %v3435 = vand.u32 %v244, 4294901760
        %v3436 = vsub.f32 %v244, %v3435
        %3437 = vmatmul.mubr.f32.gmra.mrb[0].mxu0 %v3436
        %v3438 = vpop.f32.mrb[0].mxu0
        %v3439 = vadd.f32 %v3301, %v3438
        %v3440 = vpop.f32.mrb[0].mxu0
        %3441 = vdwg.mxu0
        %3442 = vmatprep.subr.mxu0 0.0
        %v3443 = vand.u32 %v342, 4294901760
        %3444 = vmatpush1.msra.mxu0 %v3443
        %3445 = vmatprep.subr.mxu0 0.0
        %v3446 = vand.u32 %v343, 4294901760
        %3447 = vmatpush1.msra.mxu0 %v3446
        %3448 = vmatprep.subr.mxu0 0.0
        %v3449 = vand.u32 %v344, 4294901760
        %3450 = vmatpush1.msra.mxu0 %v3449
        %3451 = vmatprep.subr.mxu0 0.0
        %v3452 = vand.u32 %v345, 4294901760
        %3453 = vmatpush1.msra.mxu0 %v3452
        %3454 = vmatprep.subr.mxu0 0.0
        %v3455 = vand.u32 %v346, 4294901760
        %3456 = vmatpush1.msra.mxu0 %v3455
        %3457 = vmatprep.subr.mxu0 0.0
        %v3458 = vand.u32 %v347, 4294901760
        %3459 = vmatpush1.msra.mxu0 %v3458
        %3460 = vmatprep.subr.mxu0 0.0
        %v3461 = vand.u32 %v348, 4294901760
        %3462 = vmatpush1.msra.mxu0 %v3461
        %3463 = vmatprep.subr.mxu0 0.0
        %v3464 = vand.u32 %v349, 4294901760
        %3465 = vmatpush1.msra.mxu0 %v3464
        %3466 = vmatprep.subr.mxu0 0.0
        %v3467 = vand.u32 %v350, 4294901760
        %3468 = vmatpush1.msra.mxu0 %v3467
        %3469 = vmatprep.subr.mxu0 0.0
        %v3470 = vand.u32 %v351, 4294901760
        %3471 = vmatpush1.msra.mxu0 %v3470
        %3472 = vmatprep.subr.mxu0 0.0
        %v3473 = vand.u32 %v352, 4294901760
        %3474 = vmatpush1.msra.mxu0 %v3473
        %3475 = vmatprep.subr.mxu0 0.0
        %v3476 = vand.u32 %v353, 4294901760
        %3477 = vmatpush1.msra.mxu0 %v3476
        %3478 = vmatprep.subr.mxu0 0.0
        %v3479 = vand.u32 %v354, 4294901760
        %3480 = vmatpush1.msra.mxu0 %v3479
        %3481 = vmatprep.subr.mxu0 0.0
        %v3482 = vand.u32 %v355, 4294901760
        %3483 = vmatpush1.msra.mxu0 %v3482
        %3484 = vmatprep.subr.mxu0 0.0
        %v3485 = vand.u32 %v356, 4294901760
        %3486 = vmatpush1.msra.mxu0 %v3485
        %3487 = vmatprep.subr.mxu0 0.0
        %v3488 = vand.u32 %v357, 4294901760
        %3489 = vmatpush1.msra.mxu0 %v3488
        %3490 = vmatprep.subr.mxu0 0.0
        %v3491 = vand.u32 %v358, 4294901760
        %3492 = vmatpush1.msra.mxu0 %v3491
        %3493 = vmatprep.subr.mxu0 0.0
        %v3494 = vand.u32 %v359, 4294901760
        %3495 = vmatpush1.msra.mxu0 %v3494
        %3496 = vmatprep.subr.mxu0 0.0
        %v3497 = vand.u32 %v360, 4294901760
        %3498 = vmatpush1.msra.mxu0 %v3497
        %3499 = vmatprep.subr.mxu0 0.0
        %v3500 = vand.u32 %v361, 4294901760
        %3501 = vmatpush1.msra.mxu0 %v3500
        %3502 = vmatprep.subr.mxu0 0.0
        %v3503 = vand.u32 %v362, 4294901760
        %3504 = vmatpush1.msra.mxu0 %v3503
        %3505 = vmatprep.subr.mxu0 0.0
        %v3506 = vand.u32 %v363, 4294901760
        %3507 = vmatpush1.msra.mxu0 %v3506
        %3508 = vmatprep.subr.mxu0 0.0
        %v3509 = vand.u32 %v364, 4294901760
        %3510 = vmatpush1.msra.mxu0 %v3509
        %3511 = vmatprep.subr.mxu0 0.0
        %v3512 = vand.u32 %v365, 4294901760
        %3513 = vmatpush1.msra.mxu0 %v3512
        %3514 = vmatprep.subr.mxu0 0.0
        %v3515 = vand.u32 %v366, 4294901760
        %3516 = vmatpush1.msra.mxu0 %v3515
        %3517 = vmatprep.subr.mxu0 0.0
        %v3518 = vand.u32 %v367, 4294901760
        %3519 = vmatpush1.msra.mxu0 %v3518
        %3520 = vmatprep.subr.mxu0 0.0
        %v3521 = vand.u32 %v368, 4294901760
        %3522 = vmatpush1.msra.mxu0 %v3521
        %3523 = vmatprep.subr.mxu0 0.0
        %v3524 = vand.u32 %v369, 4294901760
        %3525 = vmatpush1.msra.mxu0 %v3524
        %3526 = vmatprep.subr.mxu0 0.0
        %v3527 = vand.u32 %v370, 4294901760
        %3528 = vmatpush1.msra.mxu0 %v3527
        %3529 = vmatprep.subr.mxu0 0.0
        %v3530 = vand.u32 %v371, 4294901760
        %3531 = vmatpush1.msra.mxu0 %v3530
        %3532 = vmatprep.subr.mxu0 0.0
        %v3533 = vand.u32 %v372, 4294901760
        %3534 = vmatpush1.msra.mxu0 %v3533
        %3535 = vmatprep.subr.mxu0 0.0
        %v3536 = vand.u32 %v373, 4294901760
        %3537 = vmatpush1.msra.mxu0 %v3536
        %v3538 = vand.u32 %v245, 4294901760
        %v3539 = vsub.f32 %v245, %v3538
        %v3540 = vand.u32 %v3539, 4294901760
        %3541 = vmatprep.mubr.f32.mxu0 %v3540
        %v3542 = vand.u32 %v244, 4294901760
        %v3543 = vsub.f32 %v244, %v3542
        %v3544 = vand.u32 %v3543, 4294901760
        %3545 = vmatmul.mubr.f32.gmra.mrb[0].mxu0 %v3544
        %v3546 = vpop.f32.mrb[0].mxu0
        %v3547 = vadd.f32 %v3439, %v3546
        %v3548 = vpop.f32.mrb[0].mxu0
        %3549 = vdwg.mxu0
        %3550 = vmatprep.subr.mxu0 0.0
        %v3551 = vand.u32 %v342, 4294901760
        %v3552 = vsub.f32 %v342, %v3551
        %v3553 = vand.u32 %v3552, 4294901760
        %3554 = vmatpush1.msra.mxu0 %v3553
        %3555 = vmatprep.subr.mxu0 0.0
        %v3556 = vand.u32 %v343, 4294901760
        %v3557 = vsub.f32 %v343, %v3556
        %v3558 = vand.u32 %v3557, 4294901760
        %3559 = vmatpush1.msra.mxu0 %v3558
        %3560 = vmatprep.subr.mxu0 0.0
        %v3561 = vand.u32 %v344, 4294901760
        %v3562 = vsub.f32 %v344, %v3561
        %v3563 = vand.u32 %v3562, 4294901760
        %3564 = vmatpush1.msra.mxu0 %v3563
        %3565 = vmatprep.subr.mxu0 0.0
        %v3566 = vand.u32 %v345, 4294901760
        %v3567 = vsub.f32 %v345, %v3566
        %v3568 = vand.u32 %v3567, 4294901760
        %3569 = vmatpush1.msra.mxu0 %v3568
        %3570 = vmatprep.subr.mxu0 0.0
        %v3571 = vand.u32 %v346, 4294901760
        %v3572 = vsub.f32 %v346, %v3571
        %v3573 = vand.u32 %v3572, 4294901760
        %3574 = vmatpush1.msra.mxu0 %v3573
        %3575 = vmatprep.subr.mxu0 0.0
        %v3576 = vand.u32 %v347, 4294901760
        %v3577 = vsub.f32 %v347, %v3576
        %v3578 = vand.u32 %v3577, 4294901760
        %3579 = vmatpush1.msra.mxu0 %v3578
        %3580 = vmatprep.subr.mxu0 0.0
        %v3581 = vand.u32 %v348, 4294901760
        %v3582 = vsub.f32 %v348, %v3581
        %v3583 = vand.u32 %v3582, 4294901760
        %3584 = vmatpush1.msra.mxu0 %v3583
        %3585 = vmatprep.subr.mxu0 0.0
        %v3586 = vand.u32 %v349, 4294901760
        %v3587 = vsub.f32 %v349, %v3586
        %v3588 = vand.u32 %v3587, 4294901760
        %3589 = vmatpush1.msra.mxu0 %v3588
        %3590 = vmatprep.subr.mxu0 0.0
        %v3591 = vand.u32 %v350, 4294901760
        %v3592 = vsub.f32 %v350, %v3591
        %v3593 = vand.u32 %v3592, 4294901760
        %3594 = vmatpush1.msra.mxu0 %v3593
        %3595 = vmatprep.subr.mxu0 0.0
        %v3596 = vand.u32 %v351, 4294901760
        %v3597 = vsub.f32 %v351, %v3596
        %v3598 = vand.u32 %v3597, 4294901760
        %3599 = vmatpush1.msra.mxu0 %v3598
        %3600 = vmatprep.subr.mxu0 0.0
        %v3601 = vand.u32 %v352, 4294901760
        %v3602 = vsub.f32 %v352, %v3601
        %v3603 = vand.u32 %v3602, 4294901760
        %3604 = vmatpush1.msra.mxu0 %v3603
        %3605 = vmatprep.subr.mxu0 0.0
        %v3606 = vand.u32 %v353, 4294901760
        %v3607 = vsub.f32 %v353, %v3606
        %v3608 = vand.u32 %v3607, 4294901760
        %3609 = vmatpush1.msra.mxu0 %v3608
        %3610 = vmatprep.subr.mxu0 0.0
        %v3611 = vand.u32 %v354, 4294901760
        %v3612 = vsub.f32 %v354, %v3611
        %v3613 = vand.u32 %v3612, 4294901760
        %3614 = vmatpush1.msra.mxu0 %v3613
        %3615 = vmatprep.subr.mxu0 0.0
        %v3616 = vand.u32 %v355, 4294901760
        %v3617 = vsub.f32 %v355, %v3616
        %v3618 = vand.u32 %v3617, 4294901760
        %3619 = vmatpush1.msra.mxu0 %v3618
        %3620 = vmatprep.subr.mxu0 0.0
        %v3621 = vand.u32 %v356, 4294901760
        %v3622 = vsub.f32 %v356, %v3621
        %v3623 = vand.u32 %v3622, 4294901760
        %3624 = vmatpush1.msra.mxu0 %v3623
        %3625 = vmatprep.subr.mxu0 0.0
        %v3626 = vand.u32 %v357, 4294901760
        %v3627 = vsub.f32 %v357, %v3626
        %v3628 = vand.u32 %v3627, 4294901760
        %3629 = vmatpush1.msra.mxu0 %v3628
        %3630 = vmatprep.subr.mxu0 0.0
        %v3631 = vand.u32 %v358, 4294901760
        %v3632 = vsub.f32 %v358, %v3631
        %v3633 = vand.u32 %v3632, 4294901760
        %3634 = vmatpush1.msra.mxu0 %v3633
        %3635 = vmatprep.subr.mxu0 0.0
        %v3636 = vand.u32 %v359, 4294901760
        %v3637 = vsub.f32 %v359, %v3636
        %v3638 = vand.u32 %v3637, 4294901760
        %3639 = vmatpush1.msra.mxu0 %v3638
        %3640 = vmatprep.subr.mxu0 0.0
        %v3641 = vand.u32 %v360, 4294901760
        %v3642 = vsub.f32 %v360, %v3641
        %v3643 = vand.u32 %v3642, 4294901760
        %3644 = vmatpush1.msra.mxu0 %v3643
        %3645 = vmatprep.subr.mxu0 0.0
        %v3646 = vand.u32 %v361, 4294901760
        %v3647 = vsub.f32 %v361, %v3646
        %v3648 = vand.u32 %v3647, 4294901760
        %3649 = vmatpush1.msra.mxu0 %v3648
        %3650 = vmatprep.subr.mxu0 0.0
        %v3651 = vand.u32 %v362, 4294901760
        %v3652 = vsub.f32 %v362, %v3651
        %v3653 = vand.u32 %v3652, 4294901760
        %3654 = vmatpush1.msra.mxu0 %v3653
        %3655 = vmatprep.subr.mxu0 0.0
        %v3656 = vand.u32 %v363, 4294901760
        %v3657 = vsub.f32 %v363, %v3656
        %v3658 = vand.u32 %v3657, 4294901760
        %3659 = vmatpush1.msra.mxu0 %v3658
        %3660 = vmatprep.subr.mxu0 0.0
        %v3661 = vand.u32 %v364, 4294901760
        %v3662 = vsub.f32 %v364, %v3661
        %v3663 = vand.u32 %v3662, 4294901760
        %3664 = vmatpush1.msra.mxu0 %v3663
        %3665 = vmatprep.subr.mxu0 0.0
        %v3666 = vand.u32 %v365, 4294901760
        %v3667 = vsub.f32 %v365, %v3666
        %v3668 = vand.u32 %v3667, 4294901760
        %3669 = vmatpush1.msra.mxu0 %v3668
        %3670 = vmatprep.subr.mxu0 0.0
        %v3671 = vand.u32 %v366, 4294901760
        %v3672 = vsub.f32 %v366, %v3671
        %v3673 = vand.u32 %v3672, 4294901760
        %3674 = vmatpush1.msra.mxu0 %v3673
        %3675 = vmatprep.subr.mxu0 0.0
        %v3676 = vand.u32 %v367, 4294901760
        %v3677 = vsub.f32 %v367, %v3676
        %v3678 = vand.u32 %v3677, 4294901760
        %3679 = vmatpush1.msra.mxu0 %v3678
        %3680 = vmatprep.subr.mxu0 0.0
        %v3681 = vand.u32 %v368, 4294901760
        %v3682 = vsub.f32 %v368, %v3681
        %v3683 = vand.u32 %v3682, 4294901760
        %3684 = vmatpush1.msra.mxu0 %v3683
        %3685 = vmatprep.subr.mxu0 0.0
        %v3686 = vand.u32 %v369, 4294901760
        %v3687 = vsub.f32 %v369, %v3686
        %v3688 = vand.u32 %v3687, 4294901760
        %3689 = vmatpush1.msra.mxu0 %v3688
        %3690 = vmatprep.subr.mxu0 0.0
        %v3691 = vand.u32 %v370, 4294901760
        %v3692 = vsub.f32 %v370, %v3691
        %v3693 = vand.u32 %v3692, 4294901760
        %3694 = vmatpush1.msra.mxu0 %v3693
        %3695 = vmatprep.subr.mxu0 0.0
        %v3696 = vand.u32 %v371, 4294901760
        %v3697 = vsub.f32 %v371, %v3696
        %v3698 = vand.u32 %v3697, 4294901760
        %3699 = vmatpush1.msra.mxu0 %v3698
        %3700 = vmatprep.subr.mxu0 0.0
        %v3701 = vand.u32 %v372, 4294901760
        %v3702 = vsub.f32 %v372, %v3701
        %v3703 = vand.u32 %v3702, 4294901760
        %3704 = vmatpush1.msra.mxu0 %v3703
        %3705 = vmatprep.subr.mxu0 0.0
        %v3706 = vand.u32 %v373, 4294901760
        %v3707 = vsub.f32 %v373, %v3706
        %v3708 = vand.u32 %v3707, 4294901760
        %3709 = vmatpush1.msra.mxu0 %v3708
        %v3710 = vand.u32 %v245, 4294901760
        %3711 = vmatprep.mubr.f32.mxu0 %v3710
        %v3712 = vand.u32 %v244, 4294901760
        %3713 = vmatmul.mubr.f32.gmra.mrb[0].mxu0 %v3712
        %v3714 = vpop.f32.mrb[0].mxu0
        %v3715 = vadd.f32 %v3547, %v3714
        %v3716 = vpop.f32.mrb[0].mxu0
        %3717 = vdwg.mxu0
        %3718 = vmatprep.subr.mxu0 0.0
        %v3719 = vand.u32 %v342, 4294901760
        %3720 = vmatpush1.msra.mxu0 %v3719
        %3721 = vmatprep.subr.mxu0 0.0
        %v3722 = vand.u32 %v343, 4294901760
        %3723 = vmatpush1.msra.mxu0 %v3722
        %3724 = vmatprep.subr.mxu0 0.0
        %v3725 = vand.u32 %v344, 4294901760
        %3726 = vmatpush1.msra.mxu0 %v3725
        %3727 = vmatprep.subr.mxu0 0.0
        %v3728 = vand.u32 %v345, 4294901760
        %3729 = vmatpush1.msra.mxu0 %v3728
        %3730 = vmatprep.subr.mxu0 0.0
        %v3731 = vand.u32 %v346, 4294901760
        %3732 = vmatpush1.msra.mxu0 %v3731
        %3733 = vmatprep.subr.mxu0 0.0
        %v3734 = vand.u32 %v347, 4294901760
        %3735 = vmatpush1.msra.mxu0 %v3734
        %3736 = vmatprep.subr.mxu0 0.0
        %v3737 = vand.u32 %v348, 4294901760
        %3738 = vmatpush1.msra.mxu0 %v3737
        %3739 = vmatprep.subr.mxu0 0.0
        %v3740 = vand.u32 %v349, 4294901760
        %3741 = vmatpush1.msra.mxu0 %v3740
        %3742 = vmatprep.subr.mxu0 0.0
        %v3743 = vand.u32 %v350, 4294901760
        %3744 = vmatpush1.msra.mxu0 %v3743
        %3745 = vmatprep.subr.mxu0 0.0
        %v3746 = vand.u32 %v351, 4294901760
        %3747 = vmatpush1.msra.mxu0 %v3746
        %3748 = vmatprep.subr.mxu0 0.0
        %v3749 = vand.u32 %v352, 4294901760
        %3750 = vmatpush1.msra.mxu0 %v3749
        %3751 = vmatprep.subr.mxu0 0.0
        %v3752 = vand.u32 %v353, 4294901760
        %3753 = vmatpush1.msra.mxu0 %v3752
        %3754 = vmatprep.subr.mxu0 0.0
        %v3755 = vand.u32 %v354, 4294901760
        %3756 = vmatpush1.msra.mxu0 %v3755
        %3757 = vmatprep.subr.mxu0 0.0
        %v3758 = vand.u32 %v355, 4294901760
        %3759 = vmatpush1.msra.mxu0 %v3758
        %3760 = vmatprep.subr.mxu0 0.0
        %v3761 = vand.u32 %v356, 4294901760
        %3762 = vmatpush1.msra.mxu0 %v3761
        %3763 = vmatprep.subr.mxu0 0.0
        %v3764 = vand.u32 %v357, 4294901760
        %3765 = vmatpush1.msra.mxu0 %v3764
        %3766 = vmatprep.subr.mxu0 0.0
        %v3767 = vand.u32 %v358, 4294901760
        %3768 = vmatpush1.msra.mxu0 %v3767
        %3769 = vmatprep.subr.mxu0 0.0
        %v3770 = vand.u32 %v359, 4294901760
        %3771 = vmatpush1.msra.mxu0 %v3770
        %3772 = vmatprep.subr.mxu0 0.0
        %v3773 = vand.u32 %v360, 4294901760
        %3774 = vmatpush1.msra.mxu0 %v3773
        %3775 = vmatprep.subr.mxu0 0.0
        %v3776 = vand.u32 %v361, 4294901760
        %3777 = vmatpush1.msra.mxu0 %v3776
        %3778 = vmatprep.subr.mxu0 0.0
        %v3779 = vand.u32 %v362, 4294901760
        %3780 = vmatpush1.msra.mxu0 %v3779
        %3781 = vmatprep.subr.mxu0 0.0
        %v3782 = vand.u32 %v363, 4294901760
        %3783 = vmatpush1.msra.mxu0 %v3782
        %3784 = vmatprep.subr.mxu0 0.0
        %v3785 = vand.u32 %v364, 4294901760
        %3786 = vmatpush1.msra.mxu0 %v3785
        %3787 = vmatprep.subr.mxu0 0.0
        %v3788 = vand.u32 %v365, 4294901760
        %3789 = vmatpush1.msra.mxu0 %v3788
        %3790 = vmatprep.subr.mxu0 0.0
        %v3791 = vand.u32 %v366, 4294901760
        %3792 = vmatpush1.msra.mxu0 %v3791
        %3793 = vmatprep.subr.mxu0 0.0
        %v3794 = vand.u32 %v367, 4294901760
        %3795 = vmatpush1.msra.mxu0 %v3794
        %3796 = vmatprep.subr.mxu0 0.0
        %v3797 = vand.u32 %v368, 4294901760
        %3798 = vmatpush1.msra.mxu0 %v3797
        %3799 = vmatprep.subr.mxu0 0.0
        %v3800 = vand.u32 %v369, 4294901760
        %3801 = vmatpush1.msra.mxu0 %v3800
        %3802 = vmatprep.subr.mxu0 0.0
        %v3803 = vand.u32 %v370, 4294901760
        %3804 = vmatpush1.msra.mxu0 %v3803
        %3805 = vmatprep.subr.mxu0 0.0
        %v3806 = vand.u32 %v371, 4294901760
        %3807 = vmatpush1.msra.mxu0 %v3806
        %3808 = vmatprep.subr.mxu0 0.0
        %v3809 = vand.u32 %v372, 4294901760
        %3810 = vmatpush1.msra.mxu0 %v3809
        %3811 = vmatprep.subr.mxu0 0.0
        %v3812 = vand.u32 %v373, 4294901760
        %3813 = vmatpush1.msra.mxu0 %v3812
        %v3814 = vand.u32 %v245, 4294901760
        %3815 = vmatprep.mubr.f32.mxu0 %v3814
        %v3816 = vand.u32 %v244, 4294901760
        %3817 = vmatmul.mubr.f32.gmra.mrb[0].mxu0 %v3816
        %v3818 = vpop.f32.mrb[0].mxu0
        %v3819 = vadd.f32 %v3715, %v3818
        %v3820 = vpop.f32.mrb[0].mxu0
        %3821 = vdwg.mxu0
        %v3822 = vld [vmem:[%s197] sm:$0xff]
        %v3823 = vmul.f32 %v3819, %v3822
        %3824 = vst [vmem:[%s237] sm:$0xff] %v3823
        %s3825 = sand.u32 %s104, 1
        %s3826 = scalar_lea.sflag [#allocation4], %s3825
        %s3827 = sand.u32 %s104, 1
        %s3828 = smul.addr %s3827, 8
        %s3829 = scalar_lea.vmem [#allocation8], %s3828
        // Predicated region
        $region45: #{tpu_custom_call.1} parent=31 // pred_check
          %p3830 = pneg %p114
        $region46: #{tpu_custom_call.1} parent=31 // pred_check_branch
          %3832 = sbr.rel (%p3830) target = $region48
        $region47: #{tpu_custom_call.1} parent=31 // pred_region
          %s3834 = ssub.s32 128, 128
          %3835 = vsyncadd %s3826, %s3834
          %s3836 = smul.addr %s23, 128
          %s3837 = scalar_lea.hbm %s3, %s3836
          %s3839 = sshll.u32 %s3829, 4
          %s3840 = int_to_ptr.vmem [resolvable:$true] %s3839
          %3842 = dma.vmem_to_hbm [thread:$0]  %s3840, 128, %s3837, %s3826
        $region48: #{tpu_custom_call.1} parent=31 // pred_fallthru
          _
      $region32: #{tpu_custom_call.1} parent=5 // pred_fallthru
        _
      %p3843 = scmp.le.s32.totalorder 2, %s18
      // Predicated region
      $region49: #{tpu_custom_call.1} parent=5 // pred_check
        %p3844 = pneg %p3843
      $region50: #{tpu_custom_call.1} parent=5 // pred_check_branch
        %3846 = sbr.rel (%p3844) target = $region52
      $region51: #{tpu_custom_call.1} parent=5 // pred_region
        %s3847 = ssub.s32 %s18, 2
        // Predicated region
        $region53: #{tpu_custom_call.1} parent=51 // pred_check
          %p3848 = pneg %p120
        $region54: #{tpu_custom_call.1} parent=51 // pred_check_branch
          %3850 = sbr.rel (%p3848) target = $region56
        $region55: #{tpu_custom_call.1} parent=51 // pred_region
          %s3851 = sand.u32 %s105, 1
          %s3852 = scalar_lea.sflag [#allocation4], %s3851
          %s3853 = sand.u32 %s105, 1
          %s3854 = smul.addr %s3853, 8
          %s3855 = scalar_lea.vmem [#allocation8], %s3854
          %3856 = dma.done %s3852, 128
        $region56: #{tpu_custom_call.1} parent=51 // pred_fallthru
          _
      $region52: #{tpu_custom_call.1} parent=5 // pred_fallthru
        _
    $region6: #{tpu_custom_call.1} parent=1 // loop_footer
      %s22 = sadd.s32 1, %s18
    $region7: #{tpu_custom_call.1} parent=1 // loop_footer_branch
      %17 = sbr.rel target = $region3
    $region8: #{tpu_custom_call.1} parent=1 // loop_exit
      _
    %3857 = vsyncpa [#allocation3], 1
    %s3858 = scalar_lea.sflag [#allocation3], 1
    %3859 = vsyncpa %s3858, 1
    %3860 = vsyncpa [#allocation6], 1
    %s3861 = scalar_lea.sflag [#allocation6], 1
    %3862 = vsyncpa %s3861, 1
    %3863 = vsyncpa [#allocation4], 1
    %s3864 = scalar_lea.sflag [#allocation4], 1
    %3865 = vsyncpa %s3864, 1

</llo_original>
